<compile_context>
chip_gen: v5e
topology: v5e:2x2
jax: 0.10.0
libtpu: 0.0.40
codegen_flags: <defaults>
</compile_context>

<pallas_src>
import functools

import numpy as np
import jax
import jax.numpy as jnp
from jax.experimental import pallas as pl
from jax.experimental.pallas import tpu as pltpu

BN_EPS = 1e-5                      # PyTorch BatchNorm1d default
_LANE = 128
_SUBLANE = 8
_VMEM_LIMIT = 48 * 1024 * 1024     # below v7x's 64 MiB physical VMEM, with headroom
_A_TILE_BYTES = 4 * 1024 * 1024    # per-buffer budget for one K-tile of A (bf16)


def _round_up(v, m):
    return ((v + m - 1) // m) * m


def _choose_k_block(k_pad, n_pad):
    """Largest multiple of 128 dividing k_pad whose bf16 A-tile fits the budget."""
    max_rows = max(_LANE, (_A_TILE_BYTES // (n_pad * 2)) // _LANE * _LANE)
    n = k_pad // _LANE
    best = 1
    for d in range(1, n + 1):
        if n % d == 0 and d * _LANE <= max_rows:
            best = d
    return best * _LANE


# ----------------------------------------------------------------------------
# Pallas kernels
# ----------------------------------------------------------------------------
def _split_dot(a, b):
    """f32-accurate a @ b for the small BN-stat matrices, robust to any MXU
    truncation of f32 operands: split `a` into a bf16-exact part + residual
    (`b` holds only 0/1 entries, which are bf16-exact)."""
    a_hi = a.astype(jnp.bfloat16).astype(jnp.float32)
    a_lo = a - a_hi
    return (jnp.dot(a_hi, b, preferred_element_type=jnp.float32)
            + jnp.dot(a_lo, b, preferred_element_type=jnp.float32))


def _convt_bn_kernel(x_ref, a_ref, sr_ref, se_ref, g_ref, b_ref, o_ref, *,
                     inv_count, relu, batch):
    """Gridded over K: accumulate x @ A into the resident output block; on the
    last K step apply training-mode BatchNorm1d (+ optional ReLU) and re-zero
    the padded batch rows so downstream statistics stay clean."""
    k = pl.program_id(0)

    @pl.when(k == 0)
    def _init():
        o_ref[...] = jnp.zeros_like(o_ref)

    o_ref[...] += jnp.dot(x_ref[...].astype(jnp.bfloat16), a_ref[...],
                          preferred_element_type=jnp.float32)

    @pl.when(k == pl.num_programs(0) - 1)
    def _finalize():
        y = o_ref[...]                                   # (B_pad, N_pad) f32
        s1 = jnp.sum(y, axis=0, keepdims=True)           # padded rows are zero
        s2 = jnp.sum(y * y, axis=0, keepdims=True)
        sum_c = _split_dot(s1, sr_ref[...])              # (1, C_pad) per-channel sums
        sq_c = _split_dot(s2, sr_ref[...])
        mean_c = sum_c * inv_count
        var_c = sq_c * inv_count - mean_c * mean_c       # biased var (PyTorch norm)
        a_c = jax.lax.rsqrt(var_c + BN_EPS) * g_ref[...]
        b_c = b_ref[...] - mean_c * a_c
        a_f = _split_dot(a_c, se_ref[...])               # per-channel -> flat layout
        b_f = _split_dot(b_c, se_ref[...])
        out = y * a_f + b_f
        if relu:
            out = jnp.maximum(out, 0.0)
        rows = jax.lax.broadcasted_iota(jnp.int32, out.shape, 0)
        o_ref[...] = jnp.where(rows < batch, out, 0.0)   # keep pad batch rows at 0


def _convt_bias_kernel(x_ref, a_ref, bias_ref, o_ref):
    """Final layer: K-tiled accumulation of x @ A, then + bias (no BN/ReLU)."""
    k = pl.program_id(0)

    @pl.when(k == 0)
    def _init():
        o_ref[...] = jnp.zeros_like(o_ref)

    o_ref[...] += jnp.dot(x_ref[...].astype(jnp.bfloat16), a_ref[...],
                          preferred_element_type=jnp.float32)

    @pl.when(k == pl.num_programs(0) - 1)
    def _finalize():
        o_ref[...] = o_ref[...] + bias_ref[...]


# ----------------------------------------------------------------------------
# pallas_call wrappers (one per layer type)
# ----------------------------------------------------------------------------
def _bn_layer_call(h, const, meta):
    b_pad = h.shape[0]
    a = const['A']
    k_pad, n_pad = a.shape
    c_pad = const['SR'].shape[1]
    bk = meta['bk']
    kernel = functools.partial(_convt_bn_kernel, inv_count=meta['inv_count'],
                               relu=meta['relu'], batch=meta['batch'])
    return pl.pallas_call(
        kernel,
        out_shape=jax.ShapeDtypeStruct((b_pad, n_pad), jnp.float32),
        grid=(k_pad // bk,),
        in_specs=[
            pl.BlockSpec((b_pad, bk), lambda k: (0, k)),       # x K-tile (f32)
            pl.BlockSpec((bk, n_pad), lambda k: (k, 0)),       # A K-tile (bf16)
            pl.BlockSpec((n_pad, c_pad), lambda k: (0, 0)),    # channel reduce (0/1)
            pl.BlockSpec((c_pad, n_pad), lambda k: (0, 0)),    # channel expand (0/1)
            pl.BlockSpec((1, c_pad), lambda k: (0, 0)),        # gamma
            pl.BlockSpec((1, c_pad), lambda k: (0, 0)),        # beta
        ],
        out_specs=pl.BlockSpec((b_pad, n_pad), lambda k: (0, 0)),
        compiler_params=pltpu.CompilerParams(
            dimension_semantics=("arbitrary",),   # the only axis is the K reduction
            vmem_limit_bytes=_VMEM_LIMIT),
    )(h, a, const['SR'], const['SE'], const['gamma'], const['beta'])


def _bias_layer_call(h, const, meta):
    b_pad = h.shape[0]
    a = const['A']
    k_pad, n_pad = a.shape
    bk = meta['bk']
    return pl.pallas_call(
        _convt_bias_kernel,
        out_shape=jax.ShapeDtypeStruct((b_pad, n_pad), jnp.float32),
        grid=(k_pad // bk,),
        in_specs=[
            pl.BlockSpec((b_pad, bk), lambda k: (0, k)),
            pl.BlockSpec((bk, n_pad), lambda k: (k, 0)),
            pl.BlockSpec((1, n_pad), lambda k: (0, 0)),
        ],
        out_specs=pl.BlockSpec((b_pad, n_pad), lambda k: (0, 0)),
        compiler_params=pltpu.CompilerParams(
            dimension_semantics=("arbitrary",),
            vmem_limit_bytes=_VMEM_LIMIT),
    )(h, a, const['bias'])


# ----------------------------------------------------------------------------
# Host-side glue: layer specs, params, ConvT -> matmul lowering (built ONCE)
# ----------------------------------------------------------------------------
def generator_layer_specs(window_size, hidden_multiplier, latent_size,
                          n_channels, max_filters, kernel_multiplier):
    """Mirror Generator.__init__ to produce per-layer configs."""
    n_layers = int(np.log2(window_size)) + 1
    specs = []
    filters = min(max_filters, hidden_multiplier * 2 ** (n_layers - 2))
    specs.append(dict(cin=latent_size, cout=filters, k=3, stride=1, pad=0,
                      bn=True, relu=False, bias=False))
    prev = filters
    for i in reversed(range(1, n_layers - 1)):
        filters = min(max_filters, hidden_multiplier * 2 ** (i - 1))
        specs.append(dict(cin=prev, cout=filters, k=4 * kernel_multiplier,
                          stride=2, pad=1 + (kernel_multiplier - 1) * 2,
                          bn=True, relu=True, bias=False))
        prev = filters
    specs.append(dict(cin=prev, cout=n_channels, k=3, stride=1, pad=1,
                      bn=False, relu=False, bias=True))
    return specs


def init_params(key, specs):
    params = []
    for s in specs:
        key, kw, kg, kb = jax.random.split(key, 4)
        p = dict(w=0.1 * jax.random.normal(kw, (s['cin'], s['cout'], s['k']),
                                           jnp.float32))
        if s['bn']:
            p['gamma'] = 1.0 + 0.1 * jax.random.normal(kg, (s['cout'],), jnp.float32)
            p['beta'] = 0.1 * jax.random.normal(kb, (s['cout'],), jnp.float32)
        if s['bias']:
            p['bias'] = 0.1 * jax.random.normal(kb, (s['cout'],), jnp.float32)
        params.append(p)
    return params


def _build_convt_matrix(w, Lin, stride, padding):
    """Dense A with flatten(convT(x)) == flatten(x) @ A (per batch row)."""
    w = np.asarray(w, np.float32)
    Cin, Cout, K = w.shape
    Lout = (Lin - 1) * stride - 2 * padding + K
    A = np.zeros((Cin * Lin, Cout * Lout), np.float32)
    for li in range(Lin):
        for k in range(K):
            lo = li * stride - padding + k
            if 0 <= lo < Lout:
                A[li::Lin, lo::Lout] += w[:, :, k]
    return A, Lout


def make_generator_forward(specs, params, length_in, batch):
    """Builds all layer constants once, returns a jitted forward callable."""
    b_pad = _round_up(max(batch, _SUBLANE), _SUBLANE)
    consts, metas = [], []
    L = length_in
    for s, p in zip(specs, params):
        A, Lout = _build_convt_matrix(np.asarray(p['w']), L, s['stride'], s['pad'])
        k_real, n_real = A.shape
        k_pad, n_pad = _round_up(k_real, _LANE), _round_up(n_real, _LANE)
        A_pad = np.zeros((k_pad, n_pad), np.float32)
        A_pad[:k_real, :n_real] = A
        c = dict(A=jnp.asarray(A_pad, jnp.bfloat16))        # bf16 weights for the MXU
        meta = dict(bn=s['bn'], relu=s['relu'], batch=batch,
                    bk=_choose_k_block(k_pad, n_pad),
                    n_real=n_real, cout=s['cout'], lout=Lout)
        if s['bn']:
            C = s['cout']
            c_pad = _round_up(C, _LANE)
            SR = np.zeros((n_pad, c_pad), np.float32)       # flat -> per-channel sums
            SE = np.zeros((c_pad, n_pad), np.float32)       # per-channel -> flat
            for ch in range(C):
                SR[ch * Lout:(ch + 1) * Lout, ch] = 1.0
                SE[ch, ch * Lout:(ch + 1) * Lout] = 1.0
            gamma = np.zeros((1, c_pad), np.float32)
            beta = np.zeros((1, c_pad), np.float32)
            gamma[0, :C] = np.asarray(p['gamma'], np.float32)
            beta[0, :C] = np.asarray(p['beta'], np.float32)
            c.update(SR=jnp.asarray(SR), SE=jnp.asarray(SE),
                     gamma=jnp.asarray(gamma), beta=jnp.asarray(beta))
            meta['inv_count'] = 1.0 / float(batch * Lout)
        else:
            bias = np.zeros((1, n_pad), np.float32)
            bias[0, :n_real] = np.repeat(np.asarray(p['bias'], np.float32), Lout)
            c['bias'] = jnp.asarray(bias)
        consts.append(c)
        metas.append(meta)
        L = Lout
    metas = tuple(metas)
    k0_pad = consts[0]['A'].shape[0]
    n_out, l_out, n_real_out = specs[-1]['cout'], metas[-1]['lout'], metas[-1]['n_real']

    def fwd(x, layer_consts):
        b = x.shape[0]
        h = x[:, :, 0, :].astype(jnp.float32).reshape(b, -1)   # (B, Cin*L0)
        h = jnp.pad(h, ((0, b_pad - b), (0, k0_pad - h.shape[1])))
        for const, meta in zip(layer_consts, metas):
            h = _bn_layer_call(h, const, meta) if meta['bn'] \
                else _bias_layer_call(h, const, meta)
        return h[:b, :n_real_out].reshape(b, n_out, 1, l_out)

    fwd_jit = jax.jit(fwd)

    def call(x, m=None):
        if x.shape[0] != batch:
            raise ValueError("forward specialized for batch=%d" % batch)
        out = fwd_jit(x, consts)
        if m is not None:
            out = out * m
        return out

    return call


# ----------------------------------------------------------------------------
# Pure-numpy references (PyTorch semantics) for verification
# ----------------------------------------------------------------------------
def _bf16_round(a):
    return np.asarray(jnp.asarray(a, jnp.float32).astype(jnp.bfloat16)
                      .astype(jnp.float32))


def _ref_convt1d(x, w, stride, padding, bias=None):
    B, Cin, Lin = x.shape
    _, Cout, K = w.shape
    Lout = (Lin - 1) * stride - 2 * padding + K
    y = np.zeros((B, Cout, Lout), np.float32)
    for li in range(Lin):
        for k in range(K):
            lo = li * stride - padding + k
            if 0 <= lo < Lout:
                y[:, :, lo] += x[:, :, li] @ w[:, :, k]
    if bias is not None:
        y += bias[None, :, None]
    return y


def _ref_bn(y, gamma, beta):
    mean = y.mean(axis=(0, 2), keepdims=True)
    var = (y * y).mean(axis=(0, 2), keepdims=True) - mean * mean   # biased
    return ((y - mean) / np.sqrt(var + BN_EPS) * gamma[None, :, None]
            + beta[None, :, None])


def ref_forward(x, specs, params, emulate_bf16=False):
    h = np.asarray(x, np.float32)[:, :, 0, :]
    for s, p in zip(specs, params):
        w = np.asarray(p['w'], np.float32)
        if emulate_bf16:      # what the MXU sees: bf16 inputs, f32 accumulation
            w, h = _bf16_round(w), _bf16_round(h)
        b = np.asarray(p['bias'], np.float32) if s['bias'] else None
        h = _ref_convt1d(h, w, s['stride'], s['pad'], b)
        if s['bn']:
            h = _ref_bn(h, np.asarray(p['gamma']), np.asarray(p['beta']))
        if s['relu']:
            h = np.maximum(h, 0.0)
    return h[:, :, None, :]


# ----------------------------------------------------------------------------
if __name__ == "__main__":
    # Small hyperparameters consistent with the module's __init__.
    window_size = 16
    hidden_multiplier = 8
    latent_size = 16
    n_channels = 3
    max_filters = 32
    kernel_multiplier = 1
    batch = 2
    length_in = 1

    specs = generator_layer_specs(window_size, hidden_multiplier, latent_size,
                                  n_channels, max_filters, kernel_multiplier)
    key = jax.random.PRNGKey(0)
    key, kp, kx = jax.random.split(key, 3)
    params = init_params(kp, specs)

    # Input as in the PyTorch module: 4-D, squeezed over axis 2 inside forward.
    x = jax.random.normal(kx, (batch, latent_size, 1, length_in), jnp.float32)

    gen_forward = make_generator_forward(specs, params, length_in=length_in,
                                         batch=batch)
    out = jax.block_until_ready(gen_forward(x))

    x_np = np.asarray(x)
    ref_emulated = ref_forward(x_np, specs, params, emulate_bf16=True)
    ref_f32 = ref_forward(x_np, specs, params, emulate_bf16=False)

    assert out.shape == ref_f32.shape, (out.shape, ref_f32.shape)
    # Structural check: kernel vs. a reference using the same bf16-rounded
    # matmul inputs with f32 accumulation and f32 BN statistics.
    np.testing.assert_allclose(np.asarray(out), ref_emulated, rtol=5e-3, atol=5e-3)
    # Semantic check vs. the exact f32 PyTorch-style reference; tolerance
    # accounts only for the bf16 matmul inputs.
    np.testing.assert_allclose(np.asarray(out), ref_f32, rtol=5e-2, atol=5e-2)

    print("KERNEL_OK")
</pallas_src>

<mosaic_0001>
module attributes {stable_mosaic.version = 11 : i64} {
  func.func @_convt_bn_kernel(%arg0: i32, %arg1: memref<8x128xf32, #tpu.memory_space<vmem>>, %arg2: memref<128x256xbf16, #tpu.memory_space<vmem>>, %arg3: memref<256x128xf32, #tpu.memory_space<vmem>>, %arg4: memref<128x256xf32, #tpu.memory_space<vmem>>, %arg5: memref<1x128xf32, #tpu.memory_space<vmem>>, %arg6: memref<1x128xf32, #tpu.memory_space<vmem>>, %arg7: memref<8x256xf32, #tpu.memory_space<vmem>>) attributes {dimension_semantics = [#tpu.dimension_semantics<arbitrary>], iteration_bounds = array<i64: 1>, scalar_prefetch = 0 : i64, scratch_operands = 0 : i64, tpu.core_type = #tpu.core_type<tc>, window_params = [{transform_indices = @transform_0, window_bounds = array<i64: 8, 128>}, {transform_indices = @transform_1, window_bounds = array<i64: 128, 256>}, {pipeline_mode = #tpu.pipeline_mode<synchronous>, transform_indices = @transform_2, window_bounds = array<i64: 256, 128>}, {pipeline_mode = #tpu.pipeline_mode<synchronous>, transform_indices = @transform_3, window_bounds = array<i64: 128, 256>}, {pipeline_mode = #tpu.pipeline_mode<synchronous>, transform_indices = @transform_4, window_bounds = array<i64: 1, 128>}, {pipeline_mode = #tpu.pipeline_mode<synchronous>, transform_indices = @transform_5, window_bounds = array<i64: 1, 128>}, {pipeline_mode = #tpu.pipeline_mode<synchronous>, transform_indices = @transform_6, window_bounds = array<i64: 8, 256>}]} {
    %c0_i32 = arith.constant 0 : i32
    %0 = arith.cmpi eq, %arg0, %c0_i32 : i32
    %1 = arith.extui %0 : i1 to i32
    %c0_i32_0 = arith.constant 0 : i32
    %2 = arith.cmpi ne, %1, %c0_i32_0 : i32
    scf.if %2 {
      %cst_10 = arith.constant 0.000000e+00 : f32
      %13 = vector.broadcast %cst_10 : f32 to vector<8x256xf32>
      %c0_11 = arith.constant 0 : index
      %c0_12 = arith.constant 0 : index
      %14 = vector.load %arg7[%c0_11, %c0_12] : memref<8x256xf32, #tpu.memory_space<vmem>>, vector<8x256xf32>
      tpu.vector_store %arg7[%c0_11, %c0_12], %13 {strides = array<i32>} : memref<8x256xf32, #tpu.memory_space<vmem>>, vector<8x256xf32>,
    } else {
    }
    %c0 = arith.constant 0 : index
    %c0_1 = arith.constant 0 : index
    %3 = vector.load %arg7[%c0, %c0_1] : memref<8x256xf32, #tpu.memory_space<vmem>>, vector<8x256xf32>
    %c0_2 = arith.constant 0 : index
    %c0_3 = arith.constant 0 : index
    %4 = vector.load %arg1[%c0_2, %c0_3] : memref<8x128xf32, #tpu.memory_space<vmem>>, vector<8x128xf32>
    %5 = arith.truncf %4 : vector<8x128xf32> to vector<8x128xbf16>
    %c0_4 = arith.constant 0 : index
    %c0_5 = arith.constant 0 : index
    %6 = vector.load %arg2[%c0_4, %c0_5] : memref<128x256xbf16, #tpu.memory_space<vmem>>, vector<128x256xbf16>
    %cst = arith.constant dense<0.000000e+00> : vector<8x256xf32>
    %7 = tpu.matmul %5, %6, %cst {dimension_numbers = #tpu.dot_dimension_numbers<[1], [0], [0], [1], [0, 0, 1, 1], [], []>} : vector<8x128xbf16>, vector<128x256xbf16>, vector<8x256xf32> -> vector<8x256xf32>
    %8 = arith.addf %3, %7 : vector<8x256xf32>
    %c0_6 = arith.constant 0 : index
    %c0_7 = arith.constant 0 : index
    %9 = vector.load %arg7[%c0_6, %c0_7] : memref<8x256xf32, #tpu.memory_space<vmem>>, vector<8x256xf32>
    tpu.vector_store %arg7[%c0_6, %c0_7], %8 {strides = array<i32>} : memref<8x256xf32, #tpu.memory_space<vmem>>, vector<8x256xf32>,
    %c0_i32_8 = arith.constant 0 : i32
    %10 = arith.cmpi eq, %arg0, %c0_i32_8 : i32
    %11 = arith.extui %10 : i1 to i32
    %c0_i32_9 = arith.constant 0 : i32
    %12 = arith.cmpi ne, %11, %c0_i32_9 : i32
    scf.if %12 {
      %c0_10 = arith.constant 0 : index
      %c0_11 = arith.constant 0 : index
      %13 = vector.load %arg7[%c0_10, %c0_11] : memref<8x256xf32, #tpu.memory_space<vmem>>, vector<8x256xf32>
      %cst_12 = arith.constant dense<0.000000e+00> : vector<256xf32>
      %14 = vector.multi_reduction <add>, %13, %cst_12 [0] : vector<8x256xf32> to vector<256xf32>
      %15 = vector.shape_cast %14 : vector<256xf32> to vector<1x256xf32>
      %16 = arith.mulf %13, %13 : vector<8x256xf32>
      %cst_13 = arith.constant dense<0.000000e+00> : vector<256xf32>
      %17 = vector.multi_reduction <add>, %16, %cst_13 [0] : vector<8x256xf32> to vector<256xf32>
      %18 = vector.shape_cast %17 : vector<256xf32> to vector<1x256xf32>
      %c0_14 = arith.constant 0 : index
      %c0_15 = arith.constant 0 : index
      %19 = vector.load %arg3[%c0_14, %c0_15] : memref<256x128xf32, #tpu.memory_space<vmem>>, vector<256x128xf32>
      %20 = arith.truncf %15 : vector<1x256xf32> to vector<1x256xbf16>
      %21 = arith.extf %20 : vector<1x256xbf16> to vector<1x256xf32>
      %22 = arith.subf %15, %21 : vector<1x256xf32>
      %cst_16 = arith.constant dense<0.000000e+00> : vector<1x128xf32>
      %23 = tpu.matmul %21, %19, %cst_16 {dimension_numbers = #tpu.dot_dimension_numbers<[1], [0], [0], [1], [0, 0, 1, 1], [], []>} : vector<1x256xf32>, vector<256x128xf32>, vector<1x128xf32> -> vector<1x128xf32>
      %cst_17 = arith.constant dense<0.000000e+00> : vector<1x128xf32>
      %24 = tpu.matmul %22, %19, %cst_17 {dimension_numbers = #tpu.dot_dimension_numbers<[1], [0], [0], [1], [0, 0, 1, 1], [], []>} : vector<1x256xf32>, vector<256x128xf32>, vector<1x128xf32> -> vector<1x128xf32>
      %25 = arith.addf %23, %24 : vector<1x128xf32>
      %c0_18 = arith.constant 0 : index
      %c0_19 = arith.constant 0 : index
      %26 = vector.load %arg3[%c0_18, %c0_19] : memref<256x128xf32, #tpu.memory_space<vmem>>, vector<256x128xf32>
      %27 = arith.truncf %18 : vector<1x256xf32> to vector<1x256xbf16>
      %28 = arith.extf %27 : vector<1x256xbf16> to vector<1x256xf32>
      %29 = arith.subf %18, %28 : vector<1x256xf32>
      %cst_20 = arith.constant dense<0.000000e+00> : vector<1x128xf32>
      %30 = tpu.matmul %28, %26, %cst_20 {dimension_numbers = #tpu.dot_dimension_numbers<[1], [0], [0], [1], [0, 0, 1, 1], [], []>} : vector<1x256xf32>, vector<256x128xf32>, vector<1x128xf32> -> vector<1x128xf32>
      %cst_21 = arith.constant dense<0.000000e+00> : vector<1x128xf32>
      %31 = tpu.matmul %29, %26, %cst_21 {dimension_numbers = #tpu.dot_dimension_numbers<[1], [0], [0], [1], [0, 0, 1, 1], [], []>} : vector<1x256xf32>, vector<256x128xf32>, vector<1x128xf32> -> vector<1x128xf32>
      %32 = arith.addf %30, %31 : vector<1x128xf32>
      %cst_22 = arith.constant 0.0833333358 : f32
      %33 = vector.broadcast %cst_22 : f32 to vector<1x128xf32>
      %34 = arith.mulf %25, %33 : vector<1x128xf32>
      %cst_23 = arith.constant 0.0833333358 : f32
      %35 = vector.broadcast %cst_23 : f32 to vector<1x128xf32>
      %36 = arith.mulf %32, %35 : vector<1x128xf32>
      %37 = arith.mulf %34, %34 : vector<1x128xf32>
      %38 = arith.subf %36, %37 : vector<1x128xf32>
      %cst_24 = arith.constant 9.99999974E-6 : f32
      %39 = vector.broadcast %cst_24 : f32 to vector<1x128xf32>
      %40 = arith.addf %38, %39 : vector<1x128xf32>
      %41 = math.rsqrt %40 : vector<1x128xf32>
      %c0_25 = arith.constant 0 : index
      %c0_26 = arith.constant 0 : index
      %42 = vector.load %arg5[%c0_25, %c0_26] : memref<1x128xf32, #tpu.memory_space<vmem>>, vector<1x128xf32>
      %43 = arith.mulf %41, %42 : vector<1x128xf32>
      %c0_27 = arith.constant 0 : index
      %c0_28 = arith.constant 0 : index
      %44 = vector.load %arg6[%c0_27, %c0_28] : memref<1x128xf32, #tpu.memory_space<vmem>>, vector<1x128xf32>
      %45 = arith.mulf %34, %43 : vector<1x128xf32>
      %46 = arith.subf %44, %45 : vector<1x128xf32>
      %c0_29 = arith.constant 0 : index
      %c0_30 = arith.constant 0 : index
      %47 = vector.load %arg4[%c0_29, %c0_30] : memref<128x256xf32, #tpu.memory_space<vmem>>, vector<128x256xf32>
      %48 = arith.truncf %43 : vector<1x128xf32> to vector<1x128xbf16>
      %49 = arith.extf %48 : vector<1x128xbf16> to vector<1x128xf32>
      %50 = arith.subf %43, %49 : vector<1x128xf32>
      %cst_31 = arith.constant dense<0.000000e+00> : vector<1x256xf32>
      %51 = tpu.matmul %49, %47, %cst_31 {dimension_numbers = #tpu.dot_dimension_numbers<[1], [0], [0], [1], [0, 0, 1, 1], [], []>} : vector<1x128xf32>, vector<128x256xf32>, vector<1x256xf32> -> vector<1x256xf32>
      %cst_32 = arith.constant dense<0.000000e+00> : vector<1x256xf32>
      %52 = tpu.matmul %50, %47, %cst_32 {dimension_numbers = #tpu.dot_dimension_numbers<[1], [0], [0], [1], [0, 0, 1, 1], [], []>} : vector<1x128xf32>, vector<128x256xf32>, vector<1x256xf32> -> vector<1x256xf32>
      %53 = arith.addf %51, %52 : vector<1x256xf32>
      %c0_33 = arith.constant 0 : index
      %c0_34 = arith.constant 0 : index
      %54 = vector.load %arg4[%c0_33, %c0_34] : memref<128x256xf32, #tpu.memory_space<vmem>>, vector<128x256xf32>
      %55 = arith.truncf %46 : vector<1x128xf32> to vector<1x128xbf16>
      %56 = arith.extf %55 : vector<1x128xbf16> to vector<1x128xf32>
      %57 = arith.subf %46, %56 : vector<1x128xf32>
      %cst_35 = arith.constant dense<0.000000e+00> : vector<1x256xf32>
      %58 = tpu.matmul %56, %54, %cst_35 {dimension_numbers = #tpu.dot_dimension_numbers<[1], [0], [0], [1], [0, 0, 1, 1], [], []>} : vector<1x128xf32>, vector<128x256xf32>, vector<1x256xf32> -> vector<1x256xf32>
      %cst_36 = arith.constant dense<0.000000e+00> : vector<1x256xf32>
      %59 = tpu.matmul %57, %54, %cst_36 {dimension_numbers = #tpu.dot_dimension_numbers<[1], [0], [0], [1], [0, 0, 1, 1], [], []>} : vector<1x128xf32>, vector<128x256xf32>, vector<1x256xf32> -> vector<1x256xf32>
      %60 = arith.addf %58, %59 : vector<1x256xf32>
      %61 = vector.broadcast %53 : vector<1x256xf32> to vector<8x256xf32>
      %62 = arith.mulf %13, %61 : vector<8x256xf32>
      %63 = vector.broadcast %60 : vector<1x256xf32> to vector<8x256xf32>
      %64 = arith.addf %62, %63 : vector<8x256xf32>
      %cst_37 = arith.constant 0.000000e+00 : f32
      %65 = vector.broadcast %cst_37 : f32 to vector<8x256xf32>
      %66 = arith.maximumf %64, %65 : vector<8x256xf32>
      %67 = tpu.iota {dimensions = array<i32: 0>} : vector<8x256xi32>
      %c2_i32 = arith.constant 2 : i32
      %68 = vector.broadcast %c2_i32 : i32 to vector<8x256xi32>
      %69 = arith.cmpi slt, %67, %68 : vector<8x256xi32>
      %cst_38 = arith.constant 0.000000e+00 : f32
      %70 = vector.broadcast %cst_38 : f32 to vector<8x256xf32>
      %71 = arith.select %69, %66, %70 : vector<8x256xi1>, vector<8x256xf32>
      %c0_39 = arith.constant 0 : index
      %c0_40 = arith.constant 0 : index
      %72 = vector.load %arg7[%c0_39, %c0_40] : memref<8x256xf32, #tpu.memory_space<vmem>>, vector<8x256xf32>
      tpu.vector_store %arg7[%c0_39, %c0_40], %71 {strides = array<i32>} : memref<8x256xf32, #tpu.memory_space<vmem>>, vector<8x256xf32>,
    } else {
    }
    return
  }
  func.func @transform_0(%arg0: i32) -> (i32, i32) {
    %c0_i32 = arith.constant 0 : i32
    %c0_i32_0 = arith.constant 0 : i32
    return %c0_i32, %arg0 : i32, i32
  }
  func.func @transform_1(%arg0: i32) -> (i32, i32) {
    %c0_i32 = arith.constant 0 : i32
    %c0_i32_0 = arith.constant 0 : i32
    return %arg0, %c0_i32 : i32, i32
  }
  func.func @transform_2(%arg0: i32) -> (i32, i32) {
    %c0_i32 = arith.constant 0 : i32
    %c0_i32_0 = arith.constant 0 : i32
    %c0_i32_1 = arith.constant 0 : i32
    return %c0_i32, %c0_i32_0 : i32, i32
  }
  func.func @transform_3(%arg0: i32) -> (i32, i32) {
    %c0_i32 = arith.constant 0 : i32
    %c0_i32_0 = arith.constant 0 : i32
    %c0_i32_1 = arith.constant 0 : i32
    return %c0_i32, %c0_i32_0 : i32, i32
  }
  func.func @transform_4(%arg0: i32) -> (i32, i32) {
    %c0_i32 = arith.constant 0 : i32
    %c0_i32_0 = arith.constant 0 : i32
    %c0_i32_1 = arith.constant 0 : i32
    return %c0_i32, %c0_i32_0 : i32, i32
  }
  func.func @transform_5(%arg0: i32) -> (i32, i32) {
    %c0_i32 = arith.constant 0 : i32
    %c0_i32_0 = arith.constant 0 : i32
    %c0_i32_1 = arith.constant 0 : i32
    return %c0_i32, %c0_i32_0 : i32, i32
  }
  func.func @transform_6(%arg0: i32) -> (i32, i32) {
    %c0_i32 = arith.constant 0 : i32
    %c0_i32_0 = arith.constant 0 : i32
    %c0_i32_1 = arith.constant 0 : i32
    return %c0_i32, %c0_i32_0 : i32, i32
  }
}

module attributes {stable_mosaic.version = 11 : i64} {
  func.func @_convt_bn_kernel(%arg0: i32, %arg1: memref<8x256xf32, #tpu.memory_space<vmem>>, %arg2: memref<256x256xbf16, #tpu.memory_space<vmem>>, %arg3: memref<256x128xf32, #tpu.memory_space<vmem>>, %arg4: memref<128x256xf32, #tpu.memory_space<vmem>>, %arg5: memref<1x128xf32, #tpu.memory_space<vmem>>, %arg6: memref<1x128xf32, #tpu.memory_space<vmem>>, %arg7: memref<8x256xf32, #tpu.memory_space<vmem>>) attributes {dimension_semantics = [#tpu.dimension_semantics<arbitrary>], iteration_bounds = array<i64: 1>, scalar_prefetch = 0 : i64, scratch_operands = 0 : i64, tpu.core_type = #tpu.core_type<tc>, window_params = [{transform_indices = @transform_0, window_bounds = array<i64: 8, 256>}, {transform_indices = @transform_1, window_bounds = array<i64: 256, 256>}, {pipeline_mode = #tpu.pipeline_mode<synchronous>, transform_indices = @transform_2, window_bounds = array<i64: 256, 128>}, {pipeline_mode = #tpu.pipeline_mode<synchronous>, transform_indices = @transform_3, window_bounds = array<i64: 128, 256>}, {pipeline_mode = #tpu.pipeline_mode<synchronous>, transform_indices = @transform_4, window_bounds = array<i64: 1, 128>}, {pipeline_mode = #tpu.pipeline_mode<synchronous>, transform_indices = @transform_5, window_bounds = array<i64: 1, 128>}, {pipeline_mode = #tpu.pipeline_mode<synchronous>, transform_indices = @transform_6, window_bounds = array<i64: 8, 256>}]} {
    %c0_i32 = arith.constant 0 : i32
    %0 = arith.cmpi eq, %arg0, %c0_i32 : i32
    %1 = arith.extui %0 : i1 to i32
    %c0_i32_0 = arith.constant 0 : i32
    %2 = arith.cmpi ne, %1, %c0_i32_0 : i32
    scf.if %2 {
      %cst_10 = arith.constant 0.000000e+00 : f32
      %13 = vector.broadcast %cst_10 : f32 to vector<8x256xf32>
      %c0_11 = arith.constant 0 : index
      %c0_12 = arith.constant 0 : index
      %14 = vector.load %arg7[%c0_11, %c0_12] : memref<8x256xf32, #tpu.memory_space<vmem>>, vector<8x256xf32>
      tpu.vector_store %arg7[%c0_11, %c0_12], %13 {strides = array<i32>} : memref<8x256xf32, #tpu.memory_space<vmem>>, vector<8x256xf32>,
    } else {
    }
    %c0 = arith.constant 0 : index
    %c0_1 = arith.constant 0 : index
    %3 = vector.load %arg7[%c0, %c0_1] : memref<8x256xf32, #tpu.memory_space<vmem>>, vector<8x256xf32>
    %c0_2 = arith.constant 0 : index
    %c0_3 = arith.constant 0 : index
    %4 = vector.load %arg1[%c0_2, %c0_3] : memref<8x256xf32, #tpu.memory_space<vmem>>, vector<8x256xf32>
    %5 = arith.truncf %4 : vector<8x256xf32> to vector<8x256xbf16>
    %c0_4 = arith.constant 0 : index
    %c0_5 = arith.constant 0 : index
    %6 = vector.load %arg2[%c0_4, %c0_5] : memref<256x256xbf16, #tpu.memory_space<vmem>>, vector<256x256xbf16>
    %cst = arith.constant dense<0.000000e+00> : vector<8x256xf32>
    %7 = tpu.matmul %5, %6, %cst {dimension_numbers = #tpu.dot_dimension_numbers<[1], [0], [0], [1], [0, 0, 1, 1], [], []>} : vector<8x256xbf16>, vector<256x256xbf16>, vector<8x256xf32> -> vector<8x256xf32>
    %8 = arith.addf %3, %7 : vector<8x256xf32>
    %c0_6 = arith.constant 0 : index
    %c0_7 = arith.constant 0 : index
    %9 = vector.load %arg7[%c0_6, %c0_7] : memref<8x256xf32, #tpu.memory_space<vmem>>, vector<8x256xf32>
    tpu.vector_store %arg7[%c0_6, %c0_7], %8 {strides = array<i32>} : memref<8x256xf32, #tpu.memory_space<vmem>>, vector<8x256xf32>,
    %c0_i32_8 = arith.constant 0 : i32
    %10 = arith.cmpi eq, %arg0, %c0_i32_8 : i32
    %11 = arith.extui %10 : i1 to i32
    %c0_i32_9 = arith.constant 0 : i32
    %12 = arith.cmpi ne, %11, %c0_i32_9 : i32
    scf.if %12 {
      %c0_10 = arith.constant 0 : index
      %c0_11 = arith.constant 0 : index
      %13 = vector.load %arg7[%c0_10, %c0_11] : memref<8x256xf32, #tpu.memory_space<vmem>>, vector<8x256xf32>
      %cst_12 = arith.constant dense<0.000000e+00> : vector<256xf32>
      %14 = vector.multi_reduction <add>, %13, %cst_12 [0] : vector<8x256xf32> to vector<256xf32>
      %15 = vector.shape_cast %14 : vector<256xf32> to vector<1x256xf32>
      %16 = arith.mulf %13, %13 : vector<8x256xf32>
      %cst_13 = arith.constant dense<0.000000e+00> : vector<256xf32>
      %17 = vector.multi_reduction <add>, %16, %cst_13 [0] : vector<8x256xf32> to vector<256xf32>
      %18 = vector.shape_cast %17 : vector<256xf32> to vector<1x256xf32>
      %c0_14 = arith.constant 0 : index
      %c0_15 = arith.constant 0 : index
      %19 = vector.load %arg3[%c0_14, %c0_15] : memref<256x128xf32, #tpu.memory_space<vmem>>, vector<256x128xf32>
      %20 = arith.truncf %15 : vector<1x256xf32> to vector<1x256xbf16>
      %21 = arith.extf %20 : vector<1x256xbf16> to vector<1x256xf32>
      %22 = arith.subf %15, %21 : vector<1x256xf32>
      %cst_16 = arith.constant dense<0.000000e+00> : vector<1x128xf32>
      %23 = tpu.matmul %21, %19, %cst_16 {dimension_numbers = #tpu.dot_dimension_numbers<[1], [0], [0], [1], [0, 0, 1, 1], [], []>} : vector<1x256xf32>, vector<256x128xf32>, vector<1x128xf32> -> vector<1x128xf32>
      %cst_17 = arith.constant dense<0.000000e+00> : vector<1x128xf32>
      %24 = tpu.matmul %22, %19, %cst_17 {dimension_numbers = #tpu.dot_dimension_numbers<[1], [0], [0], [1], [0, 0, 1, 1], [], []>} : vector<1x256xf32>, vector<256x128xf32>, vector<1x128xf32> -> vector<1x128xf32>
      %25 = arith.addf %23, %24 : vector<1x128xf32>
      %c0_18 = arith.constant 0 : index
      %c0_19 = arith.constant 0 : index
      %26 = vector.load %arg3[%c0_18, %c0_19] : memref<256x128xf32, #tpu.memory_space<vmem>>, vector<256x128xf32>
      %27 = arith.truncf %18 : vector<1x256xf32> to vector<1x256xbf16>
      %28 = arith.extf %27 : vector<1x256xbf16> to vector<1x256xf32>
      %29 = arith.subf %18, %28 : vector<1x256xf32>
      %cst_20 = arith.constant dense<0.000000e+00> : vector<1x128xf32>
      %30 = tpu.matmul %28, %26, %cst_20 {dimension_numbers = #tpu.dot_dimension_numbers<[1], [0], [0], [1], [0, 0, 1, 1], [], []>} : vector<1x256xf32>, vector<256x128xf32>, vector<1x128xf32> -> vector<1x128xf32>
      %cst_21 = arith.constant dense<0.000000e+00> : vector<1x128xf32>
      %31 = tpu.matmul %29, %26, %cst_21 {dimension_numbers = #tpu.dot_dimension_numbers<[1], [0], [0], [1], [0, 0, 1, 1], [], []>} : vector<1x256xf32>, vector<256x128xf32>, vector<1x128xf32> -> vector<1x128xf32>
      %32 = arith.addf %30, %31 : vector<1x128xf32>
      %cst_22 = arith.constant 0.0416666679 : f32
      %33 = vector.broadcast %cst_22 : f32 to vector<1x128xf32>
      %34 = arith.mulf %25, %33 : vector<1x128xf32>
      %cst_23 = arith.constant 0.0416666679 : f32
      %35 = vector.broadcast %cst_23 : f32 to vector<1x128xf32>
      %36 = arith.mulf %32, %35 : vector<1x128xf32>
      %37 = arith.mulf %34, %34 : vector<1x128xf32>
      %38 = arith.subf %36, %37 : vector<1x128xf32>
      %cst_24 = arith.constant 9.99999974E-6 : f32
      %39 = vector.broadcast %cst_24 : f32 to vector<1x128xf32>
      %40 = arith.addf %38, %39 : vector<1x128xf32>
      %41 = math.rsqrt %40 : vector<1x128xf32>
      %c0_25 = arith.constant 0 : index
      %c0_26 = arith.constant 0 : index
      %42 = vector.load %arg5[%c0_25, %c0_26] : memref<1x128xf32, #tpu.memory_space<vmem>>, vector<1x128xf32>
      %43 = arith.mulf %41, %42 : vector<1x128xf32>
      %c0_27 = arith.constant 0 : index
      %c0_28 = arith.constant 0 : index
      %44 = vector.load %arg6[%c0_27, %c0_28] : memref<1x128xf32, #tpu.memory_space<vmem>>, vector<1x128xf32>
      %45 = arith.mulf %34, %43 : vector<1x128xf32>
      %46 = arith.subf %44, %45 : vector<1x128xf32>
      %c0_29 = arith.constant 0 : index
      %c0_30 = arith.constant 0 : index
      %47 = vector.load %arg4[%c0_29, %c0_30] : memref<128x256xf32, #tpu.memory_space<vmem>>, vector<128x256xf32>
      %48 = arith.truncf %43 : vector<1x128xf32> to vector<1x128xbf16>
      %49 = arith.extf %48 : vector<1x128xbf16> to vector<1x128xf32>
      %50 = arith.subf %43, %49 : vector<1x128xf32>
      %cst_31 = arith.constant dense<0.000000e+00> : vector<1x256xf32>
      %51 = tpu.matmul %49, %47, %cst_31 {dimension_numbers = #tpu.dot_dimension_numbers<[1], [0], [0], [1], [0, 0, 1, 1], [], []>} : vector<1x128xf32>, vector<128x256xf32>, vector<1x256xf32> -> vector<1x256xf32>
      %cst_32 = arith.constant dense<0.000000e+00> : vector<1x256xf32>
      %52 = tpu.matmul %50, %47, %cst_32 {dimension_numbers = #tpu.dot_dimension_numbers<[1], [0], [0], [1], [0, 0, 1, 1], [], []>} : vector<1x128xf32>, vector<128x256xf32>, vector<1x256xf32> -> vector<1x256xf32>
      %53 = arith.addf %51, %52 : vector<1x256xf32>
      %c0_33 = arith.constant 0 : index
      %c0_34 = arith.constant 0 : index
      %54 = vector.load %arg4[%c0_33, %c0_34] : memref<128x256xf32, #tpu.memory_space<vmem>>, vector<128x256xf32>
      %55 = arith.truncf %46 : vector<1x128xf32> to vector<1x128xbf16>
      %56 = arith.extf %55 : vector<1x128xbf16> to vector<1x128xf32>
      %57 = arith.subf %46, %56 : vector<1x128xf32>
      %cst_35 = arith.constant dense<0.000000e+00> : vector<1x256xf32>
      %58 = tpu.matmul %56, %54, %cst_35 {dimension_numbers = #tpu.dot_dimension_numbers<[1], [0], [0], [1], [0, 0, 1, 1], [], []>} : vector<1x128xf32>, vector<128x256xf32>, vector<1x256xf32> -> vector<1x256xf32>
      %cst_36 = arith.constant dense<0.000000e+00> : vector<1x256xf32>
      %59 = tpu.matmul %57, %54, %cst_36 {dimension_numbers = #tpu.dot_dimension_numbers<[1], [0], [0], [1], [0, 0, 1, 1], [], []>} : vector<1x128xf32>, vector<128x256xf32>, vector<1x256xf32> -> vector<1x256xf32>
      %60 = arith.addf %58, %59 : vector<1x256xf32>
      %61 = vector.broadcast %53 : vector<1x256xf32> to vector<8x256xf32>
      %62 = arith.mulf %13, %61 : vector<8x256xf32>
      %63 = vector.broadcast %60 : vector<1x256xf32> to vector<8x256xf32>
      %64 = arith.addf %62, %63 : vector<8x256xf32>
      %cst_37 = arith.constant 0.000000e+00 : f32
      %65 = vector.broadcast %cst_37 : f32 to vector<8x256xf32>
      %66 = arith.maximumf %64, %65 : vector<8x256xf32>
      %67 = tpu.iota {dimensions = array<i32: 0>} : vector<8x256xi32>
      %c2_i32 = arith.constant 2 : i32
      %68 = vector.broadcast %c2_i32 : i32 to vector<8x256xi32>
      %69 = arith.cmpi slt, %67, %68 : vector<8x256xi32>
      %cst_38 = arith.constant 0.000000e+00 : f32
      %70 = vector.broadcast %cst_38 : f32 to vector<8x256xf32>
      %71 = arith.select %69, %66, %70 : vector<8x256xi1>, vector<8x256xf32>
      %c0_39 = arith.constant 0 : index
      %c0_40 = arith.constant 0 : index
      %72 = vector.load %arg7[%c0_39, %c0_40] : memref<8x256xf32, #tpu.memory_space<vmem>>, vector<8x256xf32>
      tpu.vector_store %arg7[%c0_39, %c0_40], %71 {strides = array<i32>} : memref<8x256xf32, #tpu.memory_space<vmem>>, vector<8x256xf32>,
    } else {
    }
    return
  }
  func.func @transform_0(%arg0: i32) -> (i32, i32) {
    %c0_i32 = arith.constant 0 : i32
    %c0_i32_0 = arith.constant 0 : i32
    return %c0_i32, %arg0 : i32, i32
  }
  func.func @transform_1(%arg0: i32) -> (i32, i32) {
    %c0_i32 = arith.constant 0 : i32
    %c0_i32_0 = arith.constant 0 : i32
    return %arg0, %c0_i32 : i32, i32
  }
  func.func @transform_2(%arg0: i32) -> (i32, i32) {
    %c0_i32 = arith.constant 0 : i32
    %c0_i32_0 = arith.constant 0 : i32
    %c0_i32_1 = arith.constant 0 : i32
    return %c0_i32, %c0_i32_0 : i32, i32
  }
  func.func @transform_3(%arg0: i32) -> (i32, i32) {
    %c0_i32 = arith.constant 0 : i32
    %c0_i32_0 = arith.constant 0 : i32
    %c0_i32_1 = arith.constant 0 : i32
    return %c0_i32, %c0_i32_0 : i32, i32
  }
  func.func @transform_4(%arg0: i32) -> (i32, i32) {
    %c0_i32 = arith.constant 0 : i32
    %c0_i32_0 = arith.constant 0 : i32
    %c0_i32_1 = arith.constant 0 : i32
    return %c0_i32, %c0_i32_0 : i32, i32
  }
  func.func @transform_5(%arg0: i32) -> (i32, i32) {
    %c0_i32 = arith.constant 0 : i32
    %c0_i32_0 = arith.constant 0 : i32
    %c0_i32_1 = arith.constant 0 : i32
    return %c0_i32, %c0_i32_0 : i32, i32
  }
  func.func @transform_6(%arg0: i32) -> (i32, i32) {
    %c0_i32 = arith.constant 0 : i32
    %c0_i32_0 = arith.constant 0 : i32
    %c0_i32_1 = arith.constant 0 : i32
    return %c0_i32, %c0_i32_0 : i32, i32
  }
}

module attributes {stable_mosaic.version = 11 : i64} {
  func.func @_convt_bn_kernel(%arg0: i32, %arg1: memref<8x128xf32, #tpu.memory_space<vmem>>, %arg2: memref<128x128xbf16, #tpu.memory_space<vmem>>, %arg3: memref<128x128xf32, #tpu.memory_space<vmem>>, %arg4: memref<128x128xf32, #tpu.memory_space<vmem>>, %arg5: memref<1x128xf32, #tpu.memory_space<vmem>>, %arg6: memref<1x128xf32, #tpu.memory_space<vmem>>, %arg7: memref<8x128xf32, #tpu.memory_space<vmem>>) attributes {dimension_semantics = [#tpu.dimension_semantics<arbitrary>], iteration_bounds = array<i64: 1>, scalar_prefetch = 0 : i64, scratch_operands = 0 : i64, tpu.core_type = #tpu.core_type<tc>, window_params = [{transform_indices = @transform_0, window_bounds = array<i64: 8, 128>}, {transform_indices = @transform_1, window_bounds = array<i64: 128, 128>}, {pipeline_mode = #tpu.pipeline_mode<synchronous>, transform_indices = @transform_2, window_bounds = array<i64: 128, 128>}, {pipeline_mode = #tpu.pipeline_mode<synchronous>, transform_indices = @transform_3, window_bounds = array<i64: 128, 128>}, {pipeline_mode = #tpu.pipeline_mode<synchronous>, transform_indices = @transform_4, window_bounds = array<i64: 1, 128>}, {pipeline_mode = #tpu.pipeline_mode<synchronous>, transform_indices = @transform_5, window_bounds = array<i64: 1, 128>}, {pipeline_mode = #tpu.pipeline_mode<synchronous>, transform_indices = @transform_6, window_bounds = array<i64: 8, 128>}]} {
    %c0_i32 = arith.constant 0 : i32
    %0 = arith.cmpi eq, %arg0, %c0_i32 : i32
    %1 = arith.extui %0 : i1 to i32
    %c0_i32_0 = arith.constant 0 : i32
    %2 = arith.cmpi ne, %1, %c0_i32_0 : i32
    scf.if %2 {
      %cst_10 = arith.constant 0.000000e+00 : f32
      %13 = vector.broadcast %cst_10 : f32 to vector<8x128xf32>
      %c0_11 = arith.constant 0 : index
      %c0_12 = arith.constant 0 : index
      %14 = vector.load %arg7[%c0_11, %c0_12] : memref<8x128xf32, #tpu.memory_space<vmem>>, vector<8x128xf32>
      tpu.vector_store %arg7[%c0_11, %c0_12], %13 {strides = array<i32>} : memref<8x128xf32, #tpu.memory_space<vmem>>, vector<8x128xf32>,
    } else {
    }
    %c0 = arith.constant 0 : index
    %c0_1 = arith.constant 0 : index
    %3 = vector.load %arg7[%c0, %c0_1] : memref<8x128xf32, #tpu.memory_space<vmem>>, vector<8x128xf32>
    %c0_2 = arith.constant 0 : index
    %c0_3 = arith.constant 0 : index
    %4 = vector.load %arg1[%c0_2, %c0_3] : memref<8x128xf32, #tpu.memory_space<vmem>>, vector<8x128xf32>
    %5 = arith.truncf %4 : vector<8x128xf32> to vector<8x128xbf16>
    %c0_4 = arith.constant 0 : index
    %c0_5 = arith.constant 0 : index
    %6 = vector.load %arg2[%c0_4, %c0_5] : memref<128x128xbf16, #tpu.memory_space<vmem>>, vector<128x128xbf16>
    %cst = arith.constant dense<0.000000e+00> : vector<8x128xf32>
    %7 = tpu.matmul %5, %6, %cst {dimension_numbers = #tpu.dot_dimension_numbers<[1], [0], [0], [1], [0, 0, 1, 1], [], []>} : vector<8x128xbf16>, vector<128x128xbf16>, vector<8x128xf32> -> vector<8x128xf32>
    %8 = arith.addf %3, %7 : vector<8x128xf32>
    %c0_6 = arith.constant 0 : index
    %c0_7 = arith.constant 0 : index
    %9 = vector.load %arg7[%c0_6, %c0_7] : memref<8x128xf32, #tpu.memory_space<vmem>>, vector<8x128xf32>
    tpu.vector_store %arg7[%c0_6, %c0_7], %8 {strides = array<i32>} : memref<8x128xf32, #tpu.memory_space<vmem>>, vector<8x128xf32>,
    %c0_i32_8 = arith.constant 0 : i32
    %10 = arith.cmpi eq, %arg0, %c0_i32_8 : i32
    %11 = arith.extui %10 : i1 to i32
    %c0_i32_9 = arith.constant 0 : i32
    %12 = arith.cmpi ne, %11, %c0_i32_9 : i32
    scf.if %12 {
      %c0_10 = arith.constant 0 : index
      %c0_11 = arith.constant 0 : index
      %13 = vector.load %arg7[%c0_10, %c0_11] : memref<8x128xf32, #tpu.memory_space<vmem>>, vector<8x128xf32>
      %cst_12 = arith.constant dense<0.000000e+00> : vector<128xf32>
      %14 = vector.multi_reduction <add>, %13, %cst_12 [0] : vector<8x128xf32> to vector<128xf32>
      %15 = vector.shape_cast %14 : vector<128xf32> to vector<1x128xf32>
      %16 = arith.mulf %13, %13 : vector<8x128xf32>
      %cst_13 = arith.constant dense<0.000000e+00> : vector<128xf32>
      %17 = vector.multi_reduction <add>, %16, %cst_13 [0] : vector<8x128xf32> to vector<128xf32>
      %18 = vector.shape_cast %17 : vector<128xf32> to vector<1x128xf32>
      %c0_14 = arith.constant 0 : index
      %c0_15 = arith.constant 0 : index
      %19 = vector.load %arg3[%c0_14, %c0_15] : memref<128x128xf32, #tpu.memory_space<vmem>>, vector<128x128xf32>
      %20 = arith.truncf %15 : vector<1x128xf32> to vector<1x128xbf16>
      %21 = arith.extf %20 : vector<1x128xbf16> to vector<1x128xf32>
      %22 = arith.subf %15, %21 : vector<1x128xf32>
      %cst_16 = arith.constant dense<0.000000e+00> : vector<1x128xf32>
      %23 = tpu.matmul %21, %19, %cst_16 {dimension_numbers = #tpu.dot_dimension_numbers<[1], [0], [0], [1], [0, 0, 1, 1], [], []>} : vector<1x128xf32>, vector<128x128xf32>, vector<1x128xf32> -> vector<1x128xf32>
      %cst_17 = arith.constant dense<0.000000e+00> : vector<1x128xf32>
      %24 = tpu.matmul %22, %19, %cst_17 {dimension_numbers = #tpu.dot_dimension_numbers<[1], [0], [0], [1], [0, 0, 1, 1], [], []>} : vector<1x128xf32>, vector<128x128xf32>, vector<1x128xf32> -> vector<1x128xf32>
      %25 = arith.addf %23, %24 : vector<1x128xf32>
      %c0_18 = arith.constant 0 : index
      %c0_19 = arith.constant 0 : index
      %26 = vector.load %arg3[%c0_18, %c0_19] : memref<128x128xf32, #tpu.memory_space<vmem>>, vector<128x128xf32>
      %27 = arith.truncf %18 : vector<1x128xf32> to vector<1x128xbf16>
      %28 = arith.extf %27 : vector<1x128xbf16> to vector<1x128xf32>
      %29 = arith.subf %18, %28 : vector<1x128xf32>
      %cst_20 = arith.constant dense<0.000000e+00> : vector<1x128xf32>
      %30 = tpu.matmul %28, %26, %cst_20 {dimension_numbers = #tpu.dot_dimension_numbers<[1], [0], [0], [1], [0, 0, 1, 1], [], []>} : vector<1x128xf32>, vector<128x128xf32>, vector<1x128xf32> -> vector<1x128xf32>
      %cst_21 = arith.constant dense<0.000000e+00> : vector<1x128xf32>
      %31 = tpu.matmul %29, %26, %cst_21 {dimension_numbers = #tpu.dot_dimension_numbers<[1], [0], [0], [1], [0, 0, 1, 1], [], []>} : vector<1x128xf32>, vector<128x128xf32>, vector<1x128xf32> -> vector<1x128xf32>
      %32 = arith.addf %30, %31 : vector<1x128xf32>
      %cst_22 = arith.constant 0.166666672 : f32
      %33 = vector.broadcast %cst_22 : f32 to vector<1x128xf32>
      %34 = arith.mulf %25, %33 : vector<1x128xf32>
      %cst_23 = arith.constant 0.166666672 : f32
      %35 = vector.broadcast %cst_23 : f32 to vector<1x128xf32>
      %36 = arith.mulf %32, %35 : vector<1x128xf32>
      %37 = arith.mulf %34, %34 : vector<1x128xf32>
      %38 = arith.subf %36, %37 : vector<1x128xf32>
      %cst_24 = arith.constant 9.99999974E-6 : f32
      %39 = vector.broadcast %cst_24 : f32 to vector<1x128xf32>
      %40 = arith.addf %38, %39 : vector<1x128xf32>
      %41 = math.rsqrt %40 : vector<1x128xf32>
      %c0_25 = arith.constant 0 : index
      %c0_26 = arith.constant 0 : index
      %42 = vector.load %arg5[%c0_25, %c0_26] : memref<1x128xf32, #tpu.memory_space<vmem>>, vector<1x128xf32>
      %43 = arith.mulf %41, %42 : vector<1x128xf32>
      %c0_27 = arith.constant 0 : index
      %c0_28 = arith.constant 0 : index
      %44 = vector.load %arg6[%c0_27, %c0_28] : memref<1x128xf32, #tpu.memory_space<vmem>>, vector<1x128xf32>
      %45 = arith.mulf %34, %43 : vector<1x128xf32>
      %46 = arith.subf %44, %45 : vector<1x128xf32>
      %c0_29 = arith.constant 0 : index
      %c0_30 = arith.constant 0 : index
      %47 = vector.load %arg4[%c0_29, %c0_30] : memref<128x128xf32, #tpu.memory_space<vmem>>, vector<128x128xf32>
      %48 = arith.truncf %43 : vector<1x128xf32> to vector<1x128xbf16>
      %49 = arith.extf %48 : vector<1x128xbf16> to vector<1x128xf32>
      %50 = arith.subf %43, %49 : vector<1x128xf32>
      %cst_31 = arith.constant dense<0.000000e+00> : vector<1x128xf32>
      %51 = tpu.matmul %49, %47, %cst_31 {dimension_numbers = #tpu.dot_dimension_numbers<[1], [0], [0], [1], [0, 0, 1, 1], [], []>} : vector<1x128xf32>, vector<128x128xf32>, vector<1x128xf32> -> vector<1x128xf32>
      %cst_32 = arith.constant dense<0.000000e+00> : vector<1x128xf32>
      %52 = tpu.matmul %50, %47, %cst_32 {dimension_numbers = #tpu.dot_dimension_numbers<[1], [0], [0], [1], [0, 0, 1, 1], [], []>} : vector<1x128xf32>, vector<128x128xf32>, vector<1x128xf32> -> vector<1x128xf32>
      %53 = arith.addf %51, %52 : vector<1x128xf32>
      %c0_33 = arith.constant 0 : index
      %c0_34 = arith.constant 0 : index
      %54 = vector.load %arg4[%c0_33, %c0_34] : memref<128x128xf32, #tpu.memory_space<vmem>>, vector<128x128xf32>
      %55 = arith.truncf %46 : vector<1x128xf32> to vector<1x128xbf16>
      %56 = arith.extf %55 : vector<1x128xbf16> to vector<1x128xf32>
      %57 = arith.subf %46, %56 : vector<1x128xf32>
      %cst_35 = arith.constant dense<0.000000e+00> : vector<1x128xf32>
      %58 = tpu.matmul %56, %54, %cst_35 {dimension_numbers = #tpu.dot_dimension_numbers<[1], [0], [0], [1], [0, 0, 1, 1], [], []>} : vector<1x128xf32>, vector<128x128xf32>, vector<1x128xf32> -> vector<1x128xf32>
      %cst_36 = arith.constant dense<0.000000e+00> : vector<1x128xf32>
      %59 = tpu.matmul %57, %54, %cst_36 {dimension_numbers = #tpu.dot_dimension_numbers<[1], [0], [0], [1], [0, 0, 1, 1], [], []>} : vector<1x128xf32>, vector<128x128xf32>, vector<1x128xf32> -> vector<1x128xf32>
      %60 = arith.addf %58, %59 : vector<1x128xf32>
      %61 = vector.broadcast %53 : vector<1x128xf32> to vector<8x128xf32>
      %62 = arith.mulf %13, %61 : vector<8x128xf32>
      %63 = vector.broadcast %60 : vector<1x128xf32> to vector<8x128xf32>
      %64 = arith.addf %62, %63 : vector<8x128xf32>
      %65 = tpu.iota {dimensions = array<i32: 0>} : vector<8x128xi32>
      %c2_i32 = arith.constant 2 : i32
      %66 = vector.broadcast %c2_i32 : i32 to vector<8x128xi32>
      %67 = arith.cmpi slt, %65, %66 : vector<8x128xi32>
      %cst_37 = arith.constant 0.000000e+00 : f32
      %68 = vector.broadcast %cst_37 : f32 to vector<8x128xf32>
      %69 = arith.select %67, %64, %68 : vector<8x128xi1>, vector<8x128xf32>
      %c0_38 = arith.constant 0 : index
      %c0_39 = arith.constant 0 : index
      %70 = vector.load %arg7[%c0_38, %c0_39] : memref<8x128xf32, #tpu.memory_space<vmem>>, vector<8x128xf32>
      tpu.vector_store %arg7[%c0_38, %c0_39], %69 {strides = array<i32>} : memref<8x128xf32, #tpu.memory_space<vmem>>, vector<8x128xf32>,
    } else {
    }
    return
  }
  func.func @transform_0(%arg0: i32) -> (i32, i32) {
    %c0_i32 = arith.constant 0 : i32
    %c0_i32_0 = arith.constant 0 : i32
    return %c0_i32, %arg0 : i32, i32
  }
  func.func @transform_1(%arg0: i32) -> (i32, i32) {
    %c0_i32 = arith.constant 0 : i32
    %c0_i32_0 = arith.constant 0 : i32
    return %arg0, %c0_i32 : i32, i32
  }
  func.func @transform_2(%arg0: i32) -> (i32, i32) {
    %c0_i32 = arith.constant 0 : i32
    %c0_i32_0 = arith.constant 0 : i32
    %c0_i32_1 = arith.constant 0 : i32
    return %c0_i32, %c0_i32_0 : i32, i32
  }
  func.func @transform_3(%arg0: i32) -> (i32, i32) {
    %c0_i32 = arith.constant 0 : i32
    %c0_i32_0 = arith.constant 0 : i32
    %c0_i32_1 = arith.constant 0 : i32
    return %c0_i32, %c0_i32_0 : i32, i32
  }
  func.func @transform_4(%arg0: i32) -> (i32, i32) {
    %c0_i32 = arith.constant 0 : i32
    %c0_i32_0 = arith.constant 0 : i32
    %c0_i32_1 = arith.constant 0 : i32
    return %c0_i32, %c0_i32_0 : i32, i32
  }
  func.func @transform_5(%arg0: i32) -> (i32, i32) {
    %c0_i32 = arith.constant 0 : i32
    %c0_i32_0 = arith.constant 0 : i32
    %c0_i32_1 = arith.constant 0 : i32
    return %c0_i32, %c0_i32_0 : i32, i32
  }
  func.func @transform_6(%arg0: i32) -> (i32, i32) {
    %c0_i32 = arith.constant 0 : i32
    %c0_i32_0 = arith.constant 0 : i32
    %c0_i32_1 = arith.constant 0 : i32
    return %c0_i32, %c0_i32_0 : i32, i32
  }
}

module attributes {stable_mosaic.version = 11 : i64} {
  func.func @_convt_bn_kernel(%arg0: i32, %arg1: memref<8x256xf32, #tpu.memory_space<vmem>>, %arg2: memref<256x256xbf16, #tpu.memory_space<vmem>>, %arg3: memref<256x128xf32, #tpu.memory_space<vmem>>, %arg4: memref<128x256xf32, #tpu.memory_space<vmem>>, %arg5: memref<1x128xf32, #tpu.memory_space<vmem>>, %arg6: memref<1x128xf32, #tpu.memory_space<vmem>>, %arg7: memref<8x256xf32, #tpu.memory_space<vmem>>) attributes {dimension_semantics = [#tpu.dimension_semantics<arbitrary>], iteration_bounds = array<i64: 1>, scalar_prefetch = 0 : i64, scratch_operands = 0 : i64, tpu.core_type = #tpu.core_type<tc>, window_params = [{transform_indices = @transform_0, window_bounds = array<i64: 8, 256>}, {transform_indices = @transform_1, window_bounds = array<i64: 256, 256>}, {pipeline_mode = #tpu.pipeline_mode<synchronous>, transform_indices = @transform_2, window_bounds = array<i64: 256, 128>}, {pipeline_mode = #tpu.pipeline_mode<synchronous>, transform_indices = @transform_3, window_bounds = array<i64: 128, 256>}, {pipeline_mode = #tpu.pipeline_mode<synchronous>, transform_indices = @transform_4, window_bounds = array<i64: 1, 128>}, {pipeline_mode = #tpu.pipeline_mode<synchronous>, transform_indices = @transform_5, window_bounds = array<i64: 1, 128>}, {pipeline_mode = #tpu.pipeline_mode<synchronous>, transform_indices = @transform_6, window_bounds = array<i64: 8, 256>}]} {
    %c0_i32 = arith.constant 0 : i32
    %0 = arith.cmpi eq, %arg0, %c0_i32 : i32
    %1 = arith.extui %0 : i1 to i32
    %c0_i32_0 = arith.constant 0 : i32
    %2 = arith.cmpi ne, %1, %c0_i32_0 : i32
    scf.if %2 {
      %cst_10 = arith.constant 0.000000e+00 : f32
      %13 = vector.broadcast %cst_10 : f32 to vector<8x256xf32>
      %c0_11 = arith.constant 0 : index
      %c0_12 = arith.constant 0 : index
      %14 = vector.load %arg7[%c0_11, %c0_12] : memref<8x256xf32, #tpu.memory_space<vmem>>, vector<8x256xf32>
      tpu.vector_store %arg7[%c0_11, %c0_12], %13 {strides = array<i32>} : memref<8x256xf32, #tpu.memory_space<vmem>>, vector<8x256xf32>,
    } else {
    }
    %c0 = arith.constant 0 : index
    %c0_1 = arith.constant 0 : index
    %3 = vector.load %arg7[%c0, %c0_1] : memref<8x256xf32, #tpu.memory_space<vmem>>, vector<8x256xf32>
    %c0_2 = arith.constant 0 : index
    %c0_3 = arith.constant 0 : index
    %4 = vector.load %arg1[%c0_2, %c0_3] : memref<8x256xf32, #tpu.memory_space<vmem>>, vector<8x256xf32>
    %5 = arith.truncf %4 : vector<8x256xf32> to vector<8x256xbf16>
    %c0_4 = arith.constant 0 : index
    %c0_5 = arith.constant 0 : index
    %6 = vector.load %arg2[%c0_4, %c0_5] : memref<256x256xbf16, #tpu.memory_space<vmem>>, vector<256x256xbf16>
    %cst = arith.constant dense<0.000000e+00> : vector<8x256xf32>
    %7 = tpu.matmul %5, %6, %cst {dimension_numbers = #tpu.dot_dimension_numbers<[1], [0], [0], [1], [0, 0, 1, 1], [], []>} : vector<8x256xbf16>, vector<256x256xbf16>, vector<8x256xf32> -> vector<8x256xf32>
    %8 = arith.addf %3, %7 : vector<8x256xf32>
    %c0_6 = arith.constant 0 : index
    %c0_7 = arith.constant 0 : index
    %9 = vector.load %arg7[%c0_6, %c0_7] : memref<8x256xf32, #tpu.memory_space<vmem>>, vector<8x256xf32>
    tpu.vector_store %arg7[%c0_6, %c0_7], %8 {strides = array<i32>} : memref<8x256xf32, #tpu.memory_space<vmem>>, vector<8x256xf32>,
    %c0_i32_8 = arith.constant 0 : i32
    %10 = arith.cmpi eq, %arg0, %c0_i32_8 : i32
    %11 = arith.extui %10 : i1 to i32
    %c0_i32_9 = arith.constant 0 : i32
    %12 = arith.cmpi ne, %11, %c0_i32_9 : i32
    scf.if %12 {
      %c0_10 = arith.constant 0 : index
      %c0_11 = arith.constant 0 : index
      %13 = vector.load %arg7[%c0_10, %c0_11] : memref<8x256xf32, #tpu.memory_space<vmem>>, vector<8x256xf32>
      %cst_12 = arith.constant dense<0.000000e+00> : vector<256xf32>
      %14 = vector.multi_reduction <add>, %13, %cst_12 [0] : vector<8x256xf32> to vector<256xf32>
      %15 = vector.shape_cast %14 : vector<256xf32> to vector<1x256xf32>
      %16 = arith.mulf %13, %13 : vector<8x256xf32>
      %cst_13 = arith.constant dense<0.000000e+00> : vector<256xf32>
      %17 = vector.multi_reduction <add>, %16, %cst_13 [0] : vector<8x256xf32> to vector<256xf32>
      %18 = vector.shape_cast %17 : vector<256xf32> to vector<1x256xf32>
      %c0_14 = arith.constant 0 : index
      %c0_15 = arith.constant 0 : index
      %19 = vector.load %arg3[%c0_14, %c0_15] : memref<256x128xf32, #tpu.memory_space<vmem>>, vector<256x128xf32>
      %20 = arith.truncf %15 : vector<1x256xf32> to vector<1x256xbf16>
      %21 = arith.extf %20 : vector<1x256xbf16> to vector<1x256xf32>
      %22 = arith.subf %15, %21 : vector<1x256xf32>
      %cst_16 = arith.constant dense<0.000000e+00> : vector<1x128xf32>
      %23 = tpu.matmul %21, %19, %cst_16 {dimension_numbers = #tpu.dot_dimension_numbers<[1], [0], [0], [1], [0, 0, 1, 1], [], []>} : vector<1x256xf32>, vector<256x128xf32>, vector<1x128xf32> -> vector<1x128xf32>
      %cst_17 = arith.constant dense<0.000000e+00> : vector<1x128xf32>
      %24 = tpu.matmul %22, %19, %cst_17 {dimension_numbers = #tpu.dot_dimension_numbers<[1], [0], [0], [1], [0, 0, 1, 1], [], []>} : vector<1x256xf32>, vector<256x128xf32>, vector<1x128xf32> -> vector<1x128xf32>
      %25 = arith.addf %23, %24 : vector<1x128xf32>
      %c0_18 = arith.constant 0 : index
      %c0_19 = arith.constant 0 : index
      %26 = vector.load %arg3[%c0_18, %c0_19] : memref<256x128xf32, #tpu.memory_space<vmem>>, vector<256x128xf32>
      %27 = arith.truncf %18 : vector<1x256xf32> to vector<1x256xbf16>
      %28 = arith.extf %27 : vector<1x256xbf16> to vector<1x256xf32>
      %29 = arith.subf %18, %28 : vector<1x256xf32>
      %cst_20 = arith.constant dense<0.000000e+00> : vector<1x128xf32>
      %30 = tpu.matmul %28, %26, %cst_20 {dimension_numbers = #tpu.dot_dimension_numbers<[1], [0], [0], [1], [0, 0, 1, 1], [], []>} : vector<1x256xf32>, vector<256x128xf32>, vector<1x128xf32> -> vector<1x128xf32>
      %cst_21 = arith.constant dense<0.000000e+00> : vector<1x128xf32>
      %31 = tpu.matmul %29, %26, %cst_21 {dimension_numbers = #tpu.dot_dimension_numbers<[1], [0], [0], [1], [0, 0, 1, 1], [], []>} : vector<1x256xf32>, vector<256x128xf32>, vector<1x128xf32> -> vector<1x128xf32>
      %32 = arith.addf %30, %31 : vector<1x128xf32>
      %cst_22 = arith.constant 0.020833334 : f32
      %33 = vector.broadcast %cst_22 : f32 to vector<1x128xf32>
      %34 = arith.mulf %25, %33 : vector<1x128xf32>
      %cst_23 = arith.constant 0.020833334 : f32
      %35 = vector.broadcast %cst_23 : f32 to vector<1x128xf32>
      %36 = arith.mulf %32, %35 : vector<1x128xf32>
      %37 = arith.mulf %34, %34 : vector<1x128xf32>
      %38 = arith.subf %36, %37 : vector<1x128xf32>
      %cst_24 = arith.constant 9.99999974E-6 : f32
      %39 = vector.broadcast %cst_24 : f32 to vector<1x128xf32>
      %40 = arith.addf %38, %39 : vector<1x128xf32>
      %41 = math.rsqrt %40 : vector<1x128xf32>
      %c0_25 = arith.constant 0 : index
      %c0_26 = arith.constant 0 : index
      %42 = vector.load %arg5[%c0_25, %c0_26] : memref<1x128xf32, #tpu.memory_space<vmem>>, vector<1x128xf32>
      %43 = arith.mulf %41, %42 : vector<1x128xf32>
      %c0_27 = arith.constant 0 : index
      %c0_28 = arith.constant 0 : index
      %44 = vector.load %arg6[%c0_27, %c0_28] : memref<1x128xf32, #tpu.memory_space<vmem>>, vector<1x128xf32>
      %45 = arith.mulf %34, %43 : vector<1x128xf32>
      %46 = arith.subf %44, %45 : vector<1x128xf32>
      %c0_29 = arith.constant 0 : index
      %c0_30 = arith.constant 0 : index
      %47 = vector.load %arg4[%c0_29, %c0_30] : memref<128x256xf32, #tpu.memory_space<vmem>>, vector<128x256xf32>
      %48 = arith.truncf %43 : vector<1x128xf32> to vector<1x128xbf16>
      %49 = arith.extf %48 : vector<1x128xbf16> to vector<1x128xf32>
      %50 = arith.subf %43, %49 : vector<1x128xf32>
      %cst_31 = arith.constant dense<0.000000e+00> : vector<1x256xf32>
      %51 = tpu.matmul %49, %47, %cst_31 {dimension_numbers = #tpu.dot_dimension_numbers<[1], [0], [0], [1], [0, 0, 1, 1], [], []>} : vector<1x128xf32>, vector<128x256xf32>, vector<1x256xf32> -> vector<1x256xf32>
      %cst_32 = arith.constant dense<0.000000e+00> : vector<1x256xf32>
      %52 = tpu.matmul %50, %47, %cst_32 {dimension_numbers = #tpu.dot_dimension_numbers<[1], [0], [0], [1], [0, 0, 1, 1], [], []>} : vector<1x128xf32>, vector<128x256xf32>, vector<1x256xf32> -> vector<1x256xf32>
      %53 = arith.addf %51, %52 : vector<1x256xf32>
      %c0_33 = arith.constant 0 : index
      %c0_34 = arith.constant 0 : index
      %54 = vector.load %arg4[%c0_33, %c0_34] : memref<128x256xf32, #tpu.memory_space<vmem>>, vector<128x256xf32>
      %55 = arith.truncf %46 : vector<1x128xf32> to vector<1x128xbf16>
      %56 = arith.extf %55 : vector<1x128xbf16> to vector<1x128xf32>
      %57 = arith.subf %46, %56 : vector<1x128xf32>
      %cst_35 = arith.constant dense<0.000000e+00> : vector<1x256xf32>
      %58 = tpu.matmul %56, %54, %cst_35 {dimension_numbers = #tpu.dot_dimension_numbers<[1], [0], [0], [1], [0, 0, 1, 1], [], []>} : vector<1x128xf32>, vector<128x256xf32>, vector<1x256xf32> -> vector<1x256xf32>
      %cst_36 = arith.constant dense<0.000000e+00> : vector<1x256xf32>
      %59 = tpu.matmul %57, %54, %cst_36 {dimension_numbers = #tpu.dot_dimension_numbers<[1], [0], [0], [1], [0, 0, 1, 1], [], []>} : vector<1x128xf32>, vector<128x256xf32>, vector<1x256xf32> -> vector<1x256xf32>
      %60 = arith.addf %58, %59 : vector<1x256xf32>
      %61 = vector.broadcast %53 : vector<1x256xf32> to vector<8x256xf32>
      %62 = arith.mulf %13, %61 : vector<8x256xf32>
      %63 = vector.broadcast %60 : vector<1x256xf32> to vector<8x256xf32>
      %64 = arith.addf %62, %63 : vector<8x256xf32>
      %cst_37 = arith.constant 0.000000e+00 : f32
      %65 = vector.broadcast %cst_37 : f32 to vector<8x256xf32>
      %66 = arith.maximumf %64, %65 : vector<8x256xf32>
      %67 = tpu.iota {dimensions = array<i32: 0>} : vector<8x256xi32>
      %c2_i32 = arith.constant 2 : i32
      %68 = vector.broadcast %c2_i32 : i32 to vector<8x256xi32>
      %69 = arith.cmpi slt, %67, %68 : vector<8x256xi32>
      %cst_38 = arith.constant 0.000000e+00 : f32
      %70 = vector.broadcast %cst_38 : f32 to vector<8x256xf32>
      %71 = arith.select %69, %66, %70 : vector<8x256xi1>, vector<8x256xf32>
      %c0_39 = arith.constant 0 : index
      %c0_40 = arith.constant 0 : index
      %72 = vector.load %arg7[%c0_39, %c0_40] : memref<8x256xf32, #tpu.memory_space<vmem>>, vector<8x256xf32>
      tpu.vector_store %arg7[%c0_39, %c0_40], %71 {strides = array<i32>} : memref<8x256xf32, #tpu.memory_space<vmem>>, vector<8x256xf32>,
    } else {
    }
    return
  }
  func.func @transform_0(%arg0: i32) -> (i32, i32) {
    %c0_i32 = arith.constant 0 : i32
    %c0_i32_0 = arith.constant 0 : i32
    return %c0_i32, %arg0 : i32, i32
  }
  func.func @transform_1(%arg0: i32) -> (i32, i32) {
    %c0_i32 = arith.constant 0 : i32
    %c0_i32_0 = arith.constant 0 : i32
    return %arg0, %c0_i32 : i32, i32
  }
  func.func @transform_2(%arg0: i32) -> (i32, i32) {
    %c0_i32 = arith.constant 0 : i32
    %c0_i32_0 = arith.constant 0 : i32
    %c0_i32_1 = arith.constant 0 : i32
    return %c0_i32, %c0_i32_0 : i32, i32
  }
  func.func @transform_3(%arg0: i32) -> (i32, i32) {
    %c0_i32 = arith.constant 0 : i32
    %c0_i32_0 = arith.constant 0 : i32
    %c0_i32_1 = arith.constant 0 : i32
    return %c0_i32, %c0_i32_0 : i32, i32
  }
  func.func @transform_4(%arg0: i32) -> (i32, i32) {
    %c0_i32 = arith.constant 0 : i32
    %c0_i32_0 = arith.constant 0 : i32
    %c0_i32_1 = arith.constant 0 : i32
    return %c0_i32, %c0_i32_0 : i32, i32
  }
  func.func @transform_5(%arg0: i32) -> (i32, i32) {
    %c0_i32 = arith.constant 0 : i32
    %c0_i32_0 = arith.constant 0 : i32
    %c0_i32_1 = arith.constant 0 : i32
    return %c0_i32, %c0_i32_0 : i32, i32
  }
  func.func @transform_6(%arg0: i32) -> (i32, i32) {
    %c0_i32 = arith.constant 0 : i32
    %c0_i32_0 = arith.constant 0 : i32
    %c0_i32_1 = arith.constant 0 : i32
    return %c0_i32, %c0_i32_0 : i32, i32
  }
}

module attributes {stable_mosaic.version = 11 : i64} {
  func.func @_convt_bias_kernel(%arg0: i32, %arg1: memref<8x256xf32, #tpu.memory_space<vmem>>, %arg2: memref<256x128xbf16, #tpu.memory_space<vmem>>, %arg3: memref<1x128xf32, #tpu.memory_space<vmem>>, %arg4: memref<8x128xf32, #tpu.memory_space<vmem>>) attributes {dimension_semantics = [#tpu.dimension_semantics<arbitrary>], iteration_bounds = array<i64: 1>, scalar_prefetch = 0 : i64, scratch_operands = 0 : i64, tpu.core_type = #tpu.core_type<tc>, window_params = [{transform_indices = @transform_0, window_bounds = array<i64: 8, 256>}, {transform_indices = @transform_1, window_bounds = array<i64: 256, 128>}, {pipeline_mode = #tpu.pipeline_mode<synchronous>, transform_indices = @transform_2, window_bounds = array<i64: 1, 128>}, {pipeline_mode = #tpu.pipeline_mode<synchronous>, transform_indices = @transform_3, window_bounds = array<i64: 8, 128>}]} {
    %c0_i32 = arith.constant 0 : i32
    %0 = arith.cmpi eq, %arg0, %c0_i32 : i32
    %1 = arith.extui %0 : i1 to i32
    %c0_i32_0 = arith.constant 0 : i32
    %2 = arith.cmpi ne, %1, %c0_i32_0 : i32
    scf.if %2 {
      %cst_10 = arith.constant 0.000000e+00 : f32
      %13 = vector.broadcast %cst_10 : f32 to vector<8x128xf32>
      %c0_11 = arith.constant 0 : index
      %c0_12 = arith.constant 0 : index
      %14 = vector.load %arg4[%c0_11, %c0_12] : memref<8x128xf32, #tpu.memory_space<vmem>>, vector<8x128xf32>
      tpu.vector_store %arg4[%c0_11, %c0_12], %13 {strides = array<i32>} : memref<8x128xf32, #tpu.memory_space<vmem>>, vector<8x128xf32>,
    } else {
    }
    %c0 = arith.constant 0 : index
    %c0_1 = arith.constant 0 : index
    %3 = vector.load %arg4[%c0, %c0_1] : memref<8x128xf32, #tpu.memory_space<vmem>>, vector<8x128xf32>
    %c0_2 = arith.constant 0 : index
    %c0_3 = arith.constant 0 : index
    %4 = vector.load %arg1[%c0_2, %c0_3] : memref<8x256xf32, #tpu.memory_space<vmem>>, vector<8x256xf32>
    %5 = arith.truncf %4 : vector<8x256xf32> to vector<8x256xbf16>
    %c0_4 = arith.constant 0 : index
    %c0_5 = arith.constant 0 : index
    %6 = vector.load %arg2[%c0_4, %c0_5] : memref<256x128xbf16, #tpu.memory_space<vmem>>, vector<256x128xbf16>
    %cst = arith.constant dense<0.000000e+00> : vector<8x128xf32>
    %7 = tpu.matmul %5, %6, %cst {dimension_numbers = #tpu.dot_dimension_numbers<[1], [0], [0], [1], [0, 0, 1, 1], [], []>} : vector<8x256xbf16>, vector<256x128xbf16>, vector<8x128xf32> -> vector<8x128xf32>
    %8 = arith.addf %3, %7 : vector<8x128xf32>
    %c0_6 = arith.constant 0 : index
    %c0_7 = arith.constant 0 : index
    %9 = vector.load %arg4[%c0_6, %c0_7] : memref<8x128xf32, #tpu.memory_space<vmem>>, vector<8x128xf32>
    tpu.vector_store %arg4[%c0_6, %c0_7], %8 {strides = array<i32>} : memref<8x128xf32, #tpu.memory_space<vmem>>, vector<8x128xf32>,
    %c0_i32_8 = arith.constant 0 : i32
    %10 = arith.cmpi eq, %arg0, %c0_i32_8 : i32
    %11 = arith.extui %10 : i1 to i32
    %c0_i32_9 = arith.constant 0 : i32
    %12 = arith.cmpi ne, %11, %c0_i32_9 : i32
    scf.if %12 {
      %c0_10 = arith.constant 0 : index
      %c0_11 = arith.constant 0 : index
      %13 = vector.load %arg4[%c0_10, %c0_11] : memref<8x128xf32, #tpu.memory_space<vmem>>, vector<8x128xf32>
      %c0_12 = arith.constant 0 : index
      %c0_13 = arith.constant 0 : index
      %14 = vector.load %arg3[%c0_12, %c0_13] : memref<1x128xf32, #tpu.memory_space<vmem>>, vector<1x128xf32>
      %15 = vector.broadcast %14 : vector<1x128xf32> to vector<8x128xf32>
      %16 = arith.addf %13, %15 : vector<8x128xf32>
      %c0_14 = arith.constant 0 : index
      %c0_15 = arith.constant 0 : index
      %17 = vector.load %arg4[%c0_14, %c0_15] : memref<8x128xf32, #tpu.memory_space<vmem>>, vector<8x128xf32>
      tpu.vector_store %arg4[%c0_14, %c0_15], %16 {strides = array<i32>} : memref<8x128xf32, #tpu.memory_space<vmem>>, vector<8x128xf32>,
    } else {
    }
    return
  }
  func.func @transform_0(%arg0: i32) -> (i32, i32) {
    %c0_i32 = arith.constant 0 : i32
    %c0_i32_0 = arith.constant 0 : i32
    return %c0_i32, %arg0 : i32, i32
  }
  func.func @transform_1(%arg0: i32) -> (i32, i32) {
    %c0_i32 = arith.constant 0 : i32
    %c0_i32_0 = arith.constant 0 : i32
    return %arg0, %c0_i32 : i32, i32
  }
  func.func @transform_2(%arg0: i32) -> (i32, i32) {
    %c0_i32 = arith.constant 0 : i32
    %c0_i32_0 = arith.constant 0 : i32
    %c0_i32_1 = arith.constant 0 : i32
    return %c0_i32, %c0_i32_0 : i32, i32
  }
  func.func @transform_3(%arg0: i32) -> (i32, i32) {
    %c0_i32 = arith.constant 0 : i32
    %c0_i32_0 = arith.constant 0 : i32
    %c0_i32_1 = arith.constant 0 : i32
    return %c0_i32, %c0_i32_0 : i32, i32
  }
}

</mosaic_0001>

<llo_original>
// kernel: fwd.5
$region0: #{fwd.5}
  #allocation0 [shape = 'u32[]', space=smem, size = 0x4, offset = 0x4, fixed_abs, tag = 'smem constant byte address 0x4 - core index']
  #allocation1 [shape = 'u32[72,128]{1,0:T(1,128)}', space=vmem, size = 0x9000, scoped, tag = 'internal scratch']
  %s0 = inlined_call_operand.vmem [shape: f32[8,128], index: 0, kind: input, shape index: {}]
  %s1 = inlined_call_operand.hbm [shape: bf16[128,128], index: 1, kind: input, shape index: {}]
  %s2 = inlined_call_operand.hbm [shape: f32[128,128], index: 2, kind: input, shape index: {}]
  %s3 = inlined_call_operand.hbm [shape: f32[128,128], index: 3, kind: input, shape index: {}]
  %s4 = inlined_call_operand.vmem [shape: f32[1,128], index: 4, kind: input, shape index: {}]
  %s5 = inlined_call_operand.vmem [shape: f32[1,128], index: 5, kind: input, shape index: {}]
  %s6 = inlined_call_operand.vmem [shape: f32[8,128], index: 6, kind: output, shape index: {}]
  %s7 = sld [smem:[#allocation0]]
  $region54: #{fwd.5} parent=0
    _
  %s9 = ssub.s32 1, %s7
  %s10 = scalar_select 0, %s9, %s7
  $region1: #{fwd.5} parent=0
    #allocation2 [shape = 'u8[32768]{0}', space=vmem, size = 0x8000, scoped, tag = 'input window, operand 1, single buffered']
    #allocation3 [shape = 's32[1]{0}', space=sflag, size = 0x4, scoped, tag = 'scoped memory for fwd.5']
    #allocation4 [shape = 'u8[65536]{0}', space=vmem, size = 0x10000, scoped, tag = 'input window, operand 2, single buffered']
    #allocation5 [shape = 's32[1]{0}', space=sflag, size = 0x4, scoped, tag = 'scoped memory for fwd.5']
    #allocation6 [shape = 'u8[65536]{0}', space=vmem, size = 0x10000, scoped, tag = 'input window, operand 3, single buffered']
    %11 = vsyncpa [#allocation3], 0
    %12 = vsyncpa [#allocation5], 0
    // Predicated region
    $region2: #{fwd.5} parent=1 // pred_check
      _
    $region3: #{fwd.5} parent=1 // pred_check_branch
      %14 = sbr.rel (0) target = $region5
    $region4: #{fwd.5} parent=1 // pred_region
      _
    $region5: #{fwd.5} parent=1 // pred_fallthru
      _
    // Predicated region
    $region6: #{fwd.5} parent=1 // pred_check
      _
    $region7: #{fwd.5} parent=1 // pred_check_branch
      %16 = sbr.rel (0) target = $region9
    $region8: #{fwd.5} parent=1 // pred_region
      %18 = vsyncadd [#allocation3], 0
      %s19 = sshll.u32 %s1, 4
      %s20 = int_to_ptr.hbm [resolvable:$true] %s19
      %s21 = sshll.u32 [#allocation2], 4
      %s22 = int_to_ptr.vmem [resolvable:$true] %s21
      %27 = dma.hbm_to_vmem [thread:$0]  %s20, 1024, %s22, [#allocation3], 64, 64, 4
    $region9: #{fwd.5} parent=1 // pred_fallthru
      _
    // Predicated region
    $region10: #{fwd.5} parent=1 // pred_check
      _
    $region11: #{fwd.5} parent=1 // pred_check_branch
      %29 = sbr.rel (0) target = $region13
    $region12: #{fwd.5} parent=1 // pred_region
      %31 = vsyncadd [#allocation5], 0
      %s32 = sshll.u32 %s2, 4
      %s33 = int_to_ptr.hbm [resolvable:$true] %s32
      %s34 = sshll.u32 [#allocation4], 4
      %s35 = int_to_ptr.vmem [resolvable:$true] %s34
      %40 = dma.hbm_to_vmem [thread:$0]  %s33, 2048, %s35, [#allocation5], 128, 128, 8
    $region13: #{fwd.5} parent=1 // pred_fallthru
      _
    // Predicated region
    $region14: #{fwd.5} parent=1 // pred_check
      _
    $region15: #{fwd.5} parent=1 // pred_check_branch
      %42 = sbr.rel (0) target = $region17
    $region16: #{fwd.5} parent=1 // pred_region
      %44 = vsyncadd [#allocation5], 0
      %s45 = sshll.u32 %s3, 4
      %s46 = int_to_ptr.hbm [resolvable:$true] %s45
      %s47 = sshll.u32 [#allocation6], 4
      %s48 = int_to_ptr.vmem [resolvable:$true] %s47
      %53 = dma.hbm_to_vmem [thread:$0]  %s46, 2048, %s48, [#allocation5], 128, 128, 8
    $region17: #{fwd.5} parent=1 // pred_fallthru
      _
    // Predicated region
    $region18: #{fwd.5} parent=1 // pred_check
      _
    $region19: #{fwd.5} parent=1 // pred_check_branch
      %55 = sbr.rel (0) target = $region21
    $region20: #{fwd.5} parent=1 // pred_region
      _
    $region21: #{fwd.5} parent=1 // pred_fallthru
      _
    // Predicated region
    $region22: #{fwd.5} parent=1 // pred_check
      _
    $region23: #{fwd.5} parent=1 // pred_check_branch
      %57 = sbr.rel (0) target = $region25
    $region24: #{fwd.5} parent=1 // pred_region
      _
    $region25: #{fwd.5} parent=1 // pred_fallthru
      _
    // Predicated region
    $region26: #{fwd.5} parent=1 // pred_check
      _
    $region27: #{fwd.5} parent=1 // pred_check_branch
      %59 = sbr.rel (0) target = $region29
    $region28: #{fwd.5} parent=1 // pred_region
      %61 = dma.done [#allocation3], 1024
    $region29: #{fwd.5} parent=1 // pred_fallthru
      _
    // Predicated region
    $region30: #{fwd.5} parent=1 // pred_check
      _
    $region31: #{fwd.5} parent=1 // pred_check_branch
      %63 = sbr.rel (0) target = $region33
    $region32: #{fwd.5} parent=1 // pred_region
      %65 = dma.done [#allocation5], 2048
    $region33: #{fwd.5} parent=1 // pred_fallthru
      _
    // Predicated region
    $region34: #{fwd.5} parent=1 // pred_check
      _
    $region35: #{fwd.5} parent=1 // pred_check_branch
      %67 = sbr.rel (0) target = $region37
    $region36: #{fwd.5} parent=1 // pred_region
      %69 = dma.done [#allocation5], 2048
    $region37: #{fwd.5} parent=1 // pred_fallthru
      _
    %p70 = scmp.eq.s32.totalorder 0, 0
    // Predicated region
    $region38: #{fwd.5} parent=1 // pred_check
      %p71 = pneg %p70
    $region39: #{fwd.5} parent=1 // pred_check_branch
      %73 = sbr.rel (%p71) target = $region41
    $region40: #{fwd.5} parent=1 // pred_region
      %74 = vst [vmem:[%s6] sm:$0xff] 0.0
    $region41: #{fwd.5} parent=1 // pred_fallthru
      _
    %v75 = vld [vmem:[%s6] sm:$0xff]
    %v76 = vld [vmem:[%s0] sm:$0xff]
    %v77 = vpack.c.bf16 %v76, %v76
    %v78 = vld [vmem:[#allocation2] sm:$0xf]
    %v79 = vld [vmem:[#allocation2 + $0x4] sm:$0xf]
    %v80 = vld [vmem:[#allocation2 + $0x8] sm:$0xf]
    %v81 = vld [vmem:[#allocation2 + $0xc] sm:$0xf]
    %v82 = vld [vmem:[#allocation2 + $0x10] sm:$0xf]
    %v83 = vld [vmem:[#allocation2 + $0x14] sm:$0xf]
    %v84 = vld [vmem:[#allocation2 + $0x18] sm:$0xf]
    %v85 = vld [vmem:[#allocation2 + $0x1c] sm:$0xf]
    %v86 = vld [vmem:[#allocation2 + $0x20] sm:$0xf]
    %v87 = vld [vmem:[#allocation2 + $0x24] sm:$0xf]
    %v88 = vld [vmem:[#allocation2 + $0x28] sm:$0xf]
    %v89 = vld [vmem:[#allocation2 + $0x2c] sm:$0xf]
    %v90 = vld [vmem:[#allocation2 + $0x30] sm:$0xf]
    %v91 = vld [vmem:[#allocation2 + $0x34] sm:$0xf]
    %v92 = vld [vmem:[#allocation2 + $0x38] sm:$0xf]
    %v93 = vld [vmem:[#allocation2 + $0x3c] sm:$0xf]
    %v110 = vunpack.c.l.b16 %v78
    %v111 = vunpack.c.l.b16 %v79
    %v112 = vunpack.c.l.b16 %v80
    %v113 = vunpack.c.l.b16 %v81
    %v114 = vunpack.c.l.b16 %v82
    %v115 = vunpack.c.l.b16 %v83
    %v116 = vunpack.c.l.b16 %v84
    %v117 = vunpack.c.l.b16 %v85
    %v118 = vunpack.c.l.b16 %v86
    %v119 = vunpack.c.l.b16 %v87
    %v120 = vunpack.c.l.b16 %v88
    %v121 = vunpack.c.l.b16 %v89
    %v122 = vunpack.c.l.b16 %v90
    %v123 = vunpack.c.l.b16 %v91
    %v124 = vunpack.c.l.b16 %v92
    %v125 = vunpack.c.l.b16 %v93
    %v126 = vpack.c.b16 %v111, %v110
    %v127 = vpack.c.b16 %v113, %v112
    %v128 = vpack.c.b16 %v115, %v114
    %v129 = vpack.c.b16 %v117, %v116
    %v130 = vpack.c.b16 %v119, %v118
    %v131 = vpack.c.b16 %v121, %v120
    %v132 = vpack.c.b16 %v123, %v122
    %v133 = vpack.c.b16 %v125, %v124
    %142 = vmatpush.bf16.msra.mxu0 %v133
    %143 = vmatpush.bf16.msra.mxu0 %v132
    %144 = vmatpush.bf16.msra.mxu0 %v131
    %145 = vmatpush.bf16.msra.mxu0 %v130
    %146 = vmatpush.bf16.msra.mxu0 %v129
    %147 = vmatpush.bf16.msra.mxu0 %v128
    %148 = vmatpush.bf16.msra.mxu0 %v127
    %149 = vmatpush.bf16.msra.mxu0 %v126
    %150 = vmatmul.bf16.gmra.mxu0 %v77
    %v151 = vpop.f32.mrf.mxu0
    %v152 = vadd.f32 0.0, %v151
    %v153 = vpop.f32.mrf.mxu0
    %154 = vdwg.mxu0
    %v155 = vadd.f32 %v75, %v152
    %156 = vst [vmem:[%s6] sm:$0xff] %v155
    // Predicated region
    $region42: #{fwd.5} parent=1 // pred_check
      %p157 = pneg %p70
    $region43: #{fwd.5} parent=1 // pred_check_branch
      %159 = sbr.rel (%p157) target = $region45
    $region44: #{fwd.5} parent=1 // pred_region
      %v160 = vld [vmem:[%s6] sm:$0xff]
      %v161 = vrot.slane %v160, 4
      %v162 = vadd.f32 %v160, %v161
      %v163 = vrot.slane %v162, 2
      %v164 = vadd.f32 %v162, %v163
      %v165 = vrot.slane %v164, 1
      %v166 = vadd.f32 %v164, %v165
      %v167 = vmul.f32 %v160, %v160
      %v168 = vrot.slane %v167, 4
      %v169 = vadd.f32 %v167, %v168
      %v170 = vrot.slane %v169, 2
      %v171 = vadd.f32 %v169, %v170
      %v172 = vrot.slane %v171, 1
      %v173 = vadd.f32 %v171, %v172
      %v174 = vld [vmem:[#allocation4] sm:$0xff]
      %v175 = vld [vmem:[#allocation4 + $0x8] sm:$0xff]
      %v176 = vld [vmem:[#allocation4 + $0x10] sm:$0xff]
      %v177 = vld [vmem:[#allocation4 + $0x18] sm:$0xff]
      %v178 = vld [vmem:[#allocation4 + $0x20] sm:$0xff]
      %v179 = vld [vmem:[#allocation4 + $0x28] sm:$0xff]
      %v180 = vld [vmem:[#allocation4 + $0x30] sm:$0xff]
      %v181 = vld [vmem:[#allocation4 + $0x38] sm:$0xff]
      %v182 = vld [vmem:[#allocation4 + $0x40] sm:$0xff]
      %v183 = vld [vmem:[#allocation4 + $0x48] sm:$0xff]
      %v184 = vld [vmem:[#allocation4 + $0x50] sm:$0xff]
      %v185 = vld [vmem:[#allocation4 + $0x58] sm:$0xff]
      %v186 = vld [vmem:[#allocation4 + $0x60] sm:$0xff]
      %v187 = vld [vmem:[#allocation4 + $0x68] sm:$0xff]
      %v188 = vld [vmem:[#allocation4 + $0x70] sm:$0xff]
      %v189 = vld [vmem:[#allocation4 + $0x78] sm:$0xff]
      %v190 = vpack.c.bf16 %v166, %v166
      %v191 = vunpack.c.l.bf16 %v190
      %v192 = vsub.f32 %v166, %v191
      %193 = vmatpush.msra.mxu0 %v189
      %194 = vmatpush.msra.mxu0 %v188
      %195 = vmatpush.msra.mxu0 %v187
      %196 = vmatpush.msra.mxu0 %v186
      %197 = vmatpush.msra.mxu0 %v185
      %198 = vmatpush.msra.mxu0 %v184
      %199 = vmatpush.msra.mxu0 %v183
      %200 = vmatpush.msra.mxu0 %v182
      %201 = vmatpush.msra.mxu0 %v181
      %202 = vmatpush.msra.mxu0 %v180
      %203 = vmatpush.msra.mxu0 %v179
      %204 = vmatpush.msra.mxu0 %v178
      %205 = vmatpush.msra.mxu0 %v177
      %206 = vmatpush.msra.mxu0 %v176
      %207 = vmatpush.msra.mxu0 %v175
      %208 = vmatpush.msra.mxu0 %v174
      %209 = vmatmul.f32.gmra.mxu0 %v192
      %v210 = vpop.f32.mrf.mxu0
      %v211 = vadd.f32 0.0, %v210
      %212 = vdwg.mxu0
      %213 = vmatpush.msra.mxu0 %v189
      %214 = vmatpush.msra.mxu0 %v188
      %215 = vmatpush.msra.mxu0 %v187
      %216 = vmatpush.msra.mxu0 %v186
      %217 = vmatpush.msra.mxu0 %v185
      %218 = vmatpush.msra.mxu0 %v184
      %219 = vmatpush.msra.mxu0 %v183
      %220 = vmatpush.msra.mxu0 %v182
      %221 = vmatpush.msra.mxu0 %v181
      %222 = vmatpush.msra.mxu0 %v180
      %223 = vmatpush.msra.mxu0 %v179
      %224 = vmatpush.msra.mxu0 %v178
      %225 = vmatpush.msra.mxu0 %v177
      %226 = vmatpush.msra.mxu0 %v176
      %227 = vmatpush.msra.mxu0 %v175
      %228 = vmatpush.msra.mxu0 %v174
      %229 = vmatmul.f32.gmra.mxu0 %v191
      %v230 = vpop.f32.mrf.mxu0
      %v231 = vadd.f32 %v211, %v230
      %232 = vdwg.mxu0
      %v233 = vpack.c.bf16 %v173, %v173
      %v234 = vunpack.c.l.bf16 %v233
      %v235 = vsub.f32 %v173, %v234
      %236 = vmatpush.msra.mxu0 %v189
      %237 = vmatpush.msra.mxu0 %v188
      %238 = vmatpush.msra.mxu0 %v187
      %239 = vmatpush.msra.mxu0 %v186
      %240 = vmatpush.msra.mxu0 %v185
      %241 = vmatpush.msra.mxu0 %v184
      %242 = vmatpush.msra.mxu0 %v183
      %243 = vmatpush.msra.mxu0 %v182
      %244 = vmatpush.msra.mxu0 %v181
      %245 = vmatpush.msra.mxu0 %v180
      %246 = vmatpush.msra.mxu0 %v179
      %247 = vmatpush.msra.mxu0 %v178
      %248 = vmatpush.msra.mxu0 %v177
      %249 = vmatpush.msra.mxu0 %v176
      %250 = vmatpush.msra.mxu0 %v175
      %251 = vmatpush.msra.mxu0 %v174
      %252 = vmatmul.f32.gmra.mxu0 %v235
      %v253 = vpop.f32.mrf.mxu0
      %v254 = vadd.f32 0.0, %v253
      %255 = vdwg.mxu0
      %256 = vmatpush.msra.mxu0 %v189
      %257 = vmatpush.msra.mxu0 %v188
      %258 = vmatpush.msra.mxu0 %v187
      %259 = vmatpush.msra.mxu0 %v186
      %260 = vmatpush.msra.mxu0 %v185
      %261 = vmatpush.msra.mxu0 %v184
      %262 = vmatpush.msra.mxu0 %v183
      %263 = vmatpush.msra.mxu0 %v182
      %264 = vmatpush.msra.mxu0 %v181
      %265 = vmatpush.msra.mxu0 %v180
      %266 = vmatpush.msra.mxu0 %v179
      %267 = vmatpush.msra.mxu0 %v178
      %268 = vmatpush.msra.mxu0 %v177
      %269 = vmatpush.msra.mxu0 %v176
      %270 = vmatpush.msra.mxu0 %v175
      %271 = vmatpush.msra.mxu0 %v174
      %272 = vmatmul.f32.gmra.mxu0 %v234
      %v273 = vpop.f32.mrf.mxu0
      %v274 = vadd.f32 %v254, %v273
      %275 = vdwg.mxu0
      %v276 = vmul.f32 %v231, 0.16666667
      %v277 = vmul.f32 %v274, 0.16666667
      %v278 = vmul.f32 %v276, %v276
      %v279 = vsub.f32 %v277, %v278
      %v280 = vadd.f32 %v279, 1e-05
      %v281 = vrsqrt.pop %v280
      %v282 = vmul.f32 %v281, %v280
      %v283 = vmul.f32 %v282, %v281
      %v284 = vmul.f32 0.5, %v283
      %v285 = vsub.f32 1.5, %v284
      %v286 = vmul.f32 %v281, %v285
      %vm287 = vweird.f32 %v280
      %vm288 = vweird.f32 %v281
      %vm289 = vmor %vm287, %vm288
      %v290 = vsel %vm289, %v281, %v286
      %v291 = vld [vmem:[%s4] sm:$0x1]
      %v292 = vmul.f32 %v290, %v291
      %v293 = vld [vmem:[%s5] sm:$0x1]
      %v294 = vmul.f32 %v276, %v292
      %v295 = vsub.f32 %v293, %v294
      %v296 = vld [vmem:[#allocation6] sm:$0xff]
      %v297 = vld [vmem:[#allocation6 + $0x8] sm:$0xff]
      %v298 = vld [vmem:[#allocation6 + $0x10] sm:$0xff]
      %v299 = vld [vmem:[#allocation6 + $0x18] sm:$0xff]
      %v300 = vld [vmem:[#allocation6 + $0x20] sm:$0xff]
      %v301 = vld [vmem:[#allocation6 + $0x28] sm:$0xff]
      %v302 = vld [vmem:[#allocation6 + $0x30] sm:$0xff]
      %v303 = vld [vmem:[#allocation6 + $0x38] sm:$0xff]
      %v304 = vld [vmem:[#allocation6 + $0x40] sm:$0xff]
      %v305 = vld [vmem:[#allocation6 + $0x48] sm:$0xff]
      %v306 = vld [vmem:[#allocation6 + $0x50] sm:$0xff]
      %v307 = vld [vmem:[#allocation6 + $0x58] sm:$0xff]
      %v308 = vld [vmem:[#allocation6 + $0x60] sm:$0xff]
      %v309 = vld [vmem:[#allocation6 + $0x68] sm:$0xff]
      %v310 = vld [vmem:[#allocation6 + $0x70] sm:$0xff]
      %v311 = vld [vmem:[#allocation6 + $0x78] sm:$0xff]
      %v312 = vpack.c.bf16 %v292, %v292
      %v313 = vunpack.c.l.bf16 %v312
      %v314 = vsub.f32 %v292, %v313
      %315 = vmatpush.msra.mxu0 %v311
      %316 = vmatpush.msra.mxu0 %v310
      %317 = vmatpush.msra.mxu0 %v309
      %318 = vmatpush.msra.mxu0 %v308
      %319 = vmatpush.msra.mxu0 %v307
      %320 = vmatpush.msra.mxu0 %v306
      %321 = vmatpush.msra.mxu0 %v305
      %322 = vmatpush.msra.mxu0 %v304
      %323 = vmatpush.msra.mxu0 %v303
      %324 = vmatpush.msra.mxu0 %v302
      %325 = vmatpush.msra.mxu0 %v301
      %326 = vmatpush.msra.mxu0 %v300
      %327 = vmatpush.msra.mxu0 %v299
      %328 = vmatpush.msra.mxu0 %v298
      %329 = vmatpush.msra.mxu0 %v297
      %330 = vmatpush.msra.mxu0 %v296
      %331 = vmatmul.f32.gmra.mxu0 %v314
      %v332 = vpop.f32.mrf.mxu0
      %v333 = vadd.f32 0.0, %v332
      %334 = vdwg.mxu0
      %335 = vmatpush.msra.mxu0 %v311
      %336 = vmatpush.msra.mxu0 %v310
      %337 = vmatpush.msra.mxu0 %v309
      %338 = vmatpush.msra.mxu0 %v308
      %339 = vmatpush.msra.mxu0 %v307
      %340 = vmatpush.msra.mxu0 %v306
      %341 = vmatpush.msra.mxu0 %v305
      %342 = vmatpush.msra.mxu0 %v304
      %343 = vmatpush.msra.mxu0 %v303
      %344 = vmatpush.msra.mxu0 %v302
      %345 = vmatpush.msra.mxu0 %v301
      %346 = vmatpush.msra.mxu0 %v300
      %347 = vmatpush.msra.mxu0 %v299
      %348 = vmatpush.msra.mxu0 %v298
      %349 = vmatpush.msra.mxu0 %v297
      %350 = vmatpush.msra.mxu0 %v296
      %351 = vmatmul.f32.gmra.mxu0 %v313
      %v352 = vpop.f32.mrf.mxu0
      %v353 = vadd.f32 %v333, %v352
      %354 = vdwg.mxu0
      %v355 = vpack.c.bf16 %v295, %v295
      %v356 = vunpack.c.l.bf16 %v355
      %v357 = vsub.f32 %v295, %v356
      %358 = vmatpush.msra.mxu0 %v311
      %359 = vmatpush.msra.mxu0 %v310
      %360 = vmatpush.msra.mxu0 %v309
      %361 = vmatpush.msra.mxu0 %v308
      %362 = vmatpush.msra.mxu0 %v307
      %363 = vmatpush.msra.mxu0 %v306
      %364 = vmatpush.msra.mxu0 %v305
      %365 = vmatpush.msra.mxu0 %v304
      %366 = vmatpush.msra.mxu0 %v303
      %367 = vmatpush.msra.mxu0 %v302
      %368 = vmatpush.msra.mxu0 %v301
      %369 = vmatpush.msra.mxu0 %v300
      %370 = vmatpush.msra.mxu0 %v299
      %371 = vmatpush.msra.mxu0 %v298
      %372 = vmatpush.msra.mxu0 %v297
      %373 = vmatpush.msra.mxu0 %v296
      %374 = vmatmul.f32.gmra.mxu0 %v357
      %v375 = vpop.f32.mrf.mxu0
      %v376 = vadd.f32 0.0, %v375
      %377 = vdwg.mxu0
      %378 = vmatpush.msra.mxu0 %v311
      %379 = vmatpush.msra.mxu0 %v310
      %380 = vmatpush.msra.mxu0 %v309
      %381 = vmatpush.msra.mxu0 %v308
      %382 = vmatpush.msra.mxu0 %v307
      %383 = vmatpush.msra.mxu0 %v306
      %384 = vmatpush.msra.mxu0 %v305
      %385 = vmatpush.msra.mxu0 %v304
      %386 = vmatpush.msra.mxu0 %v303
      %387 = vmatpush.msra.mxu0 %v302
      %388 = vmatpush.msra.mxu0 %v301
      %389 = vmatpush.msra.mxu0 %v300
      %390 = vmatpush.msra.mxu0 %v299
      %391 = vmatpush.msra.mxu0 %v298
      %392 = vmatpush.msra.mxu0 %v297
      %393 = vmatpush.msra.mxu0 %v296
      %394 = vmatmul.f32.gmra.mxu0 %v356
      %v395 = vpop.f32.mrf.mxu0
      %v396 = vadd.f32 %v376, %v395
      %397 = vdwg.mxu0
      %v398 = vperm.slane %v353, 0
      %v399 = vmul.f32 %v160, %v398
      %v400 = vperm.slane %v396, 0
      %v401 = vadd.f32 %v399, %v400
      %v402 = vlaneseq
      %v403 = vshrl.u32 %v402, 7
      %vm404 = vcmp.lt.s32.totalorder %v403, 2
      %v405 = vsel %vm404, %v401, 0.0
      %406 = vst [vmem:[%s6] sm:$0xff] %v405
    $region45: #{fwd.5} parent=1 // pred_fallthru
      _
    // Predicated region
    $region46: #{fwd.5} parent=1 // pred_check
      _
    $region47: #{fwd.5} parent=1 // pred_check_branch
      %408 = sbr.rel (0) target = $region49
    $region48: #{fwd.5} parent=1 // pred_region
      _
    $region49: #{fwd.5} parent=1 // pred_fallthru
      _
    // Predicated region
    $region50: #{fwd.5} parent=1 // pred_check
      _
    $region51: #{fwd.5} parent=1 // pred_check_branch
      %410 = sbr.rel (0) target = $region53
    $region52: #{fwd.5} parent=1 // pred_region
      _
    $region53: #{fwd.5} parent=1 // pred_fallthru
      _
    %411 = vsyncpa [#allocation3], 1
    %412 = vsyncpa [#allocation5], 1

// kernel: fwd.6
$region0: #{fwd.6}
  #allocation0 [shape = 'u32[]', space=smem, size = 0x4, offset = 0x4, fixed_abs, tag = 'smem constant byte address 0x4 - core index']
  #allocation1 [shape = 'u32[72,128]{1,0:T(1,128)}', space=vmem, size = 0x9000, scoped, tag = 'internal scratch']
  %s0 = inlined_call_operand.vmem [shape: f32[8,128], index: 0, kind: input, shape index: {}]
  %s1 = inlined_call_operand.hbm [shape: bf16[128,256], index: 1, kind: input, shape index: {}]
  %s2 = inlined_call_operand.hbm [shape: f32[256,128], index: 2, kind: input, shape index: {}]
  %s3 = inlined_call_operand.hbm [shape: f32[128,256], index: 3, kind: input, shape index: {}]
  %s4 = inlined_call_operand.vmem [shape: f32[1,128], index: 4, kind: input, shape index: {}]
  %s5 = inlined_call_operand.vmem [shape: f32[1,128], index: 5, kind: input, shape index: {}]
  %s6 = inlined_call_operand.vmem [shape: f32[8,256], index: 6, kind: output, shape index: {}]
  %s7 = sld [smem:[#allocation0]]
  $region54: #{fwd.6} parent=0
    _
  %s9 = ssub.s32 1, %s7
  %s10 = scalar_select 0, %s9, %s7
  $region1: #{fwd.6} parent=0
    #allocation2 [shape = 'u8[65536]{0}', space=vmem, size = 0x10000, scoped, tag = 'input window, operand 1, single buffered']
    #allocation3 [shape = 's32[1]{0}', space=sflag, size = 0x4, scoped, tag = 'scoped memory for fwd.6']
    #allocation4 [shape = 'u8[131072]{0}', space=vmem, size = 0x20000, scoped, tag = 'input window, operand 2, single buffered']
    #allocation5 [shape = 's32[1]{0}', space=sflag, size = 0x4, scoped, tag = 'scoped memory for fwd.6']
    #allocation6 [shape = 'u8[131072]{0}', space=vmem, size = 0x20000, scoped, tag = 'input window, operand 3, single buffered']
    %11 = vsyncpa [#allocation3], 0
    %12 = vsyncpa [#allocation5], 0
    // Predicated region
    $region2: #{fwd.6} parent=1 // pred_check
      _
    $region3: #{fwd.6} parent=1 // pred_check_branch
      %14 = sbr.rel (0) target = $region5
    $region4: #{fwd.6} parent=1 // pred_region
      _
    $region5: #{fwd.6} parent=1 // pred_fallthru
      _
    // Predicated region
    $region6: #{fwd.6} parent=1 // pred_check
      _
    $region7: #{fwd.6} parent=1 // pred_check_branch
      %16 = sbr.rel (0) target = $region9
    $region8: #{fwd.6} parent=1 // pred_region
      %18 = vsyncadd [#allocation3], 0
      %s19 = sshll.u32 %s1, 4
      %s20 = int_to_ptr.hbm [resolvable:$true] %s19
      %s21 = sshll.u32 [#allocation2], 4
      %s22 = int_to_ptr.vmem [resolvable:$true] %s21
      %27 = dma.hbm_to_vmem [thread:$0]  %s20, 2048, %s22, [#allocation3], 128, 128, 8
    $region9: #{fwd.6} parent=1 // pred_fallthru
      _
    // Predicated region
    $region10: #{fwd.6} parent=1 // pred_check
      _
    $region11: #{fwd.6} parent=1 // pred_check_branch
      %29 = sbr.rel (0) target = $region13
    $region12: #{fwd.6} parent=1 // pred_region
      %31 = vsyncadd [#allocation5], 0
      %s32 = sshll.u32 %s2, 4
      %s33 = int_to_ptr.hbm [resolvable:$true] %s32
      %s34 = sshll.u32 [#allocation4], 4
      %s35 = int_to_ptr.vmem [resolvable:$true] %s34
      %40 = dma.hbm_to_vmem [thread:$0]  %s33, 4096, %s35, [#allocation5], 128, 128, 8
    $region13: #{fwd.6} parent=1 // pred_fallthru
      _
    // Predicated region
    $region14: #{fwd.6} parent=1 // pred_check
      _
    $region15: #{fwd.6} parent=1 // pred_check_branch
      %42 = sbr.rel (0) target = $region17
    $region16: #{fwd.6} parent=1 // pred_region
      %44 = vsyncadd [#allocation5], 0
      %s45 = sshll.u32 %s3, 4
      %s46 = int_to_ptr.hbm [resolvable:$true] %s45
      %s47 = sshll.u32 [#allocation6], 4
      %s48 = int_to_ptr.vmem [resolvable:$true] %s47
      %53 = dma.hbm_to_vmem [thread:$0]  %s46, 4096, %s48, [#allocation5], 256, 256, 16
    $region17: #{fwd.6} parent=1 // pred_fallthru
      _
    // Predicated region
    $region18: #{fwd.6} parent=1 // pred_check
      _
    $region19: #{fwd.6} parent=1 // pred_check_branch
      %55 = sbr.rel (0) target = $region21
    $region20: #{fwd.6} parent=1 // pred_region
      _
    $region21: #{fwd.6} parent=1 // pred_fallthru
      _
    // Predicated region
    $region22: #{fwd.6} parent=1 // pred_check
      _
    $region23: #{fwd.6} parent=1 // pred_check_branch
      %57 = sbr.rel (0) target = $region25
    $region24: #{fwd.6} parent=1 // pred_region
      _
    $region25: #{fwd.6} parent=1 // pred_fallthru
      _
    // Predicated region
    $region26: #{fwd.6} parent=1 // pred_check
      _
    $region27: #{fwd.6} parent=1 // pred_check_branch
      %59 = sbr.rel (0) target = $region29
    $region28: #{fwd.6} parent=1 // pred_region
      %61 = dma.done [#allocation3], 2048
    $region29: #{fwd.6} parent=1 // pred_fallthru
      _
    // Predicated region
    $region30: #{fwd.6} parent=1 // pred_check
      _
    $region31: #{fwd.6} parent=1 // pred_check_branch
      %63 = sbr.rel (0) target = $region33
    $region32: #{fwd.6} parent=1 // pred_region
      %65 = dma.done [#allocation5], 4096
    $region33: #{fwd.6} parent=1 // pred_fallthru
      _
    // Predicated region
    $region34: #{fwd.6} parent=1 // pred_check
      _
    $region35: #{fwd.6} parent=1 // pred_check_branch
      %67 = sbr.rel (0) target = $region37
    $region36: #{fwd.6} parent=1 // pred_region
      %69 = dma.done [#allocation5], 4096
    $region37: #{fwd.6} parent=1 // pred_fallthru
      _
    %p70 = scmp.eq.s32.totalorder 0, 0
    // Predicated region
    $region38: #{fwd.6} parent=1 // pred_check
      %p71 = pneg %p70
    $region39: #{fwd.6} parent=1 // pred_check_branch
      %73 = sbr.rel (%p71) target = $region41
    $region40: #{fwd.6} parent=1 // pred_region
      %74 = vst [vmem:[%s6] sm:$0xff] 0.0
      %75 = vst [vmem:[%s6 + $0x8] sm:$0xff] 0.0
    $region41: #{fwd.6} parent=1 // pred_fallthru
      _
    %v76 = vld [vmem:[%s6] sm:$0xff]
    %v77 = vld [vmem:[%s6 + $0x8] sm:$0xff]
    %v78 = vld [vmem:[%s0] sm:$0xff]
    %v79 = vpack.c.bf16 %v78, %v78
    %v80 = vld [vmem:[#allocation2] sm:$0xff]
    %v81 = vld [vmem:[#allocation2 + $0x8] sm:$0xff]
    %v82 = vld [vmem:[#allocation2 + $0x10] sm:$0xff]
    %v83 = vld [vmem:[#allocation2 + $0x18] sm:$0xff]
    %v84 = vld [vmem:[#allocation2 + $0x20] sm:$0xff]
    %v85 = vld [vmem:[#allocation2 + $0x28] sm:$0xff]
    %v86 = vld [vmem:[#allocation2 + $0x30] sm:$0xff]
    %v87 = vld [vmem:[#allocation2 + $0x38] sm:$0xff]
    %v88 = vld [vmem:[#allocation2 + $0x40] sm:$0xff]
    %v89 = vld [vmem:[#allocation2 + $0x48] sm:$0xff]
    %v90 = vld [vmem:[#allocation2 + $0x50] sm:$0xff]
    %v91 = vld [vmem:[#allocation2 + $0x58] sm:$0xff]
    %v92 = vld [vmem:[#allocation2 + $0x60] sm:$0xff]
    %v93 = vld [vmem:[#allocation2 + $0x68] sm:$0xff]
    %v94 = vld [vmem:[#allocation2 + $0x70] sm:$0xff]
    %v95 = vld [vmem:[#allocation2 + $0x78] sm:$0xff]
    %v112 = vunpack.c.l.b16 %v80
    %v113 = vunpack.c.h.b16 %v80
    %v114 = vunpack.c.l.b16 %v81
    %v115 = vunpack.c.h.b16 %v81
    %v116 = vunpack.c.l.b16 %v82
    %v117 = vunpack.c.h.b16 %v82
    %v118 = vunpack.c.l.b16 %v83
    %v119 = vunpack.c.h.b16 %v83
    %v120 = vunpack.c.l.b16 %v84
    %v121 = vunpack.c.h.b16 %v84
    %v122 = vunpack.c.l.b16 %v85
    %v123 = vunpack.c.h.b16 %v85
    %v124 = vunpack.c.l.b16 %v86
    %v125 = vunpack.c.h.b16 %v86
    %v126 = vunpack.c.l.b16 %v87
    %v127 = vunpack.c.h.b16 %v87
    %v128 = vunpack.c.l.b16 %v88
    %v129 = vunpack.c.h.b16 %v88
    %v130 = vunpack.c.l.b16 %v89
    %v131 = vunpack.c.h.b16 %v89
    %v132 = vunpack.c.l.b16 %v90
    %v133 = vunpack.c.h.b16 %v90
    %v134 = vunpack.c.l.b16 %v91
    %v135 = vunpack.c.h.b16 %v91
    %v136 = vunpack.c.l.b16 %v92
    %v137 = vunpack.c.h.b16 %v92
    %v138 = vunpack.c.l.b16 %v93
    %v139 = vunpack.c.h.b16 %v93
    %v140 = vunpack.c.l.b16 %v94
    %v141 = vunpack.c.h.b16 %v94
    %v142 = vunpack.c.l.b16 %v95
    %v143 = vunpack.c.h.b16 %v95
    %v144 = vpack.c.b16 %v114, %v112
    %v145 = vpack.c.b16 %v115, %v113
    %v146 = vpack.c.b16 %v118, %v116
    %v147 = vpack.c.b16 %v119, %v117
    %v148 = vpack.c.b16 %v122, %v120
    %v149 = vpack.c.b16 %v123, %v121
    %v150 = vpack.c.b16 %v126, %v124
    %v151 = vpack.c.b16 %v127, %v125
    %v152 = vpack.c.b16 %v130, %v128
    %v153 = vpack.c.b16 %v131, %v129
    %v154 = vpack.c.b16 %v134, %v132
    %v155 = vpack.c.b16 %v135, %v133
    %v156 = vpack.c.b16 %v138, %v136
    %v157 = vpack.c.b16 %v139, %v137
    %v158 = vpack.c.b16 %v142, %v140
    %v159 = vpack.c.b16 %v143, %v141
    %176 = vmatpush.bf16.msra.mxu0 %v158
    %177 = vmatpush.bf16.msra.mxu0 %v156
    %178 = vmatpush.bf16.msra.mxu0 %v154
    %179 = vmatpush.bf16.msra.mxu0 %v152
    %180 = vmatpush.bf16.msra.mxu0 %v150
    %181 = vmatpush.bf16.msra.mxu0 %v148
    %182 = vmatpush.bf16.msra.mxu0 %v146
    %183 = vmatpush.bf16.msra.mxu0 %v144
    %184 = vmatmul.bf16.gmra.mxu0 %v79
    %v185 = vpop.f32.mrf.mxu0
    %v186 = vadd.f32 0.0, %v185
    %v187 = vpop.f32.mrf.mxu0
    %188 = vdwg.mxu0
    %189 = vmatpush.bf16.msra.mxu0 %v159
    %190 = vmatpush.bf16.msra.mxu0 %v157
    %191 = vmatpush.bf16.msra.mxu0 %v155
    %192 = vmatpush.bf16.msra.mxu0 %v153
    %193 = vmatpush.bf16.msra.mxu0 %v151
    %194 = vmatpush.bf16.msra.mxu0 %v149
    %195 = vmatpush.bf16.msra.mxu0 %v147
    %196 = vmatpush.bf16.msra.mxu0 %v145
    %197 = vmatmul.bf16.gmra.mxu0 %v79
    %v198 = vpop.f32.mrf.mxu0
    %v199 = vadd.f32 0.0, %v198
    %v200 = vpop.f32.mrf.mxu0
    %201 = vdwg.mxu0
    %v202 = vadd.f32 %v76, %v186
    %v203 = vadd.f32 %v77, %v199
    %204 = vst [vmem:[%s6] sm:$0xff] %v202
    %205 = vst [vmem:[%s6 + $0x8] sm:$0xff] %v203
    // Predicated region
    $region42: #{fwd.6} parent=1 // pred_check
      %p206 = pneg %p70
    $region43: #{fwd.6} parent=1 // pred_check_branch
      %208 = sbr.rel (%p206) target = $region45
    $region44: #{fwd.6} parent=1 // pred_region
      %v209 = vld [vmem:[%s6] sm:$0xff]
      %v210 = vld [vmem:[%s6 + $0x8] sm:$0xff]
      %v211 = vrot.slane %v209, 4
      %v212 = vadd.f32 %v209, %v211
      %v213 = vrot.slane %v212, 2
      %v214 = vadd.f32 %v212, %v213
      %v215 = vrot.slane %v214, 1
      %v216 = vadd.f32 %v214, %v215
      %v217 = vrot.slane %v210, 4
      %v218 = vadd.f32 %v210, %v217
      %v219 = vrot.slane %v218, 2
      %v220 = vadd.f32 %v218, %v219
      %v221 = vrot.slane %v220, 1
      %v222 = vadd.f32 %v220, %v221
      %v223 = vmul.f32 %v209, %v209
      %v224 = vmul.f32 %v210, %v210
      %v225 = vrot.slane %v223, 4
      %v226 = vadd.f32 %v223, %v225
      %v227 = vrot.slane %v226, 2
      %v228 = vadd.f32 %v226, %v227
      %v229 = vrot.slane %v228, 1
      %v230 = vadd.f32 %v228, %v229
      %v231 = vrot.slane %v224, 4
      %v232 = vadd.f32 %v224, %v231
      %v233 = vrot.slane %v232, 2
      %v234 = vadd.f32 %v232, %v233
      %v235 = vrot.slane %v234, 1
      %v236 = vadd.f32 %v234, %v235
      %v237 = vld [vmem:[#allocation4] sm:$0xff]
      %v238 = vld [vmem:[#allocation4 + $0x8] sm:$0xff]
      %v239 = vld [vmem:[#allocation4 + $0x10] sm:$0xff]
      %v240 = vld [vmem:[#allocation4 + $0x18] sm:$0xff]
      %v241 = vld [vmem:[#allocation4 + $0x20] sm:$0xff]
      %v242 = vld [vmem:[#allocation4 + $0x28] sm:$0xff]
      %v243 = vld [vmem:[#allocation4 + $0x30] sm:$0xff]
      %v244 = vld [vmem:[#allocation4 + $0x38] sm:$0xff]
      %v245 = vld [vmem:[#allocation4 + $0x40] sm:$0xff]
      %v246 = vld [vmem:[#allocation4 + $0x48] sm:$0xff]
      %v247 = vld [vmem:[#allocation4 + $0x50] sm:$0xff]
      %v248 = vld [vmem:[#allocation4 + $0x58] sm:$0xff]
      %v249 = vld [vmem:[#allocation4 + $0x60] sm:$0xff]
      %v250 = vld [vmem:[#allocation4 + $0x68] sm:$0xff]
      %v251 = vld [vmem:[#allocation4 + $0x70] sm:$0xff]
      %v252 = vld [vmem:[#allocation4 + $0x78] sm:$0xff]
      %v253 = vld [vmem:[#allocation4 + $0x80] sm:$0xff]
      %v254 = vld [vmem:[#allocation4 + $0x88] sm:$0xff]
      %v255 = vld [vmem:[#allocation4 + $0x90] sm:$0xff]
      %v256 = vld [vmem:[#allocation4 + $0x98] sm:$0xff]
      %v257 = vld [vmem:[#allocation4 + $0xa0] sm:$0xff]
      %v258 = vld [vmem:[#allocation4 + $0xa8] sm:$0xff]
      %v259 = vld [vmem:[#allocation4 + $0xb0] sm:$0xff]
      %v260 = vld [vmem:[#allocation4 + $0xb8] sm:$0xff]
      %v261 = vld [vmem:[#allocation4 + $0xc0] sm:$0xff]
      %v262 = vld [vmem:[#allocation4 + $0xc8] sm:$0xff]
      %v263 = vld [vmem:[#allocation4 + $0xd0] sm:$0xff]
      %v264 = vld [vmem:[#allocation4 + $0xd8] sm:$0xff]
      %v265 = vld [vmem:[#allocation4 + $0xe0] sm:$0xff]
      %v266 = vld [vmem:[#allocation4 + $0xe8] sm:$0xff]
      %v267 = vld [vmem:[#allocation4 + $0xf0] sm:$0xff]
      %v268 = vld [vmem:[#allocation4 + $0xf8] sm:$0xff]
      %v269 = vpack.c.bf16 %v222, %v216
      %v270 = vunpack.c.l.bf16 %v269
      %v271 = vunpack.c.h.bf16 %v269
      %v272 = vsub.f32 %v216, %v270
      %v273 = vsub.f32 %v222, %v271
      %274 = vmatpush.msra.mxu0 %v252
      %275 = vmatpush.msra.mxu0 %v251
      %276 = vmatpush.msra.mxu0 %v250
      %277 = vmatpush.msra.mxu0 %v249
      %278 = vmatpush.msra.mxu0 %v248
      %279 = vmatpush.msra.mxu0 %v247
      %280 = vmatpush.msra.mxu0 %v246
      %281 = vmatpush.msra.mxu0 %v245
      %282 = vmatpush.msra.mxu0 %v244
      %283 = vmatpush.msra.mxu0 %v243
      %284 = vmatpush.msra.mxu0 %v242
      %285 = vmatpush.msra.mxu0 %v241
      %286 = vmatpush.msra.mxu0 %v240
      %287 = vmatpush.msra.mxu0 %v239
      %288 = vmatpush.msra.mxu0 %v238
      %289 = vmatpush.msra.mxu0 %v237
      %290 = vmatmul.f32.gmra.mxu0 %v272
      %v291 = vpop.f32.mrf.mxu0
      %v292 = vadd.f32 0.0, %v291
      %293 = vdwg.mxu0
      %294 = vmatpush.msra.mxu0 %v268
      %295 = vmatpush.msra.mxu0 %v267
      %296 = vmatpush.msra.mxu0 %v266
      %297 = vmatpush.msra.mxu0 %v265
      %298 = vmatpush.msra.mxu0 %v264
      %299 = vmatpush.msra.mxu0 %v263
      %300 = vmatpush.msra.mxu0 %v262
      %301 = vmatpush.msra.mxu0 %v261
      %302 = vmatpush.msra.mxu0 %v260
      %303 = vmatpush.msra.mxu0 %v259
      %304 = vmatpush.msra.mxu0 %v258
      %305 = vmatpush.msra.mxu0 %v257
      %306 = vmatpush.msra.mxu0 %v256
      %307 = vmatpush.msra.mxu0 %v255
      %308 = vmatpush.msra.mxu0 %v254
      %309 = vmatpush.msra.mxu0 %v253
      %310 = vmatmul.f32.gmra.mxu0 %v273
      %v311 = vpop.f32.mrf.mxu0
      %v312 = vadd.f32 %v292, %v311
      %313 = vdwg.mxu0
      %314 = vmatpush.msra.mxu0 %v252
      %315 = vmatpush.msra.mxu0 %v251
      %316 = vmatpush.msra.mxu0 %v250
      %317 = vmatpush.msra.mxu0 %v249
      %318 = vmatpush.msra.mxu0 %v248
      %319 = vmatpush.msra.mxu0 %v247
      %320 = vmatpush.msra.mxu0 %v246
      %321 = vmatpush.msra.mxu0 %v245
      %322 = vmatpush.msra.mxu0 %v244
      %323 = vmatpush.msra.mxu0 %v243
      %324 = vmatpush.msra.mxu0 %v242
      %325 = vmatpush.msra.mxu0 %v241
      %326 = vmatpush.msra.mxu0 %v240
      %327 = vmatpush.msra.mxu0 %v239
      %328 = vmatpush.msra.mxu0 %v238
      %329 = vmatpush.msra.mxu0 %v237
      %330 = vmatmul.f32.gmra.mxu0 %v270
      %v331 = vpop.f32.mrf.mxu0
      %v332 = vadd.f32 %v312, %v331
      %333 = vdwg.mxu0
      %334 = vmatpush.msra.mxu0 %v268
      %335 = vmatpush.msra.mxu0 %v267
      %336 = vmatpush.msra.mxu0 %v266
      %337 = vmatpush.msra.mxu0 %v265
      %338 = vmatpush.msra.mxu0 %v264
      %339 = vmatpush.msra.mxu0 %v263
      %340 = vmatpush.msra.mxu0 %v262
      %341 = vmatpush.msra.mxu0 %v261
      %342 = vmatpush.msra.mxu0 %v260
      %343 = vmatpush.msra.mxu0 %v259
      %344 = vmatpush.msra.mxu0 %v258
      %345 = vmatpush.msra.mxu0 %v257
      %346 = vmatpush.msra.mxu0 %v256
      %347 = vmatpush.msra.mxu0 %v255
      %348 = vmatpush.msra.mxu0 %v254
      %349 = vmatpush.msra.mxu0 %v253
      %350 = vmatmul.f32.gmra.mxu0 %v271
      %v351 = vpop.f32.mrf.mxu0
      %v352 = vadd.f32 %v332, %v351
      %353 = vdwg.mxu0
      %v354 = vpack.c.bf16 %v236, %v230
      %v355 = vunpack.c.l.bf16 %v354
      %v356 = vunpack.c.h.bf16 %v354
      %v357 = vsub.f32 %v230, %v355
      %v358 = vsub.f32 %v236, %v356
      %359 = vmatpush.msra.mxu0 %v252
      %360 = vmatpush.msra.mxu0 %v251
      %361 = vmatpush.msra.mxu0 %v250
      %362 = vmatpush.msra.mxu0 %v249
      %363 = vmatpush.msra.mxu0 %v248
      %364 = vmatpush.msra.mxu0 %v247
      %365 = vmatpush.msra.mxu0 %v246
      %366 = vmatpush.msra.mxu0 %v245
      %367 = vmatpush.msra.mxu0 %v244
      %368 = vmatpush.msra.mxu0 %v243
      %369 = vmatpush.msra.mxu0 %v242
      %370 = vmatpush.msra.mxu0 %v241
      %371 = vmatpush.msra.mxu0 %v240
      %372 = vmatpush.msra.mxu0 %v239
      %373 = vmatpush.msra.mxu0 %v238
      %374 = vmatpush.msra.mxu0 %v237
      %375 = vmatmul.f32.gmra.mxu0 %v357
      %v376 = vpop.f32.mrf.mxu0
      %v377 = vadd.f32 0.0, %v376
      %378 = vdwg.mxu0
      %379 = vmatpush.msra.mxu0 %v268
      %380 = vmatpush.msra.mxu0 %v267
      %381 = vmatpush.msra.mxu0 %v266
      %382 = vmatpush.msra.mxu0 %v265
      %383 = vmatpush.msra.mxu0 %v264
      %384 = vmatpush.msra.mxu0 %v263
      %385 = vmatpush.msra.mxu0 %v262
      %386 = vmatpush.msra.mxu0 %v261
      %387 = vmatpush.msra.mxu0 %v260
      %388 = vmatpush.msra.mxu0 %v259
      %389 = vmatpush.msra.mxu0 %v258
      %390 = vmatpush.msra.mxu0 %v257
      %391 = vmatpush.msra.mxu0 %v256
      %392 = vmatpush.msra.mxu0 %v255
      %393 = vmatpush.msra.mxu0 %v254
      %394 = vmatpush.msra.mxu0 %v253
      %395 = vmatmul.f32.gmra.mxu0 %v358
      %v396 = vpop.f32.mrf.mxu0
      %v397 = vadd.f32 %v377, %v396
      %398 = vdwg.mxu0
      %399 = vmatpush.msra.mxu0 %v252
      %400 = vmatpush.msra.mxu0 %v251
      %401 = vmatpush.msra.mxu0 %v250
      %402 = vmatpush.msra.mxu0 %v249
      %403 = vmatpush.msra.mxu0 %v248
      %404 = vmatpush.msra.mxu0 %v247
      %405 = vmatpush.msra.mxu0 %v246
      %406 = vmatpush.msra.mxu0 %v245
      %407 = vmatpush.msra.mxu0 %v244
      %408 = vmatpush.msra.mxu0 %v243
      %409 = vmatpush.msra.mxu0 %v242
      %410 = vmatpush.msra.mxu0 %v241
      %411 = vmatpush.msra.mxu0 %v240
      %412 = vmatpush.msra.mxu0 %v239
      %413 = vmatpush.msra.mxu0 %v238
      %414 = vmatpush.msra.mxu0 %v237
      %415 = vmatmul.f32.gmra.mxu0 %v355
      %v416 = vpop.f32.mrf.mxu0
      %v417 = vadd.f32 %v397, %v416
      %418 = vdwg.mxu0
      %419 = vmatpush.msra.mxu0 %v268
      %420 = vmatpush.msra.mxu0 %v267
      %421 = vmatpush.msra.mxu0 %v266
      %422 = vmatpush.msra.mxu0 %v265
      %423 = vmatpush.msra.mxu0 %v264
      %424 = vmatpush.msra.mxu0 %v263
      %425 = vmatpush.msra.mxu0 %v262
      %426 = vmatpush.msra.mxu0 %v261
      %427 = vmatpush.msra.mxu0 %v260
      %428 = vmatpush.msra.mxu0 %v259
      %429 = vmatpush.msra.mxu0 %v258
      %430 = vmatpush.msra.mxu0 %v257
      %431 = vmatpush.msra.mxu0 %v256
      %432 = vmatpush.msra.mxu0 %v255
      %433 = vmatpush.msra.mxu0 %v254
      %434 = vmatpush.msra.mxu0 %v253
      %435 = vmatmul.f32.gmra.mxu0 %v356
      %v436 = vpop.f32.mrf.mxu0
      %v437 = vadd.f32 %v417, %v436
      %438 = vdwg.mxu0
      %v439 = vmul.f32 %v352, 0.083333336
      %v440 = vmul.f32 %v437, 0.083333336
      %v441 = vmul.f32 %v439, %v439
      %v442 = vsub.f32 %v440, %v441
      %v443 = vadd.f32 %v442, 1e-05
      %v444 = vrsqrt.pop %v443
      %v445 = vmul.f32 %v444, %v443
      %v446 = vmul.f32 %v445, %v444
      %v447 = vmul.f32 0.5, %v446
      %v448 = vsub.f32 1.5, %v447
      %v449 = vmul.f32 %v444, %v448
      %vm450 = vweird.f32 %v443
      %vm451 = vweird.f32 %v444
      %vm452 = vmor %vm450, %vm451
      %v453 = vsel %vm452, %v444, %v449
      %v454 = vld [vmem:[%s4] sm:$0x1]
      %v455 = vmul.f32 %v453, %v454
      %v456 = vld [vmem:[%s5] sm:$0x1]
      %v457 = vmul.f32 %v439, %v455
      %v458 = vsub.f32 %v456, %v457
      %v459 = vld [vmem:[#allocation6] sm:$0xff]
      %v460 = vld [vmem:[#allocation6 + $0x8] sm:$0xff]
      %v461 = vld [vmem:[#allocation6 + $0x10] sm:$0xff]
      %v462 = vld [vmem:[#allocation6 + $0x18] sm:$0xff]
      %v463 = vld [vmem:[#allocation6 + $0x20] sm:$0xff]
      %v464 = vld [vmem:[#allocation6 + $0x28] sm:$0xff]
      %v465 = vld [vmem:[#allocation6 + $0x30] sm:$0xff]
      %v466 = vld [vmem:[#allocation6 + $0x38] sm:$0xff]
      %v467 = vld [vmem:[#allocation6 + $0x40] sm:$0xff]
      %v468 = vld [vmem:[#allocation6 + $0x48] sm:$0xff]
      %v469 = vld [vmem:[#allocation6 + $0x50] sm:$0xff]
      %v470 = vld [vmem:[#allocation6 + $0x58] sm:$0xff]
      %v471 = vld [vmem:[#allocation6 + $0x60] sm:$0xff]
      %v472 = vld [vmem:[#allocation6 + $0x68] sm:$0xff]
      %v473 = vld [vmem:[#allocation6 + $0x70] sm:$0xff]
      %v474 = vld [vmem:[#allocation6 + $0x78] sm:$0xff]
      %v475 = vld [vmem:[#allocation6 + $0x80] sm:$0xff]
      %v476 = vld [vmem:[#allocation6 + $0x88] sm:$0xff]
      %v477 = vld [vmem:[#allocation6 + $0x90] sm:$0xff]
      %v478 = vld [vmem:[#allocation6 + $0x98] sm:$0xff]
      %v479 = vld [vmem:[#allocation6 + $0xa0] sm:$0xff]
      %v480 = vld [vmem:[#allocation6 + $0xa8] sm:$0xff]
      %v481 = vld [vmem:[#allocation6 + $0xb0] sm:$0xff]
      %v482 = vld [vmem:[#allocation6 + $0xb8] sm:$0xff]
      %v483 = vld [vmem:[#allocation6 + $0xc0] sm:$0xff]
      %v484 = vld [vmem:[#allocation6 + $0xc8] sm:$0xff]
      %v485 = vld [vmem:[#allocation6 + $0xd0] sm:$0xff]
      %v486 = vld [vmem:[#allocation6 + $0xd8] sm:$0xff]
      %v487 = vld [vmem:[#allocation6 + $0xe0] sm:$0xff]
      %v488 = vld [vmem:[#allocation6 + $0xe8] sm:$0xff]
      %v489 = vld [vmem:[#allocation6 + $0xf0] sm:$0xff]
      %v490 = vld [vmem:[#allocation6 + $0xf8] sm:$0xff]
      %v491 = vpack.c.bf16 %v455, %v455
      %v492 = vunpack.c.l.bf16 %v491
      %v493 = vsub.f32 %v455, %v492
      %494 = vmatpush.msra.mxu0 %v489
      %495 = vmatpush.msra.mxu0 %v487
      %496 = vmatpush.msra.mxu0 %v485
      %497 = vmatpush.msra.mxu0 %v483
      %498 = vmatpush.msra.mxu0 %v481
      %499 = vmatpush.msra.mxu0 %v479
      %500 = vmatpush.msra.mxu0 %v477
      %501 = vmatpush.msra.mxu0 %v475
      %502 = vmatpush.msra.mxu0 %v473
      %503 = vmatpush.msra.mxu0 %v471
      %504 = vmatpush.msra.mxu0 %v469
      %505 = vmatpush.msra.mxu0 %v467
      %506 = vmatpush.msra.mxu0 %v465
      %507 = vmatpush.msra.mxu0 %v463
      %508 = vmatpush.msra.mxu0 %v461
      %509 = vmatpush.msra.mxu0 %v459
      %510 = vmatmul.f32.gmra.mxu0 %v493
      %v511 = vpop.f32.mrf.mxu0
      %v512 = vadd.f32 0.0, %v511
      %513 = vdwg.mxu0
      %514 = vmatpush.msra.mxu0 %v490
      %515 = vmatpush.msra.mxu0 %v488
      %516 = vmatpush.msra.mxu0 %v486
      %517 = vmatpush.msra.mxu0 %v484
      %518 = vmatpush.msra.mxu0 %v482
      %519 = vmatpush.msra.mxu0 %v480
      %520 = vmatpush.msra.mxu0 %v478
      %521 = vmatpush.msra.mxu0 %v476
      %522 = vmatpush.msra.mxu0 %v474
      %523 = vmatpush.msra.mxu0 %v472
      %524 = vmatpush.msra.mxu0 %v470
      %525 = vmatpush.msra.mxu0 %v468
      %526 = vmatpush.msra.mxu0 %v466
      %527 = vmatpush.msra.mxu0 %v464
      %528 = vmatpush.msra.mxu0 %v462
      %529 = vmatpush.msra.mxu0 %v460
      %530 = vmatmul.f32.gmra.mxu0 %v493
      %v531 = vpop.f32.mrf.mxu0
      %v532 = vadd.f32 0.0, %v531
      %533 = vdwg.mxu0
      %534 = vmatpush.msra.mxu0 %v489
      %535 = vmatpush.msra.mxu0 %v487
      %536 = vmatpush.msra.mxu0 %v485
      %537 = vmatpush.msra.mxu0 %v483
      %538 = vmatpush.msra.mxu0 %v481
      %539 = vmatpush.msra.mxu0 %v479
      %540 = vmatpush.msra.mxu0 %v477
      %541 = vmatpush.msra.mxu0 %v475
      %542 = vmatpush.msra.mxu0 %v473
      %543 = vmatpush.msra.mxu0 %v471
      %544 = vmatpush.msra.mxu0 %v469
      %545 = vmatpush.msra.mxu0 %v467
      %546 = vmatpush.msra.mxu0 %v465
      %547 = vmatpush.msra.mxu0 %v463
      %548 = vmatpush.msra.mxu0 %v461
      %549 = vmatpush.msra.mxu0 %v459
      %550 = vmatmul.f32.gmra.mxu0 %v492
      %v551 = vpop.f32.mrf.mxu0
      %v552 = vadd.f32 %v512, %v551
      %553 = vdwg.mxu0
      %554 = vmatpush.msra.mxu0 %v490
      %555 = vmatpush.msra.mxu0 %v488
      %556 = vmatpush.msra.mxu0 %v486
      %557 = vmatpush.msra.mxu0 %v484
      %558 = vmatpush.msra.mxu0 %v482
      %559 = vmatpush.msra.mxu0 %v480
      %560 = vmatpush.msra.mxu0 %v478
      %561 = vmatpush.msra.mxu0 %v476
      %562 = vmatpush.msra.mxu0 %v474
      %563 = vmatpush.msra.mxu0 %v472
      %564 = vmatpush.msra.mxu0 %v470
      %565 = vmatpush.msra.mxu0 %v468
      %566 = vmatpush.msra.mxu0 %v466
      %567 = vmatpush.msra.mxu0 %v464
      %568 = vmatpush.msra.mxu0 %v462
      %569 = vmatpush.msra.mxu0 %v460
      %570 = vmatmul.f32.gmra.mxu0 %v492
      %v571 = vpop.f32.mrf.mxu0
      %v572 = vadd.f32 %v532, %v571
      %573 = vdwg.mxu0
      %v574 = vpack.c.bf16 %v458, %v458
      %v575 = vunpack.c.l.bf16 %v574
      %v576 = vsub.f32 %v458, %v575
      %577 = vmatpush.msra.mxu0 %v489
      %578 = vmatpush.msra.mxu0 %v487
      %579 = vmatpush.msra.mxu0 %v485
      %580 = vmatpush.msra.mxu0 %v483
      %581 = vmatpush.msra.mxu0 %v481
      %582 = vmatpush.msra.mxu0 %v479
      %583 = vmatpush.msra.mxu0 %v477
      %584 = vmatpush.msra.mxu0 %v475
      %585 = vmatpush.msra.mxu0 %v473
      %586 = vmatpush.msra.mxu0 %v471
      %587 = vmatpush.msra.mxu0 %v469
      %588 = vmatpush.msra.mxu0 %v467
      %589 = vmatpush.msra.mxu0 %v465
      %590 = vmatpush.msra.mxu0 %v463
      %591 = vmatpush.msra.mxu0 %v461
      %592 = vmatpush.msra.mxu0 %v459
      %593 = vmatmul.f32.gmra.mxu0 %v576
      %v594 = vpop.f32.mrf.mxu0
      %v595 = vadd.f32 0.0, %v594
      %596 = vdwg.mxu0
      %597 = vmatpush.msra.mxu0 %v490
      %598 = vmatpush.msra.mxu0 %v488
      %599 = vmatpush.msra.mxu0 %v486
      %600 = vmatpush.msra.mxu0 %v484
      %601 = vmatpush.msra.mxu0 %v482
      %602 = vmatpush.msra.mxu0 %v480
      %603 = vmatpush.msra.mxu0 %v478
      %604 = vmatpush.msra.mxu0 %v476
      %605 = vmatpush.msra.mxu0 %v474
      %606 = vmatpush.msra.mxu0 %v472
      %607 = vmatpush.msra.mxu0 %v470
      %608 = vmatpush.msra.mxu0 %v468
      %609 = vmatpush.msra.mxu0 %v466
      %610 = vmatpush.msra.mxu0 %v464
      %611 = vmatpush.msra.mxu0 %v462
      %612 = vmatpush.msra.mxu0 %v460
      %613 = vmatmul.f32.gmra.mxu0 %v576
      %v614 = vpop.f32.mrf.mxu0
      %v615 = vadd.f32 0.0, %v614
      %616 = vdwg.mxu0
      %617 = vmatpush.msra.mxu0 %v489
      %618 = vmatpush.msra.mxu0 %v487
      %619 = vmatpush.msra.mxu0 %v485
      %620 = vmatpush.msra.mxu0 %v483
      %621 = vmatpush.msra.mxu0 %v481
      %622 = vmatpush.msra.mxu0 %v479
      %623 = vmatpush.msra.mxu0 %v477
      %624 = vmatpush.msra.mxu0 %v475
      %625 = vmatpush.msra.mxu0 %v473
      %626 = vmatpush.msra.mxu0 %v471
      %627 = vmatpush.msra.mxu0 %v469
      %628 = vmatpush.msra.mxu0 %v467
      %629 = vmatpush.msra.mxu0 %v465
      %630 = vmatpush.msra.mxu0 %v463
      %631 = vmatpush.msra.mxu0 %v461
      %632 = vmatpush.msra.mxu0 %v459
      %633 = vmatmul.f32.gmra.mxu0 %v575
      %v634 = vpop.f32.mrf.mxu0
      %v635 = vadd.f32 %v595, %v634
      %636 = vdwg.mxu0
      %637 = vmatpush.msra.mxu0 %v490
      %638 = vmatpush.msra.mxu0 %v488
      %639 = vmatpush.msra.mxu0 %v486
      %640 = vmatpush.msra.mxu0 %v484
      %641 = vmatpush.msra.mxu0 %v482
      %642 = vmatpush.msra.mxu0 %v480
      %643 = vmatpush.msra.mxu0 %v478
      %644 = vmatpush.msra.mxu0 %v476
      %645 = vmatpush.msra.mxu0 %v474
      %646 = vmatpush.msra.mxu0 %v472
      %647 = vmatpush.msra.mxu0 %v470
      %648 = vmatpush.msra.mxu0 %v468
      %649 = vmatpush.msra.mxu0 %v466
      %650 = vmatpush.msra.mxu0 %v464
      %651 = vmatpush.msra.mxu0 %v462
      %652 = vmatpush.msra.mxu0 %v460
      %653 = vmatmul.f32.gmra.mxu0 %v575
      %v654 = vpop.f32.mrf.mxu0
      %v655 = vadd.f32 %v615, %v654
      %656 = vdwg.mxu0
      %v657 = vperm.slane %v552, 0
      %v658 = vperm.slane %v572, 0
      %v659 = vmul.f32 %v209, %v657
      %v660 = vmul.f32 %v210, %v658
      %v661 = vperm.slane %v635, 0
      %v662 = vperm.slane %v655, 0
      %v663 = vadd.f32 %v659, %v661
      %v664 = vadd.f32 %v660, %v662
      %v665 = vmax.f32 %v663, 0.0
      %v666 = vmax.f32 %v664, 0.0
      %v667 = vlaneseq
      %v668 = vshrl.u32 %v667, 7
      %vm669 = vcmp.lt.s32.totalorder %v668, 2
      %v670 = vsel %vm669, %v665, 0.0
      %v671 = vsel %vm669, %v666, 0.0
      %672 = vst [vmem:[%s6] sm:$0xff] %v670
      %673 = vst [vmem:[%s6 + $0x8] sm:$0xff] %v671
    $region45: #{fwd.6} parent=1 // pred_fallthru
      _
    // Predicated region
    $region46: #{fwd.6} parent=1 // pred_check
      _
    $region47: #{fwd.6} parent=1 // pred_check_branch
      %675 = sbr.rel (0) target = $region49
    $region48: #{fwd.6} parent=1 // pred_region
      _
    $region49: #{fwd.6} parent=1 // pred_fallthru
      _
    // Predicated region
    $region50: #{fwd.6} parent=1 // pred_check
      _
    $region51: #{fwd.6} parent=1 // pred_check_branch
      %677 = sbr.rel (0) target = $region53
    $region52: #{fwd.6} parent=1 // pred_region
      _
    $region53: #{fwd.6} parent=1 // pred_fallthru
      _
    %678 = vsyncpa [#allocation3], 1
    %679 = vsyncpa [#allocation5], 1

// kernel: fwd.7
$region0: #{fwd.7}
  #allocation0 [shape = 'u32[]', space=smem, size = 0x4, offset = 0x4, fixed_abs, tag = 'smem constant byte address 0x4 - core index']
  #allocation1 [shape = 'u32[72,128]{1,0:T(1,128)}', space=vmem, size = 0x9000, scoped, tag = 'internal scratch']
  %s0 = inlined_call_operand.vmem [shape: f32[8,256], index: 0, kind: input, shape index: {}]
  %s1 = inlined_call_operand.hbm [shape: bf16[256,256], index: 1, kind: input, shape index: {}]
  %s2 = inlined_call_operand.hbm [shape: f32[256,128], index: 2, kind: input, shape index: {}]
  %s3 = inlined_call_operand.hbm [shape: f32[128,256], index: 3, kind: input, shape index: {}]
  %s4 = inlined_call_operand.vmem [shape: f32[1,128], index: 4, kind: input, shape index: {}]
  %s5 = inlined_call_operand.vmem [shape: f32[1,128], index: 5, kind: input, shape index: {}]
  %s6 = inlined_call_operand.vmem [shape: f32[8,256], index: 6, kind: output, shape index: {}]
  %s7 = sld [smem:[#allocation0]]
  $region54: #{fwd.7} parent=0
    _
  %s9 = ssub.s32 1, %s7
  %s10 = scalar_select 0, %s9, %s7
  $region1: #{fwd.7} parent=0
    #allocation2 [shape = 'u8[131072]{0}', space=vmem, size = 0x20000, scoped, tag = 'input window, operand 1, single buffered']
    #allocation3 [shape = 's32[1]{0}', space=sflag, size = 0x4, scoped, tag = 'scoped memory for fwd.7']
    #allocation4 [shape = 'u8[131072]{0}', space=vmem, size = 0x20000, scoped, tag = 'input window, operand 2, single buffered']
    #allocation5 [shape = 's32[1]{0}', space=sflag, size = 0x4, scoped, tag = 'scoped memory for fwd.7']
    #allocation6 [shape = 'u8[131072]{0}', space=vmem, size = 0x20000, scoped, tag = 'input window, operand 3, single buffered']
    %11 = vsyncpa [#allocation3], 0
    %12 = vsyncpa [#allocation5], 0
    // Predicated region
    $region2: #{fwd.7} parent=1 // pred_check
      _
    $region3: #{fwd.7} parent=1 // pred_check_branch
      %14 = sbr.rel (0) target = $region5
    $region4: #{fwd.7} parent=1 // pred_region
      _
    $region5: #{fwd.7} parent=1 // pred_fallthru
      _
    // Predicated region
    $region6: #{fwd.7} parent=1 // pred_check
      _
    $region7: #{fwd.7} parent=1 // pred_check_branch
      %16 = sbr.rel (0) target = $region9
    $region8: #{fwd.7} parent=1 // pred_region
      %18 = vsyncadd [#allocation3], 0
      %s19 = sshll.u32 %s1, 4
      %s20 = int_to_ptr.hbm [resolvable:$true] %s19
      %s21 = sshll.u32 [#allocation2], 4
      %s22 = int_to_ptr.vmem [resolvable:$true] %s21
      %27 = dma.hbm_to_vmem [thread:$0]  %s20, 4096, %s22, [#allocation3], 128, 128, 8
    $region9: #{fwd.7} parent=1 // pred_fallthru
      _
    // Predicated region
    $region10: #{fwd.7} parent=1 // pred_check
      _
    $region11: #{fwd.7} parent=1 // pred_check_branch
      %29 = sbr.rel (0) target = $region13
    $region12: #{fwd.7} parent=1 // pred_region
      %31 = vsyncadd [#allocation5], 0
      %s32 = sshll.u32 %s2, 4
      %s33 = int_to_ptr.hbm [resolvable:$true] %s32
      %s34 = sshll.u32 [#allocation4], 4
      %s35 = int_to_ptr.vmem [resolvable:$true] %s34
      %40 = dma.hbm_to_vmem [thread:$0]  %s33, 4096, %s35, [#allocation5], 128, 128, 8
    $region13: #{fwd.7} parent=1 // pred_fallthru
      _
    // Predicated region
    $region14: #{fwd.7} parent=1 // pred_check
      _
    $region15: #{fwd.7} parent=1 // pred_check_branch
      %42 = sbr.rel (0) target = $region17
    $region16: #{fwd.7} parent=1 // pred_region
      %44 = vsyncadd [#allocation5], 0
      %s45 = sshll.u32 %s3, 4
      %s46 = int_to_ptr.hbm [resolvable:$true] %s45
      %s47 = sshll.u32 [#allocation6], 4
      %s48 = int_to_ptr.vmem [resolvable:$true] %s47
      %53 = dma.hbm_to_vmem [thread:$0]  %s46, 4096, %s48, [#allocation5], 256, 256, 16
    $region17: #{fwd.7} parent=1 // pred_fallthru
      _
    // Predicated region
    $region18: #{fwd.7} parent=1 // pred_check
      _
    $region19: #{fwd.7} parent=1 // pred_check_branch
      %55 = sbr.rel (0) target = $region21
    $region20: #{fwd.7} parent=1 // pred_region
      _
    $region21: #{fwd.7} parent=1 // pred_fallthru
      _
    // Predicated region
    $region22: #{fwd.7} parent=1 // pred_check
      _
    $region23: #{fwd.7} parent=1 // pred_check_branch
      %57 = sbr.rel (0) target = $region25
    $region24: #{fwd.7} parent=1 // pred_region
      _
    $region25: #{fwd.7} parent=1 // pred_fallthru
      _
    // Predicated region
    $region26: #{fwd.7} parent=1 // pred_check
      _
    $region27: #{fwd.7} parent=1 // pred_check_branch
      %59 = sbr.rel (0) target = $region29
    $region28: #{fwd.7} parent=1 // pred_region
      %61 = dma.done [#allocation3], 4096
    $region29: #{fwd.7} parent=1 // pred_fallthru
      _
    // Predicated region
    $region30: #{fwd.7} parent=1 // pred_check
      _
    $region31: #{fwd.7} parent=1 // pred_check_branch
      %63 = sbr.rel (0) target = $region33
    $region32: #{fwd.7} parent=1 // pred_region
      %65 = dma.done [#allocation5], 4096
    $region33: #{fwd.7} parent=1 // pred_fallthru
      _
    // Predicated region
    $region34: #{fwd.7} parent=1 // pred_check
      _
    $region35: #{fwd.7} parent=1 // pred_check_branch
      %67 = sbr.rel (0) target = $region37
    $region36: #{fwd.7} parent=1 // pred_region
      %69 = dma.done [#allocation5], 4096
    $region37: #{fwd.7} parent=1 // pred_fallthru
      _
    %p70 = scmp.eq.s32.totalorder 0, 0
    // Predicated region
    $region38: #{fwd.7} parent=1 // pred_check
      %p71 = pneg %p70
    $region39: #{fwd.7} parent=1 // pred_check_branch
      %73 = sbr.rel (%p71) target = $region41
    $region40: #{fwd.7} parent=1 // pred_region
      %74 = vst [vmem:[%s6] sm:$0xff] 0.0
      %75 = vst [vmem:[%s6 + $0x8] sm:$0xff] 0.0
    $region41: #{fwd.7} parent=1 // pred_fallthru
      _
    %v76 = vld [vmem:[%s6] sm:$0xff]
    %v77 = vld [vmem:[%s6 + $0x8] sm:$0xff]
    %v78 = vld [vmem:[%s0] sm:$0xff]
    %v79 = vld [vmem:[%s0 + $0x8] sm:$0xff]
    %v80 = vpack.c.bf16 %v78, %v78
    %v81 = vpack.c.bf16 %v79, %v79
    %v82 = vld [vmem:[#allocation2] sm:$0xff]
    %v83 = vld [vmem:[#allocation2 + $0x8] sm:$0xff]
    %v84 = vld [vmem:[#allocation2 + $0x10] sm:$0xff]
    %v85 = vld [vmem:[#allocation2 + $0x18] sm:$0xff]
    %v86 = vld [vmem:[#allocation2 + $0x20] sm:$0xff]
    %v87 = vld [vmem:[#allocation2 + $0x28] sm:$0xff]
    %v88 = vld [vmem:[#allocation2 + $0x30] sm:$0xff]
    %v89 = vld [vmem:[#allocation2 + $0x38] sm:$0xff]
    %v90 = vld [vmem:[#allocation2 + $0x40] sm:$0xff]
    %v91 = vld [vmem:[#allocation2 + $0x48] sm:$0xff]
    %v92 = vld [vmem:[#allocation2 + $0x50] sm:$0xff]
    %v93 = vld [vmem:[#allocation2 + $0x58] sm:$0xff]
    %v94 = vld [vmem:[#allocation2 + $0x60] sm:$0xff]
    %v95 = vld [vmem:[#allocation2 + $0x68] sm:$0xff]
    %v96 = vld [vmem:[#allocation2 + $0x70] sm:$0xff]
    %v97 = vld [vmem:[#allocation2 + $0x78] sm:$0xff]
    %v98 = vld [vmem:[#allocation2 + $0x80] sm:$0xff]
    %v99 = vld [vmem:[#allocation2 + $0x88] sm:$0xff]
    %v100 = vld [vmem:[#allocation2 + $0x90] sm:$0xff]
    %v101 = vld [vmem:[#allocation2 + $0x98] sm:$0xff]
    %v102 = vld [vmem:[#allocation2 + $0xa0] sm:$0xff]
    %v103 = vld [vmem:[#allocation2 + $0xa8] sm:$0xff]
    %v104 = vld [vmem:[#allocation2 + $0xb0] sm:$0xff]
    %v105 = vld [vmem:[#allocation2 + $0xb8] sm:$0xff]
    %v106 = vld [vmem:[#allocation2 + $0xc0] sm:$0xff]
    %v107 = vld [vmem:[#allocation2 + $0xc8] sm:$0xff]
    %v108 = vld [vmem:[#allocation2 + $0xd0] sm:$0xff]
    %v109 = vld [vmem:[#allocation2 + $0xd8] sm:$0xff]
    %v110 = vld [vmem:[#allocation2 + $0xe0] sm:$0xff]
    %v111 = vld [vmem:[#allocation2 + $0xe8] sm:$0xff]
    %v112 = vld [vmem:[#allocation2 + $0xf0] sm:$0xff]
    %v113 = vld [vmem:[#allocation2 + $0xf8] sm:$0xff]
    %v146 = vunpack.c.l.b16 %v82
    %v147 = vunpack.c.h.b16 %v82
    %v148 = vunpack.c.l.b16 %v83
    %v149 = vunpack.c.h.b16 %v83
    %v150 = vunpack.c.l.b16 %v84
    %v151 = vunpack.c.h.b16 %v84
    %v152 = vunpack.c.l.b16 %v85
    %v153 = vunpack.c.h.b16 %v85
    %v154 = vunpack.c.l.b16 %v86
    %v155 = vunpack.c.h.b16 %v86
    %v156 = vunpack.c.l.b16 %v87
    %v157 = vunpack.c.h.b16 %v87
    %v158 = vunpack.c.l.b16 %v88
    %v159 = vunpack.c.h.b16 %v88
    %v160 = vunpack.c.l.b16 %v89
    %v161 = vunpack.c.h.b16 %v89
    %v162 = vunpack.c.l.b16 %v90
    %v163 = vunpack.c.h.b16 %v90
    %v164 = vunpack.c.l.b16 %v91
    %v165 = vunpack.c.h.b16 %v91
    %v166 = vunpack.c.l.b16 %v92
    %v167 = vunpack.c.h.b16 %v92
    %v168 = vunpack.c.l.b16 %v93
    %v169 = vunpack.c.h.b16 %v93
    %v170 = vunpack.c.l.b16 %v94
    %v171 = vunpack.c.h.b16 %v94
    %v172 = vunpack.c.l.b16 %v95
    %v173 = vunpack.c.h.b16 %v95
    %v174 = vunpack.c.l.b16 %v96
    %v175 = vunpack.c.h.b16 %v96
    %v176 = vunpack.c.l.b16 %v97
    %v177 = vunpack.c.h.b16 %v97
    %v178 = vunpack.c.l.b16 %v98
    %v179 = vunpack.c.h.b16 %v98
    %v180 = vunpack.c.l.b16 %v99
    %v181 = vunpack.c.h.b16 %v99
    %v182 = vunpack.c.l.b16 %v100
    %v183 = vunpack.c.h.b16 %v100
    %v184 = vunpack.c.l.b16 %v101
    %v185 = vunpack.c.h.b16 %v101
    %v186 = vunpack.c.l.b16 %v102
    %v187 = vunpack.c.h.b16 %v102
    %v188 = vunpack.c.l.b16 %v103
    %v189 = vunpack.c.h.b16 %v103
    %v190 = vunpack.c.l.b16 %v104
    %v191 = vunpack.c.h.b16 %v104
    %v192 = vunpack.c.l.b16 %v105
    %v193 = vunpack.c.h.b16 %v105
    %v194 = vunpack.c.l.b16 %v106
    %v195 = vunpack.c.h.b16 %v106
    %v196 = vunpack.c.l.b16 %v107
    %v197 = vunpack.c.h.b16 %v107
    %v198 = vunpack.c.l.b16 %v108
    %v199 = vunpack.c.h.b16 %v108
    %v200 = vunpack.c.l.b16 %v109
    %v201 = vunpack.c.h.b16 %v109
    %v202 = vunpack.c.l.b16 %v110
    %v203 = vunpack.c.h.b16 %v110
    %v204 = vunpack.c.l.b16 %v111
    %v205 = vunpack.c.h.b16 %v111
    %v206 = vunpack.c.l.b16 %v112
    %v207 = vunpack.c.h.b16 %v112
    %v208 = vunpack.c.l.b16 %v113
    %v209 = vunpack.c.h.b16 %v113
    %v210 = vpack.c.b16 %v148, %v146
    %v211 = vpack.c.b16 %v149, %v147
    %v212 = vpack.c.b16 %v152, %v150
    %v213 = vpack.c.b16 %v153, %v151
    %v214 = vpack.c.b16 %v156, %v154
    %v215 = vpack.c.b16 %v157, %v155
    %v216 = vpack.c.b16 %v160, %v158
    %v217 = vpack.c.b16 %v161, %v159
    %v218 = vpack.c.b16 %v164, %v162
    %v219 = vpack.c.b16 %v165, %v163
    %v220 = vpack.c.b16 %v168, %v166
    %v221 = vpack.c.b16 %v169, %v167
    %v222 = vpack.c.b16 %v172, %v170
    %v223 = vpack.c.b16 %v173, %v171
    %v224 = vpack.c.b16 %v176, %v174
    %v225 = vpack.c.b16 %v177, %v175
    %v226 = vpack.c.b16 %v180, %v178
    %v227 = vpack.c.b16 %v181, %v179
    %v228 = vpack.c.b16 %v184, %v182
    %v229 = vpack.c.b16 %v185, %v183
    %v230 = vpack.c.b16 %v188, %v186
    %v231 = vpack.c.b16 %v189, %v187
    %v232 = vpack.c.b16 %v192, %v190
    %v233 = vpack.c.b16 %v193, %v191
    %v234 = vpack.c.b16 %v196, %v194
    %v235 = vpack.c.b16 %v197, %v195
    %v236 = vpack.c.b16 %v200, %v198
    %v237 = vpack.c.b16 %v201, %v199
    %v238 = vpack.c.b16 %v204, %v202
    %v239 = vpack.c.b16 %v205, %v203
    %v240 = vpack.c.b16 %v208, %v206
    %v241 = vpack.c.b16 %v209, %v207
    %274 = vmatpush.bf16.msra.mxu0 %v224
    %275 = vmatpush.bf16.msra.mxu0 %v222
    %276 = vmatpush.bf16.msra.mxu0 %v220
    %277 = vmatpush.bf16.msra.mxu0 %v218
    %278 = vmatpush.bf16.msra.mxu0 %v216
    %279 = vmatpush.bf16.msra.mxu0 %v214
    %280 = vmatpush.bf16.msra.mxu0 %v212
    %281 = vmatpush.bf16.msra.mxu0 %v210
    %282 = vmatmul.bf16.gmra.mxu0 %v80
    %v283 = vpop.f32.mrf.mxu0
    %v284 = vadd.f32 0.0, %v283
    %v285 = vpop.f32.mrf.mxu0
    %286 = vdwg.mxu0
    %287 = vmatpush.bf16.msra.mxu0 %v240
    %288 = vmatpush.bf16.msra.mxu0 %v238
    %289 = vmatpush.bf16.msra.mxu0 %v236
    %290 = vmatpush.bf16.msra.mxu0 %v234
    %291 = vmatpush.bf16.msra.mxu0 %v232
    %292 = vmatpush.bf16.msra.mxu0 %v230
    %293 = vmatpush.bf16.msra.mxu0 %v228
    %294 = vmatpush.bf16.msra.mxu0 %v226
    %295 = vmatmul.bf16.gmra.mxu0 %v81
    %v296 = vpop.f32.mrf.mxu0
    %v297 = vadd.f32 %v284, %v296
    %v298 = vpop.f32.mrf.mxu0
    %299 = vdwg.mxu0
    %300 = vmatpush.bf16.msra.mxu0 %v225
    %301 = vmatpush.bf16.msra.mxu0 %v223
    %302 = vmatpush.bf16.msra.mxu0 %v221
    %303 = vmatpush.bf16.msra.mxu0 %v219
    %304 = vmatpush.bf16.msra.mxu0 %v217
    %305 = vmatpush.bf16.msra.mxu0 %v215
    %306 = vmatpush.bf16.msra.mxu0 %v213
    %307 = vmatpush.bf16.msra.mxu0 %v211
    %308 = vmatmul.bf16.gmra.mxu0 %v80
    %v309 = vpop.f32.mrf.mxu0
    %v310 = vadd.f32 0.0, %v309
    %v311 = vpop.f32.mrf.mxu0
    %312 = vdwg.mxu0
    %313 = vmatpush.bf16.msra.mxu0 %v241
    %314 = vmatpush.bf16.msra.mxu0 %v239
    %315 = vmatpush.bf16.msra.mxu0 %v237
    %316 = vmatpush.bf16.msra.mxu0 %v235
    %317 = vmatpush.bf16.msra.mxu0 %v233
    %318 = vmatpush.bf16.msra.mxu0 %v231
    %319 = vmatpush.bf16.msra.mxu0 %v229
    %320 = vmatpush.bf16.msra.mxu0 %v227
    %321 = vmatmul.bf16.gmra.mxu0 %v81
    %v322 = vpop.f32.mrf.mxu0
    %v323 = vadd.f32 %v310, %v322
    %v324 = vpop.f32.mrf.mxu0
    %325 = vdwg.mxu0
    %v326 = vadd.f32 %v76, %v297
    %v327 = vadd.f32 %v77, %v323
    %328 = vst [vmem:[%s6] sm:$0xff] %v326
    %329 = vst [vmem:[%s6 + $0x8] sm:$0xff] %v327
    // Predicated region
    $region42: #{fwd.7} parent=1 // pred_check
      %p330 = pneg %p70
    $region43: #{fwd.7} parent=1 // pred_check_branch
      %332 = sbr.rel (%p330) target = $region45
    $region44: #{fwd.7} parent=1 // pred_region
      %v333 = vld [vmem:[%s6] sm:$0xff]
      %v334 = vld [vmem:[%s6 + $0x8] sm:$0xff]
      %v335 = vrot.slane %v333, 4
      %v336 = vadd.f32 %v333, %v335
      %v337 = vrot.slane %v336, 2
      %v338 = vadd.f32 %v336, %v337
      %v339 = vrot.slane %v338, 1
      %v340 = vadd.f32 %v338, %v339
      %v341 = vrot.slane %v334, 4
      %v342 = vadd.f32 %v334, %v341
      %v343 = vrot.slane %v342, 2
      %v344 = vadd.f32 %v342, %v343
      %v345 = vrot.slane %v344, 1
      %v346 = vadd.f32 %v344, %v345
      %v347 = vmul.f32 %v333, %v333
      %v348 = vmul.f32 %v334, %v334
      %v349 = vrot.slane %v347, 4
      %v350 = vadd.f32 %v347, %v349
      %v351 = vrot.slane %v350, 2
      %v352 = vadd.f32 %v350, %v351
      %v353 = vrot.slane %v352, 1
      %v354 = vadd.f32 %v352, %v353
      %v355 = vrot.slane %v348, 4
      %v356 = vadd.f32 %v348, %v355
      %v357 = vrot.slane %v356, 2
      %v358 = vadd.f32 %v356, %v357
      %v359 = vrot.slane %v358, 1
      %v360 = vadd.f32 %v358, %v359
      %v361 = vld [vmem:[#allocation4] sm:$0xff]
      %v362 = vld [vmem:[#allocation4 + $0x8] sm:$0xff]
      %v363 = vld [vmem:[#allocation4 + $0x10] sm:$0xff]
      %v364 = vld [vmem:[#allocation4 + $0x18] sm:$0xff]
      %v365 = vld [vmem:[#allocation4 + $0x20] sm:$0xff]
      %v366 = vld [vmem:[#allocation4 + $0x28] sm:$0xff]
      %v367 = vld [vmem:[#allocation4 + $0x30] sm:$0xff]
      %v368 = vld [vmem:[#allocation4 + $0x38] sm:$0xff]
      %v369 = vld [vmem:[#allocation4 + $0x40] sm:$0xff]
      %v370 = vld [vmem:[#allocation4 + $0x48] sm:$0xff]
      %v371 = vld [vmem:[#allocation4 + $0x50] sm:$0xff]
      %v372 = vld [vmem:[#allocation4 + $0x58] sm:$0xff]
      %v373 = vld [vmem:[#allocation4 + $0x60] sm:$0xff]
      %v374 = vld [vmem:[#allocation4 + $0x68] sm:$0xff]
      %v375 = vld [vmem:[#allocation4 + $0x70] sm:$0xff]
      %v376 = vld [vmem:[#allocation4 + $0x78] sm:$0xff]
      %v377 = vld [vmem:[#allocation4 + $0x80] sm:$0xff]
      %v378 = vld [vmem:[#allocation4 + $0x88] sm:$0xff]
      %v379 = vld [vmem:[#allocation4 + $0x90] sm:$0xff]
      %v380 = vld [vmem:[#allocation4 + $0x98] sm:$0xff]
      %v381 = vld [vmem:[#allocation4 + $0xa0] sm:$0xff]
      %v382 = vld [vmem:[#allocation4 + $0xa8] sm:$0xff]
      %v383 = vld [vmem:[#allocation4 + $0xb0] sm:$0xff]
      %v384 = vld [vmem:[#allocation4 + $0xb8] sm:$0xff]
      %v385 = vld [vmem:[#allocation4 + $0xc0] sm:$0xff]
      %v386 = vld [vmem:[#allocation4 + $0xc8] sm:$0xff]
      %v387 = vld [vmem:[#allocation4 + $0xd0] sm:$0xff]
      %v388 = vld [vmem:[#allocation4 + $0xd8] sm:$0xff]
      %v389 = vld [vmem:[#allocation4 + $0xe0] sm:$0xff]
      %v390 = vld [vmem:[#allocation4 + $0xe8] sm:$0xff]
      %v391 = vld [vmem:[#allocation4 + $0xf0] sm:$0xff]
      %v392 = vld [vmem:[#allocation4 + $0xf8] sm:$0xff]
      %v393 = vpack.c.bf16 %v346, %v340
      %v394 = vunpack.c.l.bf16 %v393
      %v395 = vunpack.c.h.bf16 %v393
      %v396 = vsub.f32 %v340, %v394
      %v397 = vsub.f32 %v346, %v395
      %398 = vmatpush.msra.mxu0 %v376
      %399 = vmatpush.msra.mxu0 %v375
      %400 = vmatpush.msra.mxu0 %v374
      %401 = vmatpush.msra.mxu0 %v373
      %402 = vmatpush.msra.mxu0 %v372
      %403 = vmatpush.msra.mxu0 %v371
      %404 = vmatpush.msra.mxu0 %v370
      %405 = vmatpush.msra.mxu0 %v369
      %406 = vmatpush.msra.mxu0 %v368
      %407 = vmatpush.msra.mxu0 %v367
      %408 = vmatpush.msra.mxu0 %v366
      %409 = vmatpush.msra.mxu0 %v365
      %410 = vmatpush.msra.mxu0 %v364
      %411 = vmatpush.msra.mxu0 %v363
      %412 = vmatpush.msra.mxu0 %v362
      %413 = vmatpush.msra.mxu0 %v361
      %414 = vmatmul.f32.gmra.mxu0 %v396
      %v415 = vpop.f32.mrf.mxu0
      %v416 = vadd.f32 0.0, %v415
      %417 = vdwg.mxu0
      %418 = vmatpush.msra.mxu0 %v392
      %419 = vmatpush.msra.mxu0 %v391
      %420 = vmatpush.msra.mxu0 %v390
      %421 = vmatpush.msra.mxu0 %v389
      %422 = vmatpush.msra.mxu0 %v388
      %423 = vmatpush.msra.mxu0 %v387
      %424 = vmatpush.msra.mxu0 %v386
      %425 = vmatpush.msra.mxu0 %v385
      %426 = vmatpush.msra.mxu0 %v384
      %427 = vmatpush.msra.mxu0 %v383
      %428 = vmatpush.msra.mxu0 %v382
      %429 = vmatpush.msra.mxu0 %v381
      %430 = vmatpush.msra.mxu0 %v380
      %431 = vmatpush.msra.mxu0 %v379
      %432 = vmatpush.msra.mxu0 %v378
      %433 = vmatpush.msra.mxu0 %v377
      %434 = vmatmul.f32.gmra.mxu0 %v397
      %v435 = vpop.f32.mrf.mxu0
      %v436 = vadd.f32 %v416, %v435
      %437 = vdwg.mxu0
      %438 = vmatpush.msra.mxu0 %v376
      %439 = vmatpush.msra.mxu0 %v375
      %440 = vmatpush.msra.mxu0 %v374
      %441 = vmatpush.msra.mxu0 %v373
      %442 = vmatpush.msra.mxu0 %v372
      %443 = vmatpush.msra.mxu0 %v371
      %444 = vmatpush.msra.mxu0 %v370
      %445 = vmatpush.msra.mxu0 %v369
      %446 = vmatpush.msra.mxu0 %v368
      %447 = vmatpush.msra.mxu0 %v367
      %448 = vmatpush.msra.mxu0 %v366
      %449 = vmatpush.msra.mxu0 %v365
      %450 = vmatpush.msra.mxu0 %v364
      %451 = vmatpush.msra.mxu0 %v363
      %452 = vmatpush.msra.mxu0 %v362
      %453 = vmatpush.msra.mxu0 %v361
      %454 = vmatmul.f32.gmra.mxu0 %v394
      %v455 = vpop.f32.mrf.mxu0
      %v456 = vadd.f32 %v436, %v455
      %457 = vdwg.mxu0
      %458 = vmatpush.msra.mxu0 %v392
      %459 = vmatpush.msra.mxu0 %v391
      %460 = vmatpush.msra.mxu0 %v390
      %461 = vmatpush.msra.mxu0 %v389
      %462 = vmatpush.msra.mxu0 %v388
      %463 = vmatpush.msra.mxu0 %v387
      %464 = vmatpush.msra.mxu0 %v386
      %465 = vmatpush.msra.mxu0 %v385
      %466 = vmatpush.msra.mxu0 %v384
      %467 = vmatpush.msra.mxu0 %v383
      %468 = vmatpush.msra.mxu0 %v382
      %469 = vmatpush.msra.mxu0 %v381
      %470 = vmatpush.msra.mxu0 %v380
      %471 = vmatpush.msra.mxu0 %v379
      %472 = vmatpush.msra.mxu0 %v378
      %473 = vmatpush.msra.mxu0 %v377
      %474 = vmatmul.f32.gmra.mxu0 %v395
      %v475 = vpop.f32.mrf.mxu0
      %v476 = vadd.f32 %v456, %v475
      %477 = vdwg.mxu0
      %v478 = vpack.c.bf16 %v360, %v354
      %v479 = vunpack.c.l.bf16 %v478
      %v480 = vunpack.c.h.bf16 %v478
      %v481 = vsub.f32 %v354, %v479
      %v482 = vsub.f32 %v360, %v480
      %483 = vmatpush.msra.mxu0 %v376
      %484 = vmatpush.msra.mxu0 %v375
      %485 = vmatpush.msra.mxu0 %v374
      %486 = vmatpush.msra.mxu0 %v373
      %487 = vmatpush.msra.mxu0 %v372
      %488 = vmatpush.msra.mxu0 %v371
      %489 = vmatpush.msra.mxu0 %v370
      %490 = vmatpush.msra.mxu0 %v369
      %491 = vmatpush.msra.mxu0 %v368
      %492 = vmatpush.msra.mxu0 %v367
      %493 = vmatpush.msra.mxu0 %v366
      %494 = vmatpush.msra.mxu0 %v365
      %495 = vmatpush.msra.mxu0 %v364
      %496 = vmatpush.msra.mxu0 %v363
      %497 = vmatpush.msra.mxu0 %v362
      %498 = vmatpush.msra.mxu0 %v361
      %499 = vmatmul.f32.gmra.mxu0 %v481
      %v500 = vpop.f32.mrf.mxu0
      %v501 = vadd.f32 0.0, %v500
      %502 = vdwg.mxu0
      %503 = vmatpush.msra.mxu0 %v392
      %504 = vmatpush.msra.mxu0 %v391
      %505 = vmatpush.msra.mxu0 %v390
      %506 = vmatpush.msra.mxu0 %v389
      %507 = vmatpush.msra.mxu0 %v388
      %508 = vmatpush.msra.mxu0 %v387
      %509 = vmatpush.msra.mxu0 %v386
      %510 = vmatpush.msra.mxu0 %v385
      %511 = vmatpush.msra.mxu0 %v384
      %512 = vmatpush.msra.mxu0 %v383
      %513 = vmatpush.msra.mxu0 %v382
      %514 = vmatpush.msra.mxu0 %v381
      %515 = vmatpush.msra.mxu0 %v380
      %516 = vmatpush.msra.mxu0 %v379
      %517 = vmatpush.msra.mxu0 %v378
      %518 = vmatpush.msra.mxu0 %v377
      %519 = vmatmul.f32.gmra.mxu0 %v482
      %v520 = vpop.f32.mrf.mxu0
      %v521 = vadd.f32 %v501, %v520
      %522 = vdwg.mxu0
      %523 = vmatpush.msra.mxu0 %v376
      %524 = vmatpush.msra.mxu0 %v375
      %525 = vmatpush.msra.mxu0 %v374
      %526 = vmatpush.msra.mxu0 %v373
      %527 = vmatpush.msra.mxu0 %v372
      %528 = vmatpush.msra.mxu0 %v371
      %529 = vmatpush.msra.mxu0 %v370
      %530 = vmatpush.msra.mxu0 %v369
      %531 = vmatpush.msra.mxu0 %v368
      %532 = vmatpush.msra.mxu0 %v367
      %533 = vmatpush.msra.mxu0 %v366
      %534 = vmatpush.msra.mxu0 %v365
      %535 = vmatpush.msra.mxu0 %v364
      %536 = vmatpush.msra.mxu0 %v363
      %537 = vmatpush.msra.mxu0 %v362
      %538 = vmatpush.msra.mxu0 %v361
      %539 = vmatmul.f32.gmra.mxu0 %v479
      %v540 = vpop.f32.mrf.mxu0
      %v541 = vadd.f32 %v521, %v540
      %542 = vdwg.mxu0
      %543 = vmatpush.msra.mxu0 %v392
      %544 = vmatpush.msra.mxu0 %v391
      %545 = vmatpush.msra.mxu0 %v390
      %546 = vmatpush.msra.mxu0 %v389
      %547 = vmatpush.msra.mxu0 %v388
      %548 = vmatpush.msra.mxu0 %v387
      %549 = vmatpush.msra.mxu0 %v386
      %550 = vmatpush.msra.mxu0 %v385
      %551 = vmatpush.msra.mxu0 %v384
      %552 = vmatpush.msra.mxu0 %v383
      %553 = vmatpush.msra.mxu0 %v382
      %554 = vmatpush.msra.mxu0 %v381
      %555 = vmatpush.msra.mxu0 %v380
      %556 = vmatpush.msra.mxu0 %v379
      %557 = vmatpush.msra.mxu0 %v378
      %558 = vmatpush.msra.mxu0 %v377
      %559 = vmatmul.f32.gmra.mxu0 %v480
      %v560 = vpop.f32.mrf.mxu0
      %v561 = vadd.f32 %v541, %v560
      %562 = vdwg.mxu0
      %v563 = vmul.f32 %v476, 0.041666668
      %v564 = vmul.f32 %v561, 0.041666668
      %v565 = vmul.f32 %v563, %v563
      %v566 = vsub.f32 %v564, %v565
      %v567 = vadd.f32 %v566, 1e-05
      %v568 = vrsqrt.pop %v567
      %v569 = vmul.f32 %v568, %v567
      %v570 = vmul.f32 %v569, %v568
      %v571 = vmul.f32 0.5, %v570
      %v572 = vsub.f32 1.5, %v571
      %v573 = vmul.f32 %v568, %v572
      %vm574 = vweird.f32 %v567
      %vm575 = vweird.f32 %v568
      %vm576 = vmor %vm574, %vm575
      %v577 = vsel %vm576, %v568, %v573
      %v578 = vld [vmem:[%s4] sm:$0x1]
      %v579 = vmul.f32 %v577, %v578
      %v580 = vld [vmem:[%s5] sm:$0x1]
      %v581 = vmul.f32 %v563, %v579
      %v582 = vsub.f32 %v580, %v581
      %v583 = vld [vmem:[#allocation6] sm:$0xff]
      %v584 = vld [vmem:[#allocation6 + $0x8] sm:$0xff]
      %v585 = vld [vmem:[#allocation6 + $0x10] sm:$0xff]
      %v586 = vld [vmem:[#allocation6 + $0x18] sm:$0xff]
      %v587 = vld [vmem:[#allocation6 + $0x20] sm:$0xff]
      %v588 = vld [vmem:[#allocation6 + $0x28] sm:$0xff]
      %v589 = vld [vmem:[#allocation6 + $0x30] sm:$0xff]
      %v590 = vld [vmem:[#allocation6 + $0x38] sm:$0xff]
      %v591 = vld [vmem:[#allocation6 + $0x40] sm:$0xff]
      %v592 = vld [vmem:[#allocation6 + $0x48] sm:$0xff]
      %v593 = vld [vmem:[#allocation6 + $0x50] sm:$0xff]
      %v594 = vld [vmem:[#allocation6 + $0x58] sm:$0xff]
      %v595 = vld [vmem:[#allocation6 + $0x60] sm:$0xff]
      %v596 = vld [vmem:[#allocation6 + $0x68] sm:$0xff]
      %v597 = vld [vmem:[#allocation6 + $0x70] sm:$0xff]
      %v598 = vld [vmem:[#allocation6 + $0x78] sm:$0xff]
      %v599 = vld [vmem:[#allocation6 + $0x80] sm:$0xff]
      %v600 = vld [vmem:[#allocation6 + $0x88] sm:$0xff]
      %v601 = vld [vmem:[#allocation6 + $0x90] sm:$0xff]
      %v602 = vld [vmem:[#allocation6 + $0x98] sm:$0xff]
      %v603 = vld [vmem:[#allocation6 + $0xa0] sm:$0xff]
      %v604 = vld [vmem:[#allocation6 + $0xa8] sm:$0xff]
      %v605 = vld [vmem:[#allocation6 + $0xb0] sm:$0xff]
      %v606 = vld [vmem:[#allocation6 + $0xb8] sm:$0xff]
      %v607 = vld [vmem:[#allocation6 + $0xc0] sm:$0xff]
      %v608 = vld [vmem:[#allocation6 + $0xc8] sm:$0xff]
      %v609 = vld [vmem:[#allocation6 + $0xd0] sm:$0xff]
      %v610 = vld [vmem:[#allocation6 + $0xd8] sm:$0xff]
      %v611 = vld [vmem:[#allocation6 + $0xe0] sm:$0xff]
      %v612 = vld [vmem:[#allocation6 + $0xe8] sm:$0xff]
      %v613 = vld [vmem:[#allocation6 + $0xf0] sm:$0xff]
      %v614 = vld [vmem:[#allocation6 + $0xf8] sm:$0xff]
      %v615 = vpack.c.bf16 %v579, %v579
      %v616 = vunpack.c.l.bf16 %v615
      %v617 = vsub.f32 %v579, %v616
      %618 = vmatpush.msra.mxu0 %v613
      %619 = vmatpush.msra.mxu0 %v611
      %620 = vmatpush.msra.mxu0 %v609
      %621 = vmatpush.msra.mxu0 %v607
      %622 = vmatpush.msra.mxu0 %v605
      %623 = vmatpush.msra.mxu0 %v603
      %624 = vmatpush.msra.mxu0 %v601
      %625 = vmatpush.msra.mxu0 %v599
      %626 = vmatpush.msra.mxu0 %v597
      %627 = vmatpush.msra.mxu0 %v595
      %628 = vmatpush.msra.mxu0 %v593
      %629 = vmatpush.msra.mxu0 %v591
      %630 = vmatpush.msra.mxu0 %v589
      %631 = vmatpush.msra.mxu0 %v587
      %632 = vmatpush.msra.mxu0 %v585
      %633 = vmatpush.msra.mxu0 %v583
      %634 = vmatmul.f32.gmra.mxu0 %v617
      %v635 = vpop.f32.mrf.mxu0
      %v636 = vadd.f32 0.0, %v635
      %637 = vdwg.mxu0
      %638 = vmatpush.msra.mxu0 %v614
      %639 = vmatpush.msra.mxu0 %v612
      %640 = vmatpush.msra.mxu0 %v610
      %641 = vmatpush.msra.mxu0 %v608
      %642 = vmatpush.msra.mxu0 %v606
      %643 = vmatpush.msra.mxu0 %v604
      %644 = vmatpush.msra.mxu0 %v602
      %645 = vmatpush.msra.mxu0 %v600
      %646 = vmatpush.msra.mxu0 %v598
      %647 = vmatpush.msra.mxu0 %v596
      %648 = vmatpush.msra.mxu0 %v594
      %649 = vmatpush.msra.mxu0 %v592
      %650 = vmatpush.msra.mxu0 %v590
      %651 = vmatpush.msra.mxu0 %v588
      %652 = vmatpush.msra.mxu0 %v586
      %653 = vmatpush.msra.mxu0 %v584
      %654 = vmatmul.f32.gmra.mxu0 %v617
      %v655 = vpop.f32.mrf.mxu0
      %v656 = vadd.f32 0.0, %v655
      %657 = vdwg.mxu0
      %658 = vmatpush.msra.mxu0 %v613
      %659 = vmatpush.msra.mxu0 %v611
      %660 = vmatpush.msra.mxu0 %v609
      %661 = vmatpush.msra.mxu0 %v607
      %662 = vmatpush.msra.mxu0 %v605
      %663 = vmatpush.msra.mxu0 %v603
      %664 = vmatpush.msra.mxu0 %v601
      %665 = vmatpush.msra.mxu0 %v599
      %666 = vmatpush.msra.mxu0 %v597
      %667 = vmatpush.msra.mxu0 %v595
      %668 = vmatpush.msra.mxu0 %v593
      %669 = vmatpush.msra.mxu0 %v591
      %670 = vmatpush.msra.mxu0 %v589
      %671 = vmatpush.msra.mxu0 %v587
      %672 = vmatpush.msra.mxu0 %v585
      %673 = vmatpush.msra.mxu0 %v583
      %674 = vmatmul.f32.gmra.mxu0 %v616
      %v675 = vpop.f32.mrf.mxu0
      %v676 = vadd.f32 %v636, %v675
      %677 = vdwg.mxu0
      %678 = vmatpush.msra.mxu0 %v614
      %679 = vmatpush.msra.mxu0 %v612
      %680 = vmatpush.msra.mxu0 %v610
      %681 = vmatpush.msra.mxu0 %v608
      %682 = vmatpush.msra.mxu0 %v606
      %683 = vmatpush.msra.mxu0 %v604
      %684 = vmatpush.msra.mxu0 %v602
      %685 = vmatpush.msra.mxu0 %v600
      %686 = vmatpush.msra.mxu0 %v598
      %687 = vmatpush.msra.mxu0 %v596
      %688 = vmatpush.msra.mxu0 %v594
      %689 = vmatpush.msra.mxu0 %v592
      %690 = vmatpush.msra.mxu0 %v590
      %691 = vmatpush.msra.mxu0 %v588
      %692 = vmatpush.msra.mxu0 %v586
      %693 = vmatpush.msra.mxu0 %v584
      %694 = vmatmul.f32.gmra.mxu0 %v616
      %v695 = vpop.f32.mrf.mxu0
      %v696 = vadd.f32 %v656, %v695
      %697 = vdwg.mxu0
      %v698 = vpack.c.bf16 %v582, %v582
      %v699 = vunpack.c.l.bf16 %v698
      %v700 = vsub.f32 %v582, %v699
      %701 = vmatpush.msra.mxu0 %v613
      %702 = vmatpush.msra.mxu0 %v611
      %703 = vmatpush.msra.mxu0 %v609
      %704 = vmatpush.msra.mxu0 %v607
      %705 = vmatpush.msra.mxu0 %v605
      %706 = vmatpush.msra.mxu0 %v603
      %707 = vmatpush.msra.mxu0 %v601
      %708 = vmatpush.msra.mxu0 %v599
      %709 = vmatpush.msra.mxu0 %v597
      %710 = vmatpush.msra.mxu0 %v595
      %711 = vmatpush.msra.mxu0 %v593
      %712 = vmatpush.msra.mxu0 %v591
      %713 = vmatpush.msra.mxu0 %v589
      %714 = vmatpush.msra.mxu0 %v587
      %715 = vmatpush.msra.mxu0 %v585
      %716 = vmatpush.msra.mxu0 %v583
      %717 = vmatmul.f32.gmra.mxu0 %v700
      %v718 = vpop.f32.mrf.mxu0
      %v719 = vadd.f32 0.0, %v718
      %720 = vdwg.mxu0
      %721 = vmatpush.msra.mxu0 %v614
      %722 = vmatpush.msra.mxu0 %v612
      %723 = vmatpush.msra.mxu0 %v610
      %724 = vmatpush.msra.mxu0 %v608
      %725 = vmatpush.msra.mxu0 %v606
      %726 = vmatpush.msra.mxu0 %v604
      %727 = vmatpush.msra.mxu0 %v602
      %728 = vmatpush.msra.mxu0 %v600
      %729 = vmatpush.msra.mxu0 %v598
      %730 = vmatpush.msra.mxu0 %v596
      %731 = vmatpush.msra.mxu0 %v594
      %732 = vmatpush.msra.mxu0 %v592
      %733 = vmatpush.msra.mxu0 %v590
      %734 = vmatpush.msra.mxu0 %v588
      %735 = vmatpush.msra.mxu0 %v586
      %736 = vmatpush.msra.mxu0 %v584
      %737 = vmatmul.f32.gmra.mxu0 %v700
      %v738 = vpop.f32.mrf.mxu0
      %v739 = vadd.f32 0.0, %v738
      %740 = vdwg.mxu0
      %741 = vmatpush.msra.mxu0 %v613
      %742 = vmatpush.msra.mxu0 %v611
      %743 = vmatpush.msra.mxu0 %v609
      %744 = vmatpush.msra.mxu0 %v607
      %745 = vmatpush.msra.mxu0 %v605
      %746 = vmatpush.msra.mxu0 %v603
      %747 = vmatpush.msra.mxu0 %v601
      %748 = vmatpush.msra.mxu0 %v599
      %749 = vmatpush.msra.mxu0 %v597
      %750 = vmatpush.msra.mxu0 %v595
      %751 = vmatpush.msra.mxu0 %v593
      %752 = vmatpush.msra.mxu0 %v591
      %753 = vmatpush.msra.mxu0 %v589
      %754 = vmatpush.msra.mxu0 %v587
      %755 = vmatpush.msra.mxu0 %v585
      %756 = vmatpush.msra.mxu0 %v583
      %757 = vmatmul.f32.gmra.mxu0 %v699
      %v758 = vpop.f32.mrf.mxu0
      %v759 = vadd.f32 %v719, %v758
      %760 = vdwg.mxu0
      %761 = vmatpush.msra.mxu0 %v614
      %762 = vmatpush.msra.mxu0 %v612
      %763 = vmatpush.msra.mxu0 %v610
      %764 = vmatpush.msra.mxu0 %v608
      %765 = vmatpush.msra.mxu0 %v606
      %766 = vmatpush.msra.mxu0 %v604
      %767 = vmatpush.msra.mxu0 %v602
      %768 = vmatpush.msra.mxu0 %v600
      %769 = vmatpush.msra.mxu0 %v598
      %770 = vmatpush.msra.mxu0 %v596
      %771 = vmatpush.msra.mxu0 %v594
      %772 = vmatpush.msra.mxu0 %v592
      %773 = vmatpush.msra.mxu0 %v590
      %774 = vmatpush.msra.mxu0 %v588
      %775 = vmatpush.msra.mxu0 %v586
      %776 = vmatpush.msra.mxu0 %v584
      %777 = vmatmul.f32.gmra.mxu0 %v699
      %v778 = vpop.f32.mrf.mxu0
      %v779 = vadd.f32 %v739, %v778
      %780 = vdwg.mxu0
      %v781 = vperm.slane %v676, 0
      %v782 = vperm.slane %v696, 0
      %v783 = vmul.f32 %v333, %v781
      %v784 = vmul.f32 %v334, %v782
      %v785 = vperm.slane %v759, 0
      %v786 = vperm.slane %v779, 0
      %v787 = vadd.f32 %v783, %v785
      %v788 = vadd.f32 %v784, %v786
      %v789 = vmax.f32 %v787, 0.0
      %v790 = vmax.f32 %v788, 0.0
      %v791 = vlaneseq
      %v792 = vshrl.u32 %v791, 7
      %vm793 = vcmp.lt.s32.totalorder %v792, 2
      %v794 = vsel %vm793, %v789, 0.0
      %v795 = vsel %vm793, %v790, 0.0
      %796 = vst [vmem:[%s6] sm:$0xff] %v794
      %797 = vst [vmem:[%s6 + $0x8] sm:$0xff] %v795
    $region45: #{fwd.7} parent=1 // pred_fallthru
      _
    // Predicated region
    $region46: #{fwd.7} parent=1 // pred_check
      _
    $region47: #{fwd.7} parent=1 // pred_check_branch
      %799 = sbr.rel (0) target = $region49
    $region48: #{fwd.7} parent=1 // pred_region
      _
    $region49: #{fwd.7} parent=1 // pred_fallthru
      _
    // Predicated region
    $region50: #{fwd.7} parent=1 // pred_check
      _
    $region51: #{fwd.7} parent=1 // pred_check_branch
      %801 = sbr.rel (0) target = $region53
    $region52: #{fwd.7} parent=1 // pred_region
      _
    $region53: #{fwd.7} parent=1 // pred_fallthru
      _
    %802 = vsyncpa [#allocation3], 1
    %803 = vsyncpa [#allocation5], 1

// kernel: fwd.8
$region0: #{fwd.8}
  #allocation0 [shape = 'u32[]', space=smem, size = 0x4, offset = 0x4, fixed_abs, tag = 'smem constant byte address 0x4 - core index']
  #allocation1 [shape = 'u32[72,128]{1,0:T(1,128)}', space=vmem, size = 0x9000, scoped, tag = 'internal scratch']
  %s0 = inlined_call_operand.vmem [shape: f32[8,256], index: 0, kind: input, shape index: {}]
  %s1 = inlined_call_operand.hbm [shape: bf16[256,256], index: 1, kind: input, shape index: {}]
  %s2 = inlined_call_operand.hbm [shape: f32[256,128], index: 2, kind: input, shape index: {}]
  %s3 = inlined_call_operand.hbm [shape: f32[128,256], index: 3, kind: input, shape index: {}]
  %s4 = inlined_call_operand.vmem [shape: f32[1,128], index: 4, kind: input, shape index: {}]
  %s5 = inlined_call_operand.vmem [shape: f32[1,128], index: 5, kind: input, shape index: {}]
  %s6 = inlined_call_operand.vmem [shape: f32[8,256], index: 6, kind: output, shape index: {}]
  %s7 = sld [smem:[#allocation0]]
  $region54: #{fwd.8} parent=0
    _
  %s9 = ssub.s32 1, %s7
  %s10 = scalar_select 0, %s9, %s7
  $region1: #{fwd.8} parent=0
    #allocation2 [shape = 'u8[131072]{0}', space=vmem, size = 0x20000, scoped, tag = 'input window, operand 1, single buffered']
    #allocation3 [shape = 's32[1]{0}', space=sflag, size = 0x4, scoped, tag = 'scoped memory for fwd.8']
    #allocation4 [shape = 'u8[131072]{0}', space=vmem, size = 0x20000, scoped, tag = 'input window, operand 2, single buffered']
    #allocation5 [shape = 's32[1]{0}', space=sflag, size = 0x4, scoped, tag = 'scoped memory for fwd.8']
    #allocation6 [shape = 'u8[131072]{0}', space=vmem, size = 0x20000, scoped, tag = 'input window, operand 3, single buffered']
    %11 = vsyncpa [#allocation3], 0
    %12 = vsyncpa [#allocation5], 0
    // Predicated region
    $region2: #{fwd.8} parent=1 // pred_check
      _
    $region3: #{fwd.8} parent=1 // pred_check_branch
      %14 = sbr.rel (0) target = $region5
    $region4: #{fwd.8} parent=1 // pred_region
      _
    $region5: #{fwd.8} parent=1 // pred_fallthru
      _
    // Predicated region
    $region6: #{fwd.8} parent=1 // pred_check
      _
    $region7: #{fwd.8} parent=1 // pred_check_branch
      %16 = sbr.rel (0) target = $region9
    $region8: #{fwd.8} parent=1 // pred_region
      %18 = vsyncadd [#allocation3], 0
      %s19 = sshll.u32 %s1, 4
      %s20 = int_to_ptr.hbm [resolvable:$true] %s19
      %s21 = sshll.u32 [#allocation2], 4
      %s22 = int_to_ptr.vmem [resolvable:$true] %s21
      %27 = dma.hbm_to_vmem [thread:$0]  %s20, 4096, %s22, [#allocation3], 128, 128, 8
    $region9: #{fwd.8} parent=1 // pred_fallthru
      _
    // Predicated region
    $region10: #{fwd.8} parent=1 // pred_check
      _
    $region11: #{fwd.8} parent=1 // pred_check_branch
      %29 = sbr.rel (0) target = $region13
    $region12: #{fwd.8} parent=1 // pred_region
      %31 = vsyncadd [#allocation5], 0
      %s32 = sshll.u32 %s2, 4
      %s33 = int_to_ptr.hbm [resolvable:$true] %s32
      %s34 = sshll.u32 [#allocation4], 4
      %s35 = int_to_ptr.vmem [resolvable:$true] %s34
      %40 = dma.hbm_to_vmem [thread:$0]  %s33, 4096, %s35, [#allocation5], 128, 128, 8
    $region13: #{fwd.8} parent=1 // pred_fallthru
      _
    // Predicated region
    $region14: #{fwd.8} parent=1 // pred_check
      _
    $region15: #{fwd.8} parent=1 // pred_check_branch
      %42 = sbr.rel (0) target = $region17
    $region16: #{fwd.8} parent=1 // pred_region
      %44 = vsyncadd [#allocation5], 0
      %s45 = sshll.u32 %s3, 4
      %s46 = int_to_ptr.hbm [resolvable:$true] %s45
      %s47 = sshll.u32 [#allocation6], 4
      %s48 = int_to_ptr.vmem [resolvable:$true] %s47
      %53 = dma.hbm_to_vmem [thread:$0]  %s46, 4096, %s48, [#allocation5], 256, 256, 16
    $region17: #{fwd.8} parent=1 // pred_fallthru
      _
    // Predicated region
    $region18: #{fwd.8} parent=1 // pred_check
      _
    $region19: #{fwd.8} parent=1 // pred_check_branch
      %55 = sbr.rel (0) target = $region21
    $region20: #{fwd.8} parent=1 // pred_region
      _
    $region21: #{fwd.8} parent=1 // pred_fallthru
      _
    // Predicated region
    $region22: #{fwd.8} parent=1 // pred_check
      _
    $region23: #{fwd.8} parent=1 // pred_check_branch
      %57 = sbr.rel (0) target = $region25
    $region24: #{fwd.8} parent=1 // pred_region
      _
    $region25: #{fwd.8} parent=1 // pred_fallthru
      _
    // Predicated region
    $region26: #{fwd.8} parent=1 // pred_check
      _
    $region27: #{fwd.8} parent=1 // pred_check_branch
      %59 = sbr.rel (0) target = $region29
    $region28: #{fwd.8} parent=1 // pred_region
      %61 = dma.done [#allocation3], 4096
    $region29: #{fwd.8} parent=1 // pred_fallthru
      _
    // Predicated region
    $region30: #{fwd.8} parent=1 // pred_check
      _
    $region31: #{fwd.8} parent=1 // pred_check_branch
      %63 = sbr.rel (0) target = $region33
    $region32: #{fwd.8} parent=1 // pred_region
      %65 = dma.done [#allocation5], 4096
    $region33: #{fwd.8} parent=1 // pred_fallthru
      _
    // Predicated region
    $region34: #{fwd.8} parent=1 // pred_check
      _
    $region35: #{fwd.8} parent=1 // pred_check_branch
      %67 = sbr.rel (0) target = $region37
    $region36: #{fwd.8} parent=1 // pred_region
      %69 = dma.done [#allocation5], 4096
    $region37: #{fwd.8} parent=1 // pred_fallthru
      _
    %p70 = scmp.eq.s32.totalorder 0, 0
    // Predicated region
    $region38: #{fwd.8} parent=1 // pred_check
      %p71 = pneg %p70
    $region39: #{fwd.8} parent=1 // pred_check_branch
      %73 = sbr.rel (%p71) target = $region41
    $region40: #{fwd.8} parent=1 // pred_region
      %74 = vst [vmem:[%s6] sm:$0xff] 0.0
      %75 = vst [vmem:[%s6 + $0x8] sm:$0xff] 0.0
    $region41: #{fwd.8} parent=1 // pred_fallthru
      _
    %v76 = vld [vmem:[%s6] sm:$0xff]
    %v77 = vld [vmem:[%s6 + $0x8] sm:$0xff]
    %v78 = vld [vmem:[%s0] sm:$0xff]
    %v79 = vld [vmem:[%s0 + $0x8] sm:$0xff]
    %v80 = vpack.c.bf16 %v78, %v78
    %v81 = vpack.c.bf16 %v79, %v79
    %v82 = vld [vmem:[#allocation2] sm:$0xff]
    %v83 = vld [vmem:[#allocation2 + $0x8] sm:$0xff]
    %v84 = vld [vmem:[#allocation2 + $0x10] sm:$0xff]
    %v85 = vld [vmem:[#allocation2 + $0x18] sm:$0xff]
    %v86 = vld [vmem:[#allocation2 + $0x20] sm:$0xff]
    %v87 = vld [vmem:[#allocation2 + $0x28] sm:$0xff]
    %v88 = vld [vmem:[#allocation2 + $0x30] sm:$0xff]
    %v89 = vld [vmem:[#allocation2 + $0x38] sm:$0xff]
    %v90 = vld [vmem:[#allocation2 + $0x40] sm:$0xff]
    %v91 = vld [vmem:[#allocation2 + $0x48] sm:$0xff]
    %v92 = vld [vmem:[#allocation2 + $0x50] sm:$0xff]
    %v93 = vld [vmem:[#allocation2 + $0x58] sm:$0xff]
    %v94 = vld [vmem:[#allocation2 + $0x60] sm:$0xff]
    %v95 = vld [vmem:[#allocation2 + $0x68] sm:$0xff]
    %v96 = vld [vmem:[#allocation2 + $0x70] sm:$0xff]
    %v97 = vld [vmem:[#allocation2 + $0x78] sm:$0xff]
    %v98 = vld [vmem:[#allocation2 + $0x80] sm:$0xff]
    %v99 = vld [vmem:[#allocation2 + $0x88] sm:$0xff]
    %v100 = vld [vmem:[#allocation2 + $0x90] sm:$0xff]
    %v101 = vld [vmem:[#allocation2 + $0x98] sm:$0xff]
    %v102 = vld [vmem:[#allocation2 + $0xa0] sm:$0xff]
    %v103 = vld [vmem:[#allocation2 + $0xa8] sm:$0xff]
    %v104 = vld [vmem:[#allocation2 + $0xb0] sm:$0xff]
    %v105 = vld [vmem:[#allocation2 + $0xb8] sm:$0xff]
    %v106 = vld [vmem:[#allocation2 + $0xc0] sm:$0xff]
    %v107 = vld [vmem:[#allocation2 + $0xc8] sm:$0xff]
    %v108 = vld [vmem:[#allocation2 + $0xd0] sm:$0xff]
    %v109 = vld [vmem:[#allocation2 + $0xd8] sm:$0xff]
    %v110 = vld [vmem:[#allocation2 + $0xe0] sm:$0xff]
    %v111 = vld [vmem:[#allocation2 + $0xe8] sm:$0xff]
    %v112 = vld [vmem:[#allocation2 + $0xf0] sm:$0xff]
    %v113 = vld [vmem:[#allocation2 + $0xf8] sm:$0xff]
    %v146 = vunpack.c.l.b16 %v82
    %v147 = vunpack.c.h.b16 %v82
    %v148 = vunpack.c.l.b16 %v83
    %v149 = vunpack.c.h.b16 %v83
    %v150 = vunpack.c.l.b16 %v84
    %v151 = vunpack.c.h.b16 %v84
    %v152 = vunpack.c.l.b16 %v85
    %v153 = vunpack.c.h.b16 %v85
    %v154 = vunpack.c.l.b16 %v86
    %v155 = vunpack.c.h.b16 %v86
    %v156 = vunpack.c.l.b16 %v87
    %v157 = vunpack.c.h.b16 %v87
    %v158 = vunpack.c.l.b16 %v88
    %v159 = vunpack.c.h.b16 %v88
    %v160 = vunpack.c.l.b16 %v89
    %v161 = vunpack.c.h.b16 %v89
    %v162 = vunpack.c.l.b16 %v90
    %v163 = vunpack.c.h.b16 %v90
    %v164 = vunpack.c.l.b16 %v91
    %v165 = vunpack.c.h.b16 %v91
    %v166 = vunpack.c.l.b16 %v92
    %v167 = vunpack.c.h.b16 %v92
    %v168 = vunpack.c.l.b16 %v93
    %v169 = vunpack.c.h.b16 %v93
    %v170 = vunpack.c.l.b16 %v94
    %v171 = vunpack.c.h.b16 %v94
    %v172 = vunpack.c.l.b16 %v95
    %v173 = vunpack.c.h.b16 %v95
    %v174 = vunpack.c.l.b16 %v96
    %v175 = vunpack.c.h.b16 %v96
    %v176 = vunpack.c.l.b16 %v97
    %v177 = vunpack.c.h.b16 %v97
    %v178 = vunpack.c.l.b16 %v98
    %v179 = vunpack.c.h.b16 %v98
    %v180 = vunpack.c.l.b16 %v99
    %v181 = vunpack.c.h.b16 %v99
    %v182 = vunpack.c.l.b16 %v100
    %v183 = vunpack.c.h.b16 %v100
    %v184 = vunpack.c.l.b16 %v101
    %v185 = vunpack.c.h.b16 %v101
    %v186 = vunpack.c.l.b16 %v102
    %v187 = vunpack.c.h.b16 %v102
    %v188 = vunpack.c.l.b16 %v103
    %v189 = vunpack.c.h.b16 %v103
    %v190 = vunpack.c.l.b16 %v104
    %v191 = vunpack.c.h.b16 %v104
    %v192 = vunpack.c.l.b16 %v105
    %v193 = vunpack.c.h.b16 %v105
    %v194 = vunpack.c.l.b16 %v106
    %v195 = vunpack.c.h.b16 %v106
    %v196 = vunpack.c.l.b16 %v107
    %v197 = vunpack.c.h.b16 %v107
    %v198 = vunpack.c.l.b16 %v108
    %v199 = vunpack.c.h.b16 %v108
    %v200 = vunpack.c.l.b16 %v109
    %v201 = vunpack.c.h.b16 %v109
    %v202 = vunpack.c.l.b16 %v110
    %v203 = vunpack.c.h.b16 %v110
    %v204 = vunpack.c.l.b16 %v111
    %v205 = vunpack.c.h.b16 %v111
    %v206 = vunpack.c.l.b16 %v112
    %v207 = vunpack.c.h.b16 %v112
    %v208 = vunpack.c.l.b16 %v113
    %v209 = vunpack.c.h.b16 %v113
    %v210 = vpack.c.b16 %v148, %v146
    %v211 = vpack.c.b16 %v149, %v147
    %v212 = vpack.c.b16 %v152, %v150
    %v213 = vpack.c.b16 %v153, %v151
    %v214 = vpack.c.b16 %v156, %v154
    %v215 = vpack.c.b16 %v157, %v155
    %v216 = vpack.c.b16 %v160, %v158
    %v217 = vpack.c.b16 %v161, %v159
    %v218 = vpack.c.b16 %v164, %v162
    %v219 = vpack.c.b16 %v165, %v163
    %v220 = vpack.c.b16 %v168, %v166
    %v221 = vpack.c.b16 %v169, %v167
    %v222 = vpack.c.b16 %v172, %v170
    %v223 = vpack.c.b16 %v173, %v171
    %v224 = vpack.c.b16 %v176, %v174
    %v225 = vpack.c.b16 %v177, %v175
    %v226 = vpack.c.b16 %v180, %v178
    %v227 = vpack.c.b16 %v181, %v179
    %v228 = vpack.c.b16 %v184, %v182
    %v229 = vpack.c.b16 %v185, %v183
    %v230 = vpack.c.b16 %v188, %v186
    %v231 = vpack.c.b16 %v189, %v187
    %v232 = vpack.c.b16 %v192, %v190
    %v233 = vpack.c.b16 %v193, %v191
    %v234 = vpack.c.b16 %v196, %v194
    %v235 = vpack.c.b16 %v197, %v195
    %v236 = vpack.c.b16 %v200, %v198
    %v237 = vpack.c.b16 %v201, %v199
    %v238 = vpack.c.b16 %v204, %v202
    %v239 = vpack.c.b16 %v205, %v203
    %v240 = vpack.c.b16 %v208, %v206
    %v241 = vpack.c.b16 %v209, %v207
    %274 = vmatpush.bf16.msra.mxu0 %v224
    %275 = vmatpush.bf16.msra.mxu0 %v222
    %276 = vmatpush.bf16.msra.mxu0 %v220
    %277 = vmatpush.bf16.msra.mxu0 %v218
    %278 = vmatpush.bf16.msra.mxu0 %v216
    %279 = vmatpush.bf16.msra.mxu0 %v214
    %280 = vmatpush.bf16.msra.mxu0 %v212
    %281 = vmatpush.bf16.msra.mxu0 %v210
    %282 = vmatmul.bf16.gmra.mxu0 %v80
    %v283 = vpop.f32.mrf.mxu0
    %v284 = vadd.f32 0.0, %v283
    %v285 = vpop.f32.mrf.mxu0
    %286 = vdwg.mxu0
    %287 = vmatpush.bf16.msra.mxu0 %v240
    %288 = vmatpush.bf16.msra.mxu0 %v238
    %289 = vmatpush.bf16.msra.mxu0 %v236
    %290 = vmatpush.bf16.msra.mxu0 %v234
    %291 = vmatpush.bf16.msra.mxu0 %v232
    %292 = vmatpush.bf16.msra.mxu0 %v230
    %293 = vmatpush.bf16.msra.mxu0 %v228
    %294 = vmatpush.bf16.msra.mxu0 %v226
    %295 = vmatmul.bf16.gmra.mxu0 %v81
    %v296 = vpop.f32.mrf.mxu0
    %v297 = vadd.f32 %v284, %v296
    %v298 = vpop.f32.mrf.mxu0
    %299 = vdwg.mxu0
    %300 = vmatpush.bf16.msra.mxu0 %v225
    %301 = vmatpush.bf16.msra.mxu0 %v223
    %302 = vmatpush.bf16.msra.mxu0 %v221
    %303 = vmatpush.bf16.msra.mxu0 %v219
    %304 = vmatpush.bf16.msra.mxu0 %v217
    %305 = vmatpush.bf16.msra.mxu0 %v215
    %306 = vmatpush.bf16.msra.mxu0 %v213
    %307 = vmatpush.bf16.msra.mxu0 %v211
    %308 = vmatmul.bf16.gmra.mxu0 %v80
    %v309 = vpop.f32.mrf.mxu0
    %v310 = vadd.f32 0.0, %v309
    %v311 = vpop.f32.mrf.mxu0
    %312 = vdwg.mxu0
    %313 = vmatpush.bf16.msra.mxu0 %v241
    %314 = vmatpush.bf16.msra.mxu0 %v239
    %315 = vmatpush.bf16.msra.mxu0 %v237
    %316 = vmatpush.bf16.msra.mxu0 %v235
    %317 = vmatpush.bf16.msra.mxu0 %v233
    %318 = vmatpush.bf16.msra.mxu0 %v231
    %319 = vmatpush.bf16.msra.mxu0 %v229
    %320 = vmatpush.bf16.msra.mxu0 %v227
    %321 = vmatmul.bf16.gmra.mxu0 %v81
    %v322 = vpop.f32.mrf.mxu0
    %v323 = vadd.f32 %v310, %v322
    %v324 = vpop.f32.mrf.mxu0
    %325 = vdwg.mxu0
    %v326 = vadd.f32 %v76, %v297
    %v327 = vadd.f32 %v77, %v323
    %328 = vst [vmem:[%s6] sm:$0xff] %v326
    %329 = vst [vmem:[%s6 + $0x8] sm:$0xff] %v327
    // Predicated region
    $region42: #{fwd.8} parent=1 // pred_check
      %p330 = pneg %p70
    $region43: #{fwd.8} parent=1 // pred_check_branch
      %332 = sbr.rel (%p330) target = $region45
    $region44: #{fwd.8} parent=1 // pred_region
      %v333 = vld [vmem:[%s6] sm:$0xff]
      %v334 = vld [vmem:[%s6 + $0x8] sm:$0xff]
      %v335 = vrot.slane %v333, 4
      %v336 = vadd.f32 %v333, %v335
      %v337 = vrot.slane %v336, 2
      %v338 = vadd.f32 %v336, %v337
      %v339 = vrot.slane %v338, 1
      %v340 = vadd.f32 %v338, %v339
      %v341 = vrot.slane %v334, 4
      %v342 = vadd.f32 %v334, %v341
      %v343 = vrot.slane %v342, 2
      %v344 = vadd.f32 %v342, %v343
      %v345 = vrot.slane %v344, 1
      %v346 = vadd.f32 %v344, %v345
      %v347 = vmul.f32 %v333, %v333
      %v348 = vmul.f32 %v334, %v334
      %v349 = vrot.slane %v347, 4
      %v350 = vadd.f32 %v347, %v349
      %v351 = vrot.slane %v350, 2
      %v352 = vadd.f32 %v350, %v351
      %v353 = vrot.slane %v352, 1
      %v354 = vadd.f32 %v352, %v353
      %v355 = vrot.slane %v348, 4
      %v356 = vadd.f32 %v348, %v355
      %v357 = vrot.slane %v356, 2
      %v358 = vadd.f32 %v356, %v357
      %v359 = vrot.slane %v358, 1
      %v360 = vadd.f32 %v358, %v359
      %v361 = vld [vmem:[#allocation4] sm:$0xff]
      %v362 = vld [vmem:[#allocation4 + $0x8] sm:$0xff]
      %v363 = vld [vmem:[#allocation4 + $0x10] sm:$0xff]
      %v364 = vld [vmem:[#allocation4 + $0x18] sm:$0xff]
      %v365 = vld [vmem:[#allocation4 + $0x20] sm:$0xff]
      %v366 = vld [vmem:[#allocation4 + $0x28] sm:$0xff]
      %v367 = vld [vmem:[#allocation4 + $0x30] sm:$0xff]
      %v368 = vld [vmem:[#allocation4 + $0x38] sm:$0xff]
      %v369 = vld [vmem:[#allocation4 + $0x40] sm:$0xff]
      %v370 = vld [vmem:[#allocation4 + $0x48] sm:$0xff]
      %v371 = vld [vmem:[#allocation4 + $0x50] sm:$0xff]
      %v372 = vld [vmem:[#allocation4 + $0x58] sm:$0xff]
      %v373 = vld [vmem:[#allocation4 + $0x60] sm:$0xff]
      %v374 = vld [vmem:[#allocation4 + $0x68] sm:$0xff]
      %v375 = vld [vmem:[#allocation4 + $0x70] sm:$0xff]
      %v376 = vld [vmem:[#allocation4 + $0x78] sm:$0xff]
      %v377 = vld [vmem:[#allocation4 + $0x80] sm:$0xff]
      %v378 = vld [vmem:[#allocation4 + $0x88] sm:$0xff]
      %v379 = vld [vmem:[#allocation4 + $0x90] sm:$0xff]
      %v380 = vld [vmem:[#allocation4 + $0x98] sm:$0xff]
      %v381 = vld [vmem:[#allocation4 + $0xa0] sm:$0xff]
      %v382 = vld [vmem:[#allocation4 + $0xa8] sm:$0xff]
      %v383 = vld [vmem:[#allocation4 + $0xb0] sm:$0xff]
      %v384 = vld [vmem:[#allocation4 + $0xb8] sm:$0xff]
      %v385 = vld [vmem:[#allocation4 + $0xc0] sm:$0xff]
      %v386 = vld [vmem:[#allocation4 + $0xc8] sm:$0xff]
      %v387 = vld [vmem:[#allocation4 + $0xd0] sm:$0xff]
      %v388 = vld [vmem:[#allocation4 + $0xd8] sm:$0xff]
      %v389 = vld [vmem:[#allocation4 + $0xe0] sm:$0xff]
      %v390 = vld [vmem:[#allocation4 + $0xe8] sm:$0xff]
      %v391 = vld [vmem:[#allocation4 + $0xf0] sm:$0xff]
      %v392 = vld [vmem:[#allocation4 + $0xf8] sm:$0xff]
      %v393 = vpack.c.bf16 %v346, %v340
      %v394 = vunpack.c.l.bf16 %v393
      %v395 = vunpack.c.h.bf16 %v393
      %v396 = vsub.f32 %v340, %v394
      %v397 = vsub.f32 %v346, %v395
      %398 = vmatpush.msra.mxu0 %v376
      %399 = vmatpush.msra.mxu0 %v375
      %400 = vmatpush.msra.mxu0 %v374
      %401 = vmatpush.msra.mxu0 %v373
      %402 = vmatpush.msra.mxu0 %v372
      %403 = vmatpush.msra.mxu0 %v371
      %404 = vmatpush.msra.mxu0 %v370
      %405 = vmatpush.msra.mxu0 %v369
      %406 = vmatpush.msra.mxu0 %v368
      %407 = vmatpush.msra.mxu0 %v367
      %408 = vmatpush.msra.mxu0 %v366
      %409 = vmatpush.msra.mxu0 %v365
      %410 = vmatpush.msra.mxu0 %v364
      %411 = vmatpush.msra.mxu0 %v363
      %412 = vmatpush.msra.mxu0 %v362
      %413 = vmatpush.msra.mxu0 %v361
      %414 = vmatmul.f32.gmra.mxu0 %v396
      %v415 = vpop.f32.mrf.mxu0
      %v416 = vadd.f32 0.0, %v415
      %417 = vdwg.mxu0
      %418 = vmatpush.msra.mxu0 %v392
      %419 = vmatpush.msra.mxu0 %v391
      %420 = vmatpush.msra.mxu0 %v390
      %421 = vmatpush.msra.mxu0 %v389
      %422 = vmatpush.msra.mxu0 %v388
      %423 = vmatpush.msra.mxu0 %v387
      %424 = vmatpush.msra.mxu0 %v386
      %425 = vmatpush.msra.mxu0 %v385
      %426 = vmatpush.msra.mxu0 %v384
      %427 = vmatpush.msra.mxu0 %v383
      %428 = vmatpush.msra.mxu0 %v382
      %429 = vmatpush.msra.mxu0 %v381
      %430 = vmatpush.msra.mxu0 %v380
      %431 = vmatpush.msra.mxu0 %v379
      %432 = vmatpush.msra.mxu0 %v378
      %433 = vmatpush.msra.mxu0 %v377
      %434 = vmatmul.f32.gmra.mxu0 %v397
      %v435 = vpop.f32.mrf.mxu0
      %v436 = vadd.f32 %v416, %v435
      %437 = vdwg.mxu0
      %438 = vmatpush.msra.mxu0 %v376
      %439 = vmatpush.msra.mxu0 %v375
      %440 = vmatpush.msra.mxu0 %v374
      %441 = vmatpush.msra.mxu0 %v373
      %442 = vmatpush.msra.mxu0 %v372
      %443 = vmatpush.msra.mxu0 %v371
      %444 = vmatpush.msra.mxu0 %v370
      %445 = vmatpush.msra.mxu0 %v369
      %446 = vmatpush.msra.mxu0 %v368
      %447 = vmatpush.msra.mxu0 %v367
      %448 = vmatpush.msra.mxu0 %v366
      %449 = vmatpush.msra.mxu0 %v365
      %450 = vmatpush.msra.mxu0 %v364
      %451 = vmatpush.msra.mxu0 %v363
      %452 = vmatpush.msra.mxu0 %v362
      %453 = vmatpush.msra.mxu0 %v361
      %454 = vmatmul.f32.gmra.mxu0 %v394
      %v455 = vpop.f32.mrf.mxu0
      %v456 = vadd.f32 %v436, %v455
      %457 = vdwg.mxu0
      %458 = vmatpush.msra.mxu0 %v392
      %459 = vmatpush.msra.mxu0 %v391
      %460 = vmatpush.msra.mxu0 %v390
      %461 = vmatpush.msra.mxu0 %v389
      %462 = vmatpush.msra.mxu0 %v388
      %463 = vmatpush.msra.mxu0 %v387
      %464 = vmatpush.msra.mxu0 %v386
      %465 = vmatpush.msra.mxu0 %v385
      %466 = vmatpush.msra.mxu0 %v384
      %467 = vmatpush.msra.mxu0 %v383
      %468 = vmatpush.msra.mxu0 %v382
      %469 = vmatpush.msra.mxu0 %v381
      %470 = vmatpush.msra.mxu0 %v380
      %471 = vmatpush.msra.mxu0 %v379
      %472 = vmatpush.msra.mxu0 %v378
      %473 = vmatpush.msra.mxu0 %v377
      %474 = vmatmul.f32.gmra.mxu0 %v395
      %v475 = vpop.f32.mrf.mxu0
      %v476 = vadd.f32 %v456, %v475
      %477 = vdwg.mxu0
      %v478 = vpack.c.bf16 %v360, %v354
      %v479 = vunpack.c.l.bf16 %v478
      %v480 = vunpack.c.h.bf16 %v478
      %v481 = vsub.f32 %v354, %v479
      %v482 = vsub.f32 %v360, %v480
      %483 = vmatpush.msra.mxu0 %v376
      %484 = vmatpush.msra.mxu0 %v375
      %485 = vmatpush.msra.mxu0 %v374
      %486 = vmatpush.msra.mxu0 %v373
      %487 = vmatpush.msra.mxu0 %v372
      %488 = vmatpush.msra.mxu0 %v371
      %489 = vmatpush.msra.mxu0 %v370
      %490 = vmatpush.msra.mxu0 %v369
      %491 = vmatpush.msra.mxu0 %v368
      %492 = vmatpush.msra.mxu0 %v367
      %493 = vmatpush.msra.mxu0 %v366
      %494 = vmatpush.msra.mxu0 %v365
      %495 = vmatpush.msra.mxu0 %v364
      %496 = vmatpush.msra.mxu0 %v363
      %497 = vmatpush.msra.mxu0 %v362
      %498 = vmatpush.msra.mxu0 %v361
      %499 = vmatmul.f32.gmra.mxu0 %v481
      %v500 = vpop.f32.mrf.mxu0
      %v501 = vadd.f32 0.0, %v500
      %502 = vdwg.mxu0
      %503 = vmatpush.msra.mxu0 %v392
      %504 = vmatpush.msra.mxu0 %v391
      %505 = vmatpush.msra.mxu0 %v390
      %506 = vmatpush.msra.mxu0 %v389
      %507 = vmatpush.msra.mxu0 %v388
      %508 = vmatpush.msra.mxu0 %v387
      %509 = vmatpush.msra.mxu0 %v386
      %510 = vmatpush.msra.mxu0 %v385
      %511 = vmatpush.msra.mxu0 %v384
      %512 = vmatpush.msra.mxu0 %v383
      %513 = vmatpush.msra.mxu0 %v382
      %514 = vmatpush.msra.mxu0 %v381
      %515 = vmatpush.msra.mxu0 %v380
      %516 = vmatpush.msra.mxu0 %v379
      %517 = vmatpush.msra.mxu0 %v378
      %518 = vmatpush.msra.mxu0 %v377
      %519 = vmatmul.f32.gmra.mxu0 %v482
      %v520 = vpop.f32.mrf.mxu0
      %v521 = vadd.f32 %v501, %v520
      %522 = vdwg.mxu0
      %523 = vmatpush.msra.mxu0 %v376
      %524 = vmatpush.msra.mxu0 %v375
      %525 = vmatpush.msra.mxu0 %v374
      %526 = vmatpush.msra.mxu0 %v373
      %527 = vmatpush.msra.mxu0 %v372
      %528 = vmatpush.msra.mxu0 %v371
      %529 = vmatpush.msra.mxu0 %v370
      %530 = vmatpush.msra.mxu0 %v369
      %531 = vmatpush.msra.mxu0 %v368
      %532 = vmatpush.msra.mxu0 %v367
      %533 = vmatpush.msra.mxu0 %v366
      %534 = vmatpush.msra.mxu0 %v365
      %535 = vmatpush.msra.mxu0 %v364
      %536 = vmatpush.msra.mxu0 %v363
      %537 = vmatpush.msra.mxu0 %v362
      %538 = vmatpush.msra.mxu0 %v361
      %539 = vmatmul.f32.gmra.mxu0 %v479
      %v540 = vpop.f32.mrf.mxu0
      %v541 = vadd.f32 %v521, %v540
      %542 = vdwg.mxu0
      %543 = vmatpush.msra.mxu0 %v392
      %544 = vmatpush.msra.mxu0 %v391
      %545 = vmatpush.msra.mxu0 %v390
      %546 = vmatpush.msra.mxu0 %v389
      %547 = vmatpush.msra.mxu0 %v388
      %548 = vmatpush.msra.mxu0 %v387
      %549 = vmatpush.msra.mxu0 %v386
      %550 = vmatpush.msra.mxu0 %v385
      %551 = vmatpush.msra.mxu0 %v384
      %552 = vmatpush.msra.mxu0 %v383
      %553 = vmatpush.msra.mxu0 %v382
      %554 = vmatpush.msra.mxu0 %v381
      %555 = vmatpush.msra.mxu0 %v380
      %556 = vmatpush.msra.mxu0 %v379
      %557 = vmatpush.msra.mxu0 %v378
      %558 = vmatpush.msra.mxu0 %v377
      %559 = vmatmul.f32.gmra.mxu0 %v480
      %v560 = vpop.f32.mrf.mxu0
      %v561 = vadd.f32 %v541, %v560
      %562 = vdwg.mxu0
      %v563 = vmul.f32 %v476, 0.020833334
      %v564 = vmul.f32 %v561, 0.020833334
      %v565 = vmul.f32 %v563, %v563
      %v566 = vsub.f32 %v564, %v565
      %v567 = vadd.f32 %v566, 1e-05
      %v568 = vrsqrt.pop %v567
      %v569 = vmul.f32 %v568, %v567
      %v570 = vmul.f32 %v569, %v568
      %v571 = vmul.f32 0.5, %v570
      %v572 = vsub.f32 1.5, %v571
      %v573 = vmul.f32 %v568, %v572
      %vm574 = vweird.f32 %v567
      %vm575 = vweird.f32 %v568
      %vm576 = vmor %vm574, %vm575
      %v577 = vsel %vm576, %v568, %v573
      %v578 = vld [vmem:[%s4] sm:$0x1]
      %v579 = vmul.f32 %v577, %v578
      %v580 = vld [vmem:[%s5] sm:$0x1]
      %v581 = vmul.f32 %v563, %v579
      %v582 = vsub.f32 %v580, %v581
      %v583 = vld [vmem:[#allocation6] sm:$0xff]
      %v584 = vld [vmem:[#allocation6 + $0x8] sm:$0xff]
      %v585 = vld [vmem:[#allocation6 + $0x10] sm:$0xff]
      %v586 = vld [vmem:[#allocation6 + $0x18] sm:$0xff]
      %v587 = vld [vmem:[#allocation6 + $0x20] sm:$0xff]
      %v588 = vld [vmem:[#allocation6 + $0x28] sm:$0xff]
      %v589 = vld [vmem:[#allocation6 + $0x30] sm:$0xff]
      %v590 = vld [vmem:[#allocation6 + $0x38] sm:$0xff]
      %v591 = vld [vmem:[#allocation6 + $0x40] sm:$0xff]
      %v592 = vld [vmem:[#allocation6 + $0x48] sm:$0xff]
      %v593 = vld [vmem:[#allocation6 + $0x50] sm:$0xff]
      %v594 = vld [vmem:[#allocation6 + $0x58] sm:$0xff]
      %v595 = vld [vmem:[#allocation6 + $0x60] sm:$0xff]
      %v596 = vld [vmem:[#allocation6 + $0x68] sm:$0xff]
      %v597 = vld [vmem:[#allocation6 + $0x70] sm:$0xff]
      %v598 = vld [vmem:[#allocation6 + $0x78] sm:$0xff]
      %v599 = vld [vmem:[#allocation6 + $0x80] sm:$0xff]
      %v600 = vld [vmem:[#allocation6 + $0x88] sm:$0xff]
      %v601 = vld [vmem:[#allocation6 + $0x90] sm:$0xff]
      %v602 = vld [vmem:[#allocation6 + $0x98] sm:$0xff]
      %v603 = vld [vmem:[#allocation6 + $0xa0] sm:$0xff]
      %v604 = vld [vmem:[#allocation6 + $0xa8] sm:$0xff]
      %v605 = vld [vmem:[#allocation6 + $0xb0] sm:$0xff]
      %v606 = vld [vmem:[#allocation6 + $0xb8] sm:$0xff]
      %v607 = vld [vmem:[#allocation6 + $0xc0] sm:$0xff]
      %v608 = vld [vmem:[#allocation6 + $0xc8] sm:$0xff]
      %v609 = vld [vmem:[#allocation6 + $0xd0] sm:$0xff]
      %v610 = vld [vmem:[#allocation6 + $0xd8] sm:$0xff]
      %v611 = vld [vmem:[#allocation6 + $0xe0] sm:$0xff]
      %v612 = vld [vmem:[#allocation6 + $0xe8] sm:$0xff]
      %v613 = vld [vmem:[#allocation6 + $0xf0] sm:$0xff]
      %v614 = vld [vmem:[#allocation6 + $0xf8] sm:$0xff]
      %v615 = vpack.c.bf16 %v579, %v579
      %v616 = vunpack.c.l.bf16 %v615
      %v617 = vsub.f32 %v579, %v616
      %618 = vmatpush.msra.mxu0 %v613
      %619 = vmatpush.msra.mxu0 %v611
      %620 = vmatpush.msra.mxu0 %v609
      %621 = vmatpush.msra.mxu0 %v607
      %622 = vmatpush.msra.mxu0 %v605
      %623 = vmatpush.msra.mxu0 %v603
      %624 = vmatpush.msra.mxu0 %v601
      %625 = vmatpush.msra.mxu0 %v599
      %626 = vmatpush.msra.mxu0 %v597
      %627 = vmatpush.msra.mxu0 %v595
      %628 = vmatpush.msra.mxu0 %v593
      %629 = vmatpush.msra.mxu0 %v591
      %630 = vmatpush.msra.mxu0 %v589
      %631 = vmatpush.msra.mxu0 %v587
      %632 = vmatpush.msra.mxu0 %v585
      %633 = vmatpush.msra.mxu0 %v583
      %634 = vmatmul.f32.gmra.mxu0 %v617
      %v635 = vpop.f32.mrf.mxu0
      %v636 = vadd.f32 0.0, %v635
      %637 = vdwg.mxu0
      %638 = vmatpush.msra.mxu0 %v614
      %639 = vmatpush.msra.mxu0 %v612
      %640 = vmatpush.msra.mxu0 %v610
      %641 = vmatpush.msra.mxu0 %v608
      %642 = vmatpush.msra.mxu0 %v606
      %643 = vmatpush.msra.mxu0 %v604
      %644 = vmatpush.msra.mxu0 %v602
      %645 = vmatpush.msra.mxu0 %v600
      %646 = vmatpush.msra.mxu0 %v598
      %647 = vmatpush.msra.mxu0 %v596
      %648 = vmatpush.msra.mxu0 %v594
      %649 = vmatpush.msra.mxu0 %v592
      %650 = vmatpush.msra.mxu0 %v590
      %651 = vmatpush.msra.mxu0 %v588
      %652 = vmatpush.msra.mxu0 %v586
      %653 = vmatpush.msra.mxu0 %v584
      %654 = vmatmul.f32.gmra.mxu0 %v617
      %v655 = vpop.f32.mrf.mxu0
      %v656 = vadd.f32 0.0, %v655
      %657 = vdwg.mxu0
      %658 = vmatpush.msra.mxu0 %v613
      %659 = vmatpush.msra.mxu0 %v611
      %660 = vmatpush.msra.mxu0 %v609
      %661 = vmatpush.msra.mxu0 %v607
      %662 = vmatpush.msra.mxu0 %v605
      %663 = vmatpush.msra.mxu0 %v603
      %664 = vmatpush.msra.mxu0 %v601
      %665 = vmatpush.msra.mxu0 %v599
      %666 = vmatpush.msra.mxu0 %v597
      %667 = vmatpush.msra.mxu0 %v595
      %668 = vmatpush.msra.mxu0 %v593
      %669 = vmatpush.msra.mxu0 %v591
      %670 = vmatpush.msra.mxu0 %v589
      %671 = vmatpush.msra.mxu0 %v587
      %672 = vmatpush.msra.mxu0 %v585
      %673 = vmatpush.msra.mxu0 %v583
      %674 = vmatmul.f32.gmra.mxu0 %v616
      %v675 = vpop.f32.mrf.mxu0
      %v676 = vadd.f32 %v636, %v675
      %677 = vdwg.mxu0
      %678 = vmatpush.msra.mxu0 %v614
      %679 = vmatpush.msra.mxu0 %v612
      %680 = vmatpush.msra.mxu0 %v610
      %681 = vmatpush.msra.mxu0 %v608
      %682 = vmatpush.msra.mxu0 %v606
      %683 = vmatpush.msra.mxu0 %v604
      %684 = vmatpush.msra.mxu0 %v602
      %685 = vmatpush.msra.mxu0 %v600
      %686 = vmatpush.msra.mxu0 %v598
      %687 = vmatpush.msra.mxu0 %v596
      %688 = vmatpush.msra.mxu0 %v594
      %689 = vmatpush.msra.mxu0 %v592
      %690 = vmatpush.msra.mxu0 %v590
      %691 = vmatpush.msra.mxu0 %v588
      %692 = vmatpush.msra.mxu0 %v586
      %693 = vmatpush.msra.mxu0 %v584
      %694 = vmatmul.f32.gmra.mxu0 %v616
      %v695 = vpop.f32.mrf.mxu0
      %v696 = vadd.f32 %v656, %v695
      %697 = vdwg.mxu0
      %v698 = vpack.c.bf16 %v582, %v582
      %v699 = vunpack.c.l.bf16 %v698
      %v700 = vsub.f32 %v582, %v699
      %701 = vmatpush.msra.mxu0 %v613
      %702 = vmatpush.msra.mxu0 %v611
      %703 = vmatpush.msra.mxu0 %v609
      %704 = vmatpush.msra.mxu0 %v607
      %705 = vmatpush.msra.mxu0 %v605
      %706 = vmatpush.msra.mxu0 %v603
      %707 = vmatpush.msra.mxu0 %v601
      %708 = vmatpush.msra.mxu0 %v599
      %709 = vmatpush.msra.mxu0 %v597
      %710 = vmatpush.msra.mxu0 %v595
      %711 = vmatpush.msra.mxu0 %v593
      %712 = vmatpush.msra.mxu0 %v591
      %713 = vmatpush.msra.mxu0 %v589
      %714 = vmatpush.msra.mxu0 %v587
      %715 = vmatpush.msra.mxu0 %v585
      %716 = vmatpush.msra.mxu0 %v583
      %717 = vmatmul.f32.gmra.mxu0 %v700
      %v718 = vpop.f32.mrf.mxu0
      %v719 = vadd.f32 0.0, %v718
      %720 = vdwg.mxu0
      %721 = vmatpush.msra.mxu0 %v614
      %722 = vmatpush.msra.mxu0 %v612
      %723 = vmatpush.msra.mxu0 %v610
      %724 = vmatpush.msra.mxu0 %v608
      %725 = vmatpush.msra.mxu0 %v606
      %726 = vmatpush.msra.mxu0 %v604
      %727 = vmatpush.msra.mxu0 %v602
      %728 = vmatpush.msra.mxu0 %v600
      %729 = vmatpush.msra.mxu0 %v598
      %730 = vmatpush.msra.mxu0 %v596
      %731 = vmatpush.msra.mxu0 %v594
      %732 = vmatpush.msra.mxu0 %v592
      %733 = vmatpush.msra.mxu0 %v590
      %734 = vmatpush.msra.mxu0 %v588
      %735 = vmatpush.msra.mxu0 %v586
      %736 = vmatpush.msra.mxu0 %v584
      %737 = vmatmul.f32.gmra.mxu0 %v700
      %v738 = vpop.f32.mrf.mxu0
      %v739 = vadd.f32 0.0, %v738
      %740 = vdwg.mxu0
      %741 = vmatpush.msra.mxu0 %v613
      %742 = vmatpush.msra.mxu0 %v611
      %743 = vmatpush.msra.mxu0 %v609
      %744 = vmatpush.msra.mxu0 %v607
      %745 = vmatpush.msra.mxu0 %v605
      %746 = vmatpush.msra.mxu0 %v603
      %747 = vmatpush.msra.mxu0 %v601
      %748 = vmatpush.msra.mxu0 %v599
      %749 = vmatpush.msra.mxu0 %v597
      %750 = vmatpush.msra.mxu0 %v595
      %751 = vmatpush.msra.mxu0 %v593
      %752 = vmatpush.msra.mxu0 %v591
      %753 = vmatpush.msra.mxu0 %v589
      %754 = vmatpush.msra.mxu0 %v587
      %755 = vmatpush.msra.mxu0 %v585
      %756 = vmatpush.msra.mxu0 %v583
      %757 = vmatmul.f32.gmra.mxu0 %v699
      %v758 = vpop.f32.mrf.mxu0
      %v759 = vadd.f32 %v719, %v758
      %760 = vdwg.mxu0
      %761 = vmatpush.msra.mxu0 %v614
      %762 = vmatpush.msra.mxu0 %v612
      %763 = vmatpush.msra.mxu0 %v610
      %764 = vmatpush.msra.mxu0 %v608
      %765 = vmatpush.msra.mxu0 %v606
      %766 = vmatpush.msra.mxu0 %v604
      %767 = vmatpush.msra.mxu0 %v602
      %768 = vmatpush.msra.mxu0 %v600
      %769 = vmatpush.msra.mxu0 %v598
      %770 = vmatpush.msra.mxu0 %v596
      %771 = vmatpush.msra.mxu0 %v594
      %772 = vmatpush.msra.mxu0 %v592
      %773 = vmatpush.msra.mxu0 %v590
      %774 = vmatpush.msra.mxu0 %v588
      %775 = vmatpush.msra.mxu0 %v586
      %776 = vmatpush.msra.mxu0 %v584
      %777 = vmatmul.f32.gmra.mxu0 %v699
      %v778 = vpop.f32.mrf.mxu0
      %v779 = vadd.f32 %v739, %v778
      %780 = vdwg.mxu0
      %v781 = vperm.slane %v676, 0
      %v782 = vperm.slane %v696, 0
      %v783 = vmul.f32 %v333, %v781
      %v784 = vmul.f32 %v334, %v782
      %v785 = vperm.slane %v759, 0
      %v786 = vperm.slane %v779, 0
      %v787 = vadd.f32 %v783, %v785
      %v788 = vadd.f32 %v784, %v786
      %v789 = vmax.f32 %v787, 0.0
      %v790 = vmax.f32 %v788, 0.0
      %v791 = vlaneseq
      %v792 = vshrl.u32 %v791, 7
      %vm793 = vcmp.lt.s32.totalorder %v792, 2
      %v794 = vsel %vm793, %v789, 0.0
      %v795 = vsel %vm793, %v790, 0.0
      %796 = vst [vmem:[%s6] sm:$0xff] %v794
      %797 = vst [vmem:[%s6 + $0x8] sm:$0xff] %v795
    $region45: #{fwd.8} parent=1 // pred_fallthru
      _
    // Predicated region
    $region46: #{fwd.8} parent=1 // pred_check
      _
    $region47: #{fwd.8} parent=1 // pred_check_branch
      %799 = sbr.rel (0) target = $region49
    $region48: #{fwd.8} parent=1 // pred_region
      _
    $region49: #{fwd.8} parent=1 // pred_fallthru
      _
    // Predicated region
    $region50: #{fwd.8} parent=1 // pred_check
      _
    $region51: #{fwd.8} parent=1 // pred_check_branch
      %801 = sbr.rel (0) target = $region53
    $region52: #{fwd.8} parent=1 // pred_region
      _
    $region53: #{fwd.8} parent=1 // pred_fallthru
      _
    %802 = vsyncpa [#allocation3], 1
    %803 = vsyncpa [#allocation5], 1

// kernel: fwd.9
$region0: #{fwd.9}
  #allocation0 [shape = 'u32[]', space=smem, size = 0x4, offset = 0x4, fixed_abs, tag = 'smem constant byte address 0x4 - core index']
  #allocation1 [shape = 'u32[72,128]{1,0:T(1,128)}', space=vmem, size = 0x9000, scoped, tag = 'internal scratch']
  %s0 = inlined_call_operand.vmem [shape: f32[8,256], index: 0, kind: input, shape index: {}]
  %s1 = inlined_call_operand.hbm [shape: bf16[256,128], index: 1, kind: input, shape index: {}]
  %s2 = inlined_call_operand.vmem [shape: f32[1,128], index: 2, kind: input, shape index: {}]
  %s3 = inlined_call_operand.vmem [shape: f32[8,128], index: 3, kind: output, shape index: {}]
  %s4 = sld [smem:[#allocation0]]
  $region34: #{fwd.9} parent=0
    _
  %s6 = ssub.s32 1, %s4
  %s7 = scalar_select 0, %s6, %s4
  $region1: #{fwd.9} parent=0
    #allocation2 [shape = 'u8[65536]{0}', space=vmem, size = 0x10000, scoped, tag = 'input window, operand 1, single buffered']
    #allocation3 [shape = 's32[1]{0}', space=sflag, size = 0x4, scoped, tag = 'scoped memory for fwd.9']
    %8 = vsyncpa [#allocation3], 0
    // Predicated region
    $region2: #{fwd.9} parent=1 // pred_check
      _
    $region3: #{fwd.9} parent=1 // pred_check_branch
      %10 = sbr.rel (0) target = $region5
    $region4: #{fwd.9} parent=1 // pred_region
      _
    $region5: #{fwd.9} parent=1 // pred_fallthru
      _
    // Predicated region
    $region6: #{fwd.9} parent=1 // pred_check
      _
    $region7: #{fwd.9} parent=1 // pred_check_branch
      %12 = sbr.rel (0) target = $region9
    $region8: #{fwd.9} parent=1 // pred_region
      %14 = vsyncadd [#allocation3], 0
      %s15 = sshll.u32 %s1, 4
      %s16 = int_to_ptr.hbm [resolvable:$true] %s15
      %s17 = sshll.u32 [#allocation2], 4
      %s18 = int_to_ptr.vmem [resolvable:$true] %s17
      %23 = dma.hbm_to_vmem [thread:$0]  %s16, 2048, %s18, [#allocation3], 64, 64, 4
    $region9: #{fwd.9} parent=1 // pred_fallthru
      _
    // Predicated region
    $region10: #{fwd.9} parent=1 // pred_check
      _
    $region11: #{fwd.9} parent=1 // pred_check_branch
      %25 = sbr.rel (0) target = $region13
    $region12: #{fwd.9} parent=1 // pred_region
      _
    $region13: #{fwd.9} parent=1 // pred_fallthru
      _
    // Predicated region
    $region14: #{fwd.9} parent=1 // pred_check
      _
    $region15: #{fwd.9} parent=1 // pred_check_branch
      %27 = sbr.rel (0) target = $region17
    $region16: #{fwd.9} parent=1 // pred_region
      %29 = dma.done [#allocation3], 2048
    $region17: #{fwd.9} parent=1 // pred_fallthru
      _
    %p30 = scmp.eq.s32.totalorder 0, 0
    // Predicated region
    $region18: #{fwd.9} parent=1 // pred_check
      %p31 = pneg %p30
    $region19: #{fwd.9} parent=1 // pred_check_branch
      %33 = sbr.rel (%p31) target = $region21
    $region20: #{fwd.9} parent=1 // pred_region
      %34 = vst [vmem:[%s3] sm:$0xff] 0.0
    $region21: #{fwd.9} parent=1 // pred_fallthru
      _
    %v35 = vld [vmem:[%s3] sm:$0xff]
    %v36 = vld [vmem:[%s0] sm:$0xff]
    %v37 = vld [vmem:[%s0 + $0x8] sm:$0xff]
    %v38 = vpack.c.bf16 %v36, %v36
    %v39 = vpack.c.bf16 %v37, %v37
    %v40 = vld [vmem:[#allocation2] sm:$0xf]
    %v41 = vld [vmem:[#allocation2 + $0x4] sm:$0xf]
    %v42 = vld [vmem:[#allocation2 + $0x8] sm:$0xf]
    %v43 = vld [vmem:[#allocation2 + $0xc] sm:$0xf]
    %v44 = vld [vmem:[#allocation2 + $0x10] sm:$0xf]
    %v45 = vld [vmem:[#allocation2 + $0x14] sm:$0xf]
    %v46 = vld [vmem:[#allocation2 + $0x18] sm:$0xf]
    %v47 = vld [vmem:[#allocation2 + $0x1c] sm:$0xf]
    %v48 = vld [vmem:[#allocation2 + $0x20] sm:$0xf]
    %v49 = vld [vmem:[#allocation2 + $0x24] sm:$0xf]
    %v50 = vld [vmem:[#allocation2 + $0x28] sm:$0xf]
    %v51 = vld [vmem:[#allocation2 + $0x2c] sm:$0xf]
    %v52 = vld [vmem:[#allocation2 + $0x30] sm:$0xf]
    %v53 = vld [vmem:[#allocation2 + $0x34] sm:$0xf]
    %v54 = vld [vmem:[#allocation2 + $0x38] sm:$0xf]
    %v55 = vld [vmem:[#allocation2 + $0x3c] sm:$0xf]
    %v56 = vld [vmem:[#allocation2 + $0x40] sm:$0xf]
    %v57 = vld [vmem:[#allocation2 + $0x44] sm:$0xf]
    %v58 = vld [vmem:[#allocation2 + $0x48] sm:$0xf]
    %v59 = vld [vmem:[#allocation2 + $0x4c] sm:$0xf]
    %v60 = vld [vmem:[#allocation2 + $0x50] sm:$0xf]
    %v61 = vld [vmem:[#allocation2 + $0x54] sm:$0xf]
    %v62 = vld [vmem:[#allocation2 + $0x58] sm:$0xf]
    %v63 = vld [vmem:[#allocation2 + $0x5c] sm:$0xf]
    %v64 = vld [vmem:[#allocation2 + $0x60] sm:$0xf]
    %v65 = vld [vmem:[#allocation2 + $0x64] sm:$0xf]
    %v66 = vld [vmem:[#allocation2 + $0x68] sm:$0xf]
    %v67 = vld [vmem:[#allocation2 + $0x6c] sm:$0xf]
    %v68 = vld [vmem:[#allocation2 + $0x70] sm:$0xf]
    %v69 = vld [vmem:[#allocation2 + $0x74] sm:$0xf]
    %v70 = vld [vmem:[#allocation2 + $0x78] sm:$0xf]
    %v71 = vld [vmem:[#allocation2 + $0x7c] sm:$0xf]
    %v104 = vunpack.c.l.b16 %v40
    %v105 = vunpack.c.l.b16 %v41
    %v106 = vunpack.c.l.b16 %v42
    %v107 = vunpack.c.l.b16 %v43
    %v108 = vunpack.c.l.b16 %v44
    %v109 = vunpack.c.l.b16 %v45
    %v110 = vunpack.c.l.b16 %v46
    %v111 = vunpack.c.l.b16 %v47
    %v112 = vunpack.c.l.b16 %v48
    %v113 = vunpack.c.l.b16 %v49
    %v114 = vunpack.c.l.b16 %v50
    %v115 = vunpack.c.l.b16 %v51
    %v116 = vunpack.c.l.b16 %v52
    %v117 = vunpack.c.l.b16 %v53
    %v118 = vunpack.c.l.b16 %v54
    %v119 = vunpack.c.l.b16 %v55
    %v120 = vunpack.c.l.b16 %v56
    %v121 = vunpack.c.l.b16 %v57
    %v122 = vunpack.c.l.b16 %v58
    %v123 = vunpack.c.l.b16 %v59
    %v124 = vunpack.c.l.b16 %v60
    %v125 = vunpack.c.l.b16 %v61
    %v126 = vunpack.c.l.b16 %v62
    %v127 = vunpack.c.l.b16 %v63
    %v128 = vunpack.c.l.b16 %v64
    %v129 = vunpack.c.l.b16 %v65
    %v130 = vunpack.c.l.b16 %v66
    %v131 = vunpack.c.l.b16 %v67
    %v132 = vunpack.c.l.b16 %v68
    %v133 = vunpack.c.l.b16 %v69
    %v134 = vunpack.c.l.b16 %v70
    %v135 = vunpack.c.l.b16 %v71
    %v136 = vpack.c.b16 %v105, %v104
    %v137 = vpack.c.b16 %v107, %v106
    %v138 = vpack.c.b16 %v109, %v108
    %v139 = vpack.c.b16 %v111, %v110
    %v140 = vpack.c.b16 %v113, %v112
    %v141 = vpack.c.b16 %v115, %v114
    %v142 = vpack.c.b16 %v117, %v116
    %v143 = vpack.c.b16 %v119, %v118
    %v144 = vpack.c.b16 %v121, %v120
    %v145 = vpack.c.b16 %v123, %v122
    %v146 = vpack.c.b16 %v125, %v124
    %v147 = vpack.c.b16 %v127, %v126
    %v148 = vpack.c.b16 %v129, %v128
    %v149 = vpack.c.b16 %v131, %v130
    %v150 = vpack.c.b16 %v133, %v132
    %v151 = vpack.c.b16 %v135, %v134
    %168 = vmatpush.bf16.msra.mxu0 %v143
    %169 = vmatpush.bf16.msra.mxu0 %v142
    %170 = vmatpush.bf16.msra.mxu0 %v141
    %171 = vmatpush.bf16.msra.mxu0 %v140
    %172 = vmatpush.bf16.msra.mxu0 %v139
    %173 = vmatpush.bf16.msra.mxu0 %v138
    %174 = vmatpush.bf16.msra.mxu0 %v137
    %175 = vmatpush.bf16.msra.mxu0 %v136
    %176 = vmatmul.bf16.gmra.mxu0 %v38
    %v177 = vpop.f32.mrf.mxu0
    %v178 = vadd.f32 0.0, %v177
    %v179 = vpop.f32.mrf.mxu0
    %180 = vdwg.mxu0
    %181 = vmatpush.bf16.msra.mxu0 %v151
    %182 = vmatpush.bf16.msra.mxu0 %v150
    %183 = vmatpush.bf16.msra.mxu0 %v149
    %184 = vmatpush.bf16.msra.mxu0 %v148
    %185 = vmatpush.bf16.msra.mxu0 %v147
    %186 = vmatpush.bf16.msra.mxu0 %v146
    %187 = vmatpush.bf16.msra.mxu0 %v145
    %188 = vmatpush.bf16.msra.mxu0 %v144
    %189 = vmatmul.bf16.gmra.mxu0 %v39
    %v190 = vpop.f32.mrf.mxu0
    %v191 = vadd.f32 %v178, %v190
    %v192 = vpop.f32.mrf.mxu0
    %193 = vdwg.mxu0
    %v194 = vadd.f32 %v35, %v191
    %195 = vst [vmem:[%s3] sm:$0xff] %v194
    // Predicated region
    $region22: #{fwd.9} parent=1 // pred_check
      %p196 = pneg %p30
    $region23: #{fwd.9} parent=1 // pred_check_branch
      %198 = sbr.rel (%p196) target = $region25
    $region24: #{fwd.9} parent=1 // pred_region
      %v199 = vld [vmem:[%s3] sm:$0xff]
      %v200 = vld [vmem:[%s2] sm:$0x1]
      %v202 = vperm.slane %v200, 0
      %v204 = vadd.f32 %v199, %v202
      %205 = vst [vmem:[%s3] sm:$0xff] %v204
    $region25: #{fwd.9} parent=1 // pred_fallthru
      _
    // Predicated region
    $region26: #{fwd.9} parent=1 // pred_check
      _
    $region27: #{fwd.9} parent=1 // pred_check_branch
      %207 = sbr.rel (0) target = $region29
    $region28: #{fwd.9} parent=1 // pred_region
      _
    $region29: #{fwd.9} parent=1 // pred_fallthru
      _
    // Predicated region
    $region30: #{fwd.9} parent=1 // pred_check
      _
    $region31: #{fwd.9} parent=1 // pred_check_branch
      %209 = sbr.rel (0) target = $region33
    $region32: #{fwd.9} parent=1 // pred_region
      _
    $region33: #{fwd.9} parent=1 // pred_fallthru
      _
    %210 = vsyncpa [#allocation3], 1

</llo_original>
